<compile_context>
chip_gen: v6e
topology: v6e:2x2x1
jax: 0.10.0
libtpu: 0.0.40
codegen_flags: <defaults>
</compile_context>

<pallas_src>
import math

import jax
import jax.numpy as jnp
from jax.experimental import pallas as pl
from jax.experimental.pallas import tpu as pltpu


def _pick_block_batch(bs, seq, target_rows=512):
    """Batch elements per grid step.

    Picks the largest divisor of bs whose (block_batch * seq, D) row slab
    stays within `target_rows`, then — for v7x megacore — halves it as needed
    so the "parallel" grid axis has >= 2 steps whenever bs permits (keeping
    one of the two TensorCores busy is worth more than a bigger slab).
    Also keeps the row-slab height a multiple of 8 (sublane constraint).
    """
    def rows_ok(d):
        return (d * seq) % 8 == 0 or d == bs

    divisors = [d for d in range(1, bs + 1) if bs % d == 0]
    ok = [d for d in divisors if rows_ok(d)] or [bs]
    cand = [d for d in ok if d * seq <= max(target_rows, seq)] or [min(ok)]
    bt = max(cand)
    if bs // bt < 2 and bs >= 2:
        two_step = [d for d in ok if bs // d >= 2]
        if two_step:
            bt = max(two_step)
    return bt


def _make_mha_kernel(heads, d_k, block_batch, seq, d_model, use_mask,
                     mm_dtype, approx_recip):
    scale = 1.0 / math.sqrt(d_k)
    rows = block_batch * seq           # M dimension of the projection matmuls
    # Reference quirk: without a mask there is no softmax, so the "probs" are
    # unbounded scores — keep the P @ V matmul in f32 in that case even when
    # mm_dtype is bf16 (correctness-review item).
    pv_dtype = mm_dtype if use_mask else jnp.float32

    def impl(q_ref, k_ref, v_ref, mask_ref,
             wq_ref, bq_ref, wk_ref, bk_ref, wv_ref, bv_ref, wo_ref, bo_ref,
             out_ref, ctx_ref):
        # ---- input projections: one tall (rows, D) @ (D, D) pass each -----
        # Activations arrive as f32 and are cast here (VPU, free filler);
        # weights were pre-cast in the wrapper (fetched once, resident).
        q = jnp.dot(q_ref[...].astype(mm_dtype), wq_ref[...],
                    preferred_element_type=jnp.float32) + bq_ref[...]
        k = jnp.dot(k_ref[...].astype(mm_dtype), wk_ref[...],
                    preferred_element_type=jnp.float32) + bk_ref[...]
        v = jnp.dot(v_ref[...].astype(mm_dtype), wv_ref[...],
                    preferred_element_type=jnp.float32) + bv_ref[...]
        q = q * scale  # fold 1/sqrt(d_k) once per block, not per head

        # Head-split views: leading-dim split only (layout-trivial reshape).
        q3 = q.reshape(block_batch, seq, d_model).astype(mm_dtype)
        k3 = k.reshape(block_batch, seq, d_model).astype(mm_dtype)
        v3 = v.reshape(block_batch, seq, d_model).astype(pv_dtype)

        if use_mask:
            # Hoisted out of the head loop: one compare per grid step.
            # mask_ref block is (1, S, S) (shared/resident) or (Bt, S, S);
            # either broadcasts against the (Bt, S, S) scores.
            masked = mask_ref[...].astype(jnp.int32) == 0

        # Static unroll over heads.  Each head's temporaries die at the
        # scratch store below (no loop-carried vreg accumulator), which keeps
        # vreg pressure at ~one head's worth of (Bt, S, S) f32 temporaries.
        for h in range(heads):
            sl = slice(h * d_k, (h + 1) * d_k)
            # scores = q @ k^T, batched over the Bt in-block batch elements.
            s = jnp.einsum('bqd,bkd->bqk', q3[:, :, sl], k3[:, :, sl],
                           preferred_element_type=jnp.float32)  # (Bt,S,S) f32

            if use_mask:
                s = jnp.where(masked, jnp.float32(-1e9), s)
                # numerically stable softmax, kept in f32 (v5e has no bf16 VPU)
                s = s - jnp.max(s, axis=-1, keepdims=True)
                e = jnp.exp(s)
                denom = jnp.sum(e, axis=-1, keepdims=True)
                p = e * pl.reciprocal(denom, approx=approx_recip)
            else:
                # Reference quirk: no softmax when mask is None.
                p = s

            ctx = jnp.einsum('bqk,bkd->bqd', p.astype(pv_dtype), v3[:, :, sl],
                             preferred_element_type=jnp.float32)  # (Bt,S,d_k)

            # Park this head's context in its column slice of the f32 scratch;
            # the single K=D output projection below replaces `heads` K=d_k
            # matmuls (concat @ Wo == scratch @ Wo).
            ctx_ref[:, sl] = ctx.reshape(rows, d_k)

        out_ref[...] = (jnp.dot(ctx_ref[...].astype(mm_dtype), wo_ref[...],
                                preferred_element_type=jnp.float32)
                        + bo_ref[...]).astype(out_ref.dtype)

    if use_mask:
        return impl

    # Variant without a mask ref in the signature: no dummy-mask DMA at all.
    def body_nomask(q_ref, k_ref, v_ref, *rest):
        impl(q_ref, k_ref, v_ref, None, *rest)

    return body_nomask


def multi_head_attention_pallas(q, k, v, params, heads, mask=None,
                                mm_dtype=jnp.float32, block_batch=None,
                                approx_softmax_recip=False):
    """q, k, v: (bs, S, D) float32.  mask: optional (bs, S, S) or (1, S, S) int.

    mm_dtype: dtype of the matmul operands.  jnp.bfloat16 is recommended on
    all TPU generations (v5e/v6e/v7x MXUs are bf16-native); accumulation and
    the mask/softmax path are always f32.
    approx_softmax_recip: use pl.reciprocal(approx=True) (EUP slot, ~free) for
    the softmax denominator; adds ~1e-3 relative error.  Explicit flag, not
    tied to mm_dtype.
    A (1, S, S) mask (e.g. shared causal mask) is DMA'd once and kept resident
    instead of shipping bs copies.
    """
    bs, seq, d_model = q.shape
    assert d_model % heads == 0
    d_k = d_model // heads
    orig_dtype = q.dtype
    use_mask = mask is not None
    mmd = jnp.dtype(mm_dtype)

    if block_batch is None:
        block_batch = _pick_block_batch(bs, seq)
    assert bs % block_batch == 0, "block_batch must divide batch size"
    grid_b = bs // block_batch
    rows = block_batch * seq
    assert rows % 8 == 0 or block_batch == bs, "row slab must be sublane-aligned"

    wq, bq, wk, bk, wv, bv, wo, bo = params
    # Weights: pre-cast once (fetched once, resident in VMEM).
    wq, wk, wv, wo = (w.astype(mmd) for w in (wq, wk, wv, wo))
    # Biases stay f32 (added to f32 accumulators) as (1, D) rows.
    bq, bk, bv, bo = (b.reshape(1, d_model).astype(jnp.float32)
                      for b in (bq, bk, bv, bo))

    # Row-slab presentation: (bs*S, D) in f32; mm_dtype cast happens in-kernel.
    q2 = q.reshape(bs * seq, d_model).astype(jnp.float32)
    k2 = k.reshape(bs * seq, d_model).astype(jnp.float32)
    v2 = v.reshape(bs * seq, d_model).astype(jnp.float32)

    x_spec = pl.BlockSpec((rows, d_model), lambda i: (i, 0))
    o_spec = pl.BlockSpec((rows, d_model), lambda i: (i, 0))
    # TODO(synk): for d_model < 128 a lane-dense (grid_b, rows*d_model) output
    #             slab would avoid masked partial stores; needs an in-kernel
    #             minor-dim relayout, so it is not done here.

    inputs = [q2, k2, v2]
    mask_block_b = 0
    if use_mask:
        assert mask.shape[-2:] == (seq, seq)
        mask_b = mask.shape[0]
        assert mask_b in (1, bs), "mask batch dim must be 1 or bs"
        mask_i8 = (mask != 0).astype(jnp.int8)   # 4x less DMA than int32
        if mask_b == 1:
            mask_block_b = 1
            mask_spec = pl.BlockSpec((1, seq, seq), lambda i: (0, 0, 0))
        else:
            mask_block_b = block_batch
            mask_spec = pl.BlockSpec((block_batch, seq, seq),
                                     lambda i: (i, 0, 0))
        inputs.append(mask_i8)
    inputs += [wq, bq, wk, bk, wv, bv, wo, bo]

    kernel = _make_mha_kernel(heads, d_k, block_batch, seq, d_model, use_mask,
                              mmd, approx_softmax_recip)

    # ---- explicit VMEM budget (v5e scoped default 16 MiB, v7x physical 64) --
    act_bytes = rows * d_model * 4                       # one f32 block
    weight_bytes = 4 * d_model * d_model * mmd.itemsize
    bias_bytes = 4 * d_model * 4
    mask_bytes = mask_block_b * seq * seq if use_mask else 0
    scratch_bytes = rows * d_model * 4
    tmp_bytes = 4 * block_batch * seq * seq * 4          # live s/e/p/mask temps
    est = (3 * act_bytes * 2       # q, k, v (double-buffered)
           + act_bytes * 2         # output (double-buffered)
           + weight_bytes + bias_bytes
           + mask_bytes * 2
           + scratch_bytes + tmp_bytes)
    vmem_limit = int(min(max(est * 2 + (4 << 20), 16 << 20), 64 << 20))

    def build(single_buffer_consts):
        # Constant-index weight/bias blocks: their index_map returns (0, 0)
        # every step, so double-buffering buys nothing — request 1 buffer.
        def const_spec(shape):
            idx = lambda i: (0,) * len(shape)
            if single_buffer_consts:
                return pl.BlockSpec(shape, idx, pipeline_mode=pl.Buffered(1))
            return pl.BlockSpec(shape, idx)

        w_spec = const_spec((d_model, d_model))
        b_spec = const_spec((1, d_model))
        in_specs = [x_spec, x_spec, x_spec]
        if use_mask:
            in_specs.append(mask_spec)
        in_specs += [w_spec, b_spec, w_spec, b_spec,
                     w_spec, b_spec, w_spec, b_spec]

        return pl.pallas_call(
            kernel,
            out_shape=jax.ShapeDtypeStruct((bs * seq, d_model), jnp.float32),
            grid=(grid_b,),
            in_specs=in_specs,
            out_specs=o_spec,
            scratch_shapes=[pltpu.VMEM((rows, d_model), jnp.float32)],
            compiler_params=pltpu.CompilerParams(
                dimension_semantics=("parallel",),
                vmem_limit_bytes=vmem_limit),
        )

    try:
        out2 = build(True)(*inputs)
    except Exception:
        # pl.Buffered(1) not supported by this JAX build — default buffering.
        out2 = build(False)(*inputs)

    return out2.reshape(bs, seq, d_model).astype(orig_dtype)


# ---------------- pure-JAX reference for a sanity check ----------------
def _mha_reference(q, k, v, params, heads, mask=None):
    bs, S, D = q.shape
    d_k = D // heads
    wq, bq, wk, bk, wv, bv, wo, bo = params

    def proj(x, w, b):
        return x @ w + b

    def split(x):  # (bs, S, D) -> (bs, h, S, d_k)
        return x.reshape(bs, S, heads, d_k).transpose(0, 2, 1, 3)

    qh = split(proj(q, wq, bq))
    kh = split(proj(k, wk, bk))
    vh = split(proj(v, wv, bv))

    scores = jnp.einsum("bhsd,bhtd->bhst", qh, kh) / math.sqrt(d_k)
    if mask is not None:
        m = mask[:, None, :, :]
        scores = jnp.where(m == 0, -1e9, scores)
        scores = jax.nn.softmax(scores, axis=-1)
    out = jnp.einsum("bhst,bhtd->bhsd", scores, vh)
    concat = out.transpose(0, 2, 1, 3).reshape(bs, S, D)
    return concat @ wo + bo


def _init_params(key, d_model):
    # Deterministic init mimicking nn.Linear: U(-1/sqrt(in), 1/sqrt(in)).
    bound = 1.0 / math.sqrt(d_model)
    keys = jax.random.split(key, 8)

    def u(k, shape):
        return jax.random.uniform(k, shape, jnp.float32, -bound, bound)

    wq = u(keys[0], (d_model, d_model)); bq = u(keys[1], (d_model,))
    wk = u(keys[2], (d_model, d_model)); bk = u(keys[3], (d_model,))
    wv = u(keys[4], (d_model, d_model)); bv = u(keys[5], (d_model,))
    wo = u(keys[6], (d_model, d_model)); bo = u(keys[7], (d_model,))
    return (wq, bq, wk, bk, wv, bv, wo, bo)


if __name__ == "__main__":
    bs, seq, d_model, heads = 2, 8, 32, 4

    key = jax.random.PRNGKey(0)
    kq, kk, kv, kp = jax.random.split(key, 4)
    q = jax.random.normal(kq, (bs, seq, d_model), jnp.float32)
    k = jax.random.normal(kk, (bs, seq, d_model), jnp.float32)
    v = jax.random.normal(kv, (bs, seq, d_model), jnp.float32)
    params = _init_params(kp, d_model)

    # causal mask, broadcast over heads inside the kernel (== unsqueeze(1))
    causal = jnp.tril(jnp.ones((seq, seq), jnp.int32))
    mask_per_batch = causal[None].repeat(bs, axis=0)   # (bs, S, S)
    mask_shared = causal[None]                         # (1, S, S): resident

    ref = _mha_reference(q, k, v, params, heads, mask=mask_per_batch)

    # f32 path, per-batch mask: exact-ish parity with the PyTorch module
    out = jax.block_until_ready(
        multi_head_attention_pallas(q, k, v, params, heads, mask=mask_per_batch))
    assert out.shape == (bs, seq, d_model)
    assert jnp.allclose(out, ref, atol=1e-4, rtol=1e-4), "mismatch vs reference"

    # shared (1, S, S) mask path: DMA'd once, kept resident
    out_sh = jax.block_until_ready(
        multi_head_attention_pallas(q, k, v, params, heads, mask=mask_shared))
    assert jnp.allclose(out_sh, ref, atol=1e-4, rtol=1e-4), "shared-mask mismatch"

    # mask=None path (reference quirk: no softmax) — no dummy mask shipped
    out_nm = jax.block_until_ready(
        multi_head_attention_pallas(q, k, v, params, heads, mask=None))
    ref_nm = _mha_reference(q, k, v, params, heads, mask=None)
    assert jnp.allclose(out_nm, ref_nm, atol=1e-4, rtol=1e-4), "no-mask mismatch"

    # bf16 matmul operands + approx softmax reciprocal (fast path on all gens);
    # accumulation stays f32 — loose tolerance per the precision change.
    out_bf = jax.block_until_ready(
        multi_head_attention_pallas(q, k, v, params, heads, mask=mask_per_batch,
                                    mm_dtype=jnp.bfloat16,
                                    approx_softmax_recip=True))
    assert jnp.allclose(out_bf, ref, atol=1e-1, rtol=1e-1), "bf16 path mismatch"

    print("KERNEL_OK")
</pallas_src>

<mosaic_0001>
module attributes {stable_mosaic.version = 11 : i64} {
  func.func @impl(%arg0: i32, %arg1: memref<8x32xf32, #tpu.memory_space<vmem>>, %arg2: memref<8x32xf32, #tpu.memory_space<vmem>>, %arg3: memref<8x32xf32, #tpu.memory_space<vmem>>, %arg4: memref<1x8x8xi8, #tpu.memory_space<vmem>>, %arg5: memref<32x32xf32, #tpu.memory_space<vmem>>, %arg6: memref<1x32xf32, #tpu.memory_space<vmem>>, %arg7: memref<32x32xf32, #tpu.memory_space<vmem>>, %arg8: memref<1x32xf32, #tpu.memory_space<vmem>>, %arg9: memref<32x32xf32, #tpu.memory_space<vmem>>, %arg10: memref<1x32xf32, #tpu.memory_space<vmem>>, %arg11: memref<32x32xf32, #tpu.memory_space<vmem>>, %arg12: memref<1x32xf32, #tpu.memory_space<vmem>>, %arg13: memref<8x32xf32, #tpu.memory_space<vmem>>, %arg14: memref<8x32xf32, #tpu.memory_space<vmem>>) attributes {dimension_semantics = [#tpu.dimension_semantics<parallel>], iteration_bounds = array<i64: 2>, scalar_prefetch = 0 : i64, scratch_operands = 1 : i64, tpu.core_type = #tpu.core_type<tc>, window_params = [{transform_indices = @transform_0, window_bounds = array<i64: 8, 32>}, {transform_indices = @transform_1, window_bounds = array<i64: 8, 32>}, {transform_indices = @transform_2, window_bounds = array<i64: 8, 32>}, {transform_indices = @transform_3, window_bounds = array<i64: 1, 8, 8>}, {pipeline_mode = #tpu.pipeline_mode<synchronous>, transform_indices = @transform_4, window_bounds = array<i64: 32, 32>}, {pipeline_mode = #tpu.pipeline_mode<synchronous>, transform_indices = @transform_5, window_bounds = array<i64: 1, 32>}, {pipeline_mode = #tpu.pipeline_mode<synchronous>, transform_indices = @transform_6, window_bounds = array<i64: 32, 32>}, {pipeline_mode = #tpu.pipeline_mode<synchronous>, transform_indices = @transform_7, window_bounds = array<i64: 1, 32>}, {pipeline_mode = #tpu.pipeline_mode<synchronous>, transform_indices = @transform_8, window_bounds = array<i64: 32, 32>}, {pipeline_mode = #tpu.pipeline_mode<synchronous>, transform_indices = @transform_9, window_bounds = array<i64: 1, 32>}, {pipeline_mode = #tpu.pipeline_mode<synchronous>, transform_indices = @transform_10, window_bounds = array<i64: 32, 32>}, {pipeline_mode = #tpu.pipeline_mode<synchronous>, transform_indices = @transform_11, window_bounds = array<i64: 1, 32>}, {transform_indices = @transform_12, window_bounds = array<i64: 8, 32>}]} {
    %c0 = arith.constant 0 : index
    %c0_0 = arith.constant 0 : index
    %0 = vector.load %arg1[%c0, %c0_0] : memref<8x32xf32, #tpu.memory_space<vmem>>, vector<8x32xf32>
    %c0_1 = arith.constant 0 : index
    %c0_2 = arith.constant 0 : index
    %1 = vector.load %arg5[%c0_1, %c0_2] : memref<32x32xf32, #tpu.memory_space<vmem>>, vector<32x32xf32>
    %cst = arith.constant dense<0.000000e+00> : vector<8x32xf32>
    %2 = tpu.matmul %0, %1, %cst {dimension_numbers = #tpu.dot_dimension_numbers<[1], [0], [0], [1], [0, 0, 1, 1], [], []>} : vector<8x32xf32>, vector<32x32xf32>, vector<8x32xf32> -> vector<8x32xf32>
    %c0_3 = arith.constant 0 : index
    %c0_4 = arith.constant 0 : index
    %3 = vector.load %arg6[%c0_3, %c0_4] : memref<1x32xf32, #tpu.memory_space<vmem>>, vector<1x32xf32>
    %4 = vector.broadcast %3 : vector<1x32xf32> to vector<8x32xf32>
    %5 = arith.addf %2, %4 : vector<8x32xf32>
    %c0_5 = arith.constant 0 : index
    %c0_6 = arith.constant 0 : index
    %6 = vector.load %arg2[%c0_5, %c0_6] : memref<8x32xf32, #tpu.memory_space<vmem>>, vector<8x32xf32>
    %c0_7 = arith.constant 0 : index
    %c0_8 = arith.constant 0 : index
    %7 = vector.load %arg7[%c0_7, %c0_8] : memref<32x32xf32, #tpu.memory_space<vmem>>, vector<32x32xf32>
    %cst_9 = arith.constant dense<0.000000e+00> : vector<8x32xf32>
    %8 = tpu.matmul %6, %7, %cst_9 {dimension_numbers = #tpu.dot_dimension_numbers<[1], [0], [0], [1], [0, 0, 1, 1], [], []>} : vector<8x32xf32>, vector<32x32xf32>, vector<8x32xf32> -> vector<8x32xf32>
    %c0_10 = arith.constant 0 : index
    %c0_11 = arith.constant 0 : index
    %9 = vector.load %arg8[%c0_10, %c0_11] : memref<1x32xf32, #tpu.memory_space<vmem>>, vector<1x32xf32>
    %10 = vector.broadcast %9 : vector<1x32xf32> to vector<8x32xf32>
    %11 = arith.addf %8, %10 : vector<8x32xf32>
    %c0_12 = arith.constant 0 : index
    %c0_13 = arith.constant 0 : index
    %12 = vector.load %arg3[%c0_12, %c0_13] : memref<8x32xf32, #tpu.memory_space<vmem>>, vector<8x32xf32>
    %c0_14 = arith.constant 0 : index
    %c0_15 = arith.constant 0 : index
    %13 = vector.load %arg9[%c0_14, %c0_15] : memref<32x32xf32, #tpu.memory_space<vmem>>, vector<32x32xf32>
    %cst_16 = arith.constant dense<0.000000e+00> : vector<8x32xf32>
    %14 = tpu.matmul %12, %13, %cst_16 {dimension_numbers = #tpu.dot_dimension_numbers<[1], [0], [0], [1], [0, 0, 1, 1], [], []>} : vector<8x32xf32>, vector<32x32xf32>, vector<8x32xf32> -> vector<8x32xf32>
    %c0_17 = arith.constant 0 : index
    %c0_18 = arith.constant 0 : index
    %15 = vector.load %arg10[%c0_17, %c0_18] : memref<1x32xf32, #tpu.memory_space<vmem>>, vector<1x32xf32>
    %16 = vector.broadcast %15 : vector<1x32xf32> to vector<8x32xf32>
    %17 = arith.addf %14, %16 : vector<8x32xf32>
    %cst_19 = arith.constant 0.353553385 : f32
    %18 = vector.broadcast %cst_19 : f32 to vector<8x32xf32>
    %19 = arith.mulf %5, %18 : vector<8x32xf32>
    %20 = vector.shape_cast %19 : vector<8x32xf32> to vector<1x8x32xf32>
    %21 = vector.shape_cast %11 : vector<8x32xf32> to vector<1x8x32xf32>
    %22 = vector.shape_cast %17 : vector<8x32xf32> to vector<1x8x32xf32>
    %c0_20 = arith.constant 0 : index
    %c0_21 = arith.constant 0 : index
    %c0_22 = arith.constant 0 : index
    %23 = vector.load %arg4[%c0_20, %c0_21, %c0_22] : memref<1x8x8xi8, #tpu.memory_space<vmem>>, vector<1x8x8xi8>
    %24 = arith.extsi %23 : vector<1x8x8xi8> to vector<1x8x8xi32>
    %c0_i32 = arith.constant 0 : i32
    %25 = vector.broadcast %c0_i32 : i32 to vector<1x8x8xi32>
    %26 = arith.cmpi eq, %24, %25 : vector<1x8x8xi32>
    %27 = vector.extract_strided_slice %20 {offsets = [0, 0, 0], sizes = [1, 8, 8], strides = [1, 1, 1]} : vector<1x8x32xf32> to vector<1x8x8xf32>
    %28 = vector.extract_strided_slice %21 {offsets = [0, 0, 0], sizes = [1, 8, 8], strides = [1, 1, 1]} : vector<1x8x32xf32> to vector<1x8x8xf32>
    "tpu.trace_start"() <{level = 10 : i32, message = "bqd,bkd->bqk"}> : () -> ()
    %cst_23 = arith.constant dense<0.000000e+00> : vector<1x8x8xf32>
    %29 = tpu.matmul %27, %28, %cst_23 {dimension_numbers = #tpu.dot_dimension_numbers<[2], [2], [1], [1], [0, 0, 0, 1, 1, 1], [0], [0]>} : vector<1x8x8xf32>, vector<1x8x8xf32>, vector<1x8x8xf32> -> vector<1x8x8xf32>
    %cst_24 = arith.constant -1.000000e+09 : f32
    "tpu.trace_stop"() : () -> ()
    %30 = vector.broadcast %cst_24 : f32 to vector<1x8x8xf32>
    %31 = arith.select %26, %30, %29 : vector<1x8x8xi1>, vector<1x8x8xf32>
    %cst_25 = arith.constant dense<0xFF800000> : vector<1x8xf32>
    %32 = vector.multi_reduction <maximumf>, %31, %cst_25 [2] : vector<1x8x8xf32> to vector<1x8xf32>
    %33 = vector.shape_cast %32 : vector<1x8xf32> to vector<1x8x1xf32>
    %34 = vector.broadcast %33 : vector<1x8x1xf32> to vector<1x8x8xf32>
    %35 = arith.subf %31, %34 : vector<1x8x8xf32>
    %36 = math.exp %35 : vector<1x8x8xf32>
    %cst_26 = arith.constant dense<0.000000e+00> : vector<1x8xf32>
    %37 = vector.multi_reduction <add>, %36, %cst_26 [2] : vector<1x8x8xf32> to vector<1x8xf32>
    %38 = vector.shape_cast %37 : vector<1x8xf32> to vector<1x8x1xf32>
    %39 = tpu.reciprocal %38 : vector<1x8x1xf32> -> vector<1x8x1xf32>
    %40 = vector.broadcast %39 : vector<1x8x1xf32> to vector<1x8x8xf32>
    %41 = arith.mulf %36, %40 : vector<1x8x8xf32>
    %42 = vector.extract_strided_slice %22 {offsets = [0, 0, 0], sizes = [1, 8, 8], strides = [1, 1, 1]} : vector<1x8x32xf32> to vector<1x8x8xf32>
    "tpu.trace_start"() <{level = 10 : i32, message = "bqk,bkd->bqd"}> : () -> ()
    %cst_27 = arith.constant dense<0.000000e+00> : vector<1x8x8xf32>
    %43 = tpu.matmul %41, %42, %cst_27 {dimension_numbers = #tpu.dot_dimension_numbers<[2], [1], [1], [2], [0, 0, 0, 1, 1, 2], [0], [0]>} : vector<1x8x8xf32>, vector<1x8x8xf32>, vector<1x8x8xf32> -> vector<1x8x8xf32>
    "tpu.trace_stop"() : () -> ()
    %44 = vector.shape_cast %43 : vector<1x8x8xf32> to vector<8x8xf32>
    %c0_28 = arith.constant 0 : index
    %c0_29 = arith.constant 0 : index
    %45 = vector.load %arg14[%c0_28, %c0_29] : memref<8x32xf32, #tpu.memory_space<vmem>>, vector<8x8xf32>
    tpu.vector_store %arg14[%c0_28, %c0_29], %44 {strides = array<i32>} : memref<8x32xf32, #tpu.memory_space<vmem>>, vector<8x8xf32>,
    %46 = vector.extract_strided_slice %20 {offsets = [0, 0, 8], sizes = [1, 8, 8], strides = [1, 1, 1]} : vector<1x8x32xf32> to vector<1x8x8xf32>
    %47 = vector.extract_strided_slice %21 {offsets = [0, 0, 8], sizes = [1, 8, 8], strides = [1, 1, 1]} : vector<1x8x32xf32> to vector<1x8x8xf32>
    "tpu.trace_start"() <{level = 10 : i32, message = "bqd,bkd->bqk"}> : () -> ()
    %cst_30 = arith.constant dense<0.000000e+00> : vector<1x8x8xf32>
    %48 = tpu.matmul %46, %47, %cst_30 {dimension_numbers = #tpu.dot_dimension_numbers<[2], [2], [1], [1], [0, 0, 0, 1, 1, 1], [0], [0]>} : vector<1x8x8xf32>, vector<1x8x8xf32>, vector<1x8x8xf32> -> vector<1x8x8xf32>
    %cst_31 = arith.constant -1.000000e+09 : f32
    "tpu.trace_stop"() : () -> ()
    %49 = vector.broadcast %cst_31 : f32 to vector<1x8x8xf32>
    %50 = arith.select %26, %49, %48 : vector<1x8x8xi1>, vector<1x8x8xf32>
    %cst_32 = arith.constant dense<0xFF800000> : vector<1x8xf32>
    %51 = vector.multi_reduction <maximumf>, %50, %cst_32 [2] : vector<1x8x8xf32> to vector<1x8xf32>
    %52 = vector.shape_cast %51 : vector<1x8xf32> to vector<1x8x1xf32>
    %53 = vector.broadcast %52 : vector<1x8x1xf32> to vector<1x8x8xf32>
    %54 = arith.subf %50, %53 : vector<1x8x8xf32>
    %55 = math.exp %54 : vector<1x8x8xf32>
    %cst_33 = arith.constant dense<0.000000e+00> : vector<1x8xf32>
    %56 = vector.multi_reduction <add>, %55, %cst_33 [2] : vector<1x8x8xf32> to vector<1x8xf32>
    %57 = vector.shape_cast %56 : vector<1x8xf32> to vector<1x8x1xf32>
    %58 = tpu.reciprocal %57 : vector<1x8x1xf32> -> vector<1x8x1xf32>
    %59 = vector.broadcast %58 : vector<1x8x1xf32> to vector<1x8x8xf32>
    %60 = arith.mulf %55, %59 : vector<1x8x8xf32>
    %61 = vector.extract_strided_slice %22 {offsets = [0, 0, 8], sizes = [1, 8, 8], strides = [1, 1, 1]} : vector<1x8x32xf32> to vector<1x8x8xf32>
    "tpu.trace_start"() <{level = 10 : i32, message = "bqk,bkd->bqd"}> : () -> ()
    %cst_34 = arith.constant dense<0.000000e+00> : vector<1x8x8xf32>
    %62 = tpu.matmul %60, %61, %cst_34 {dimension_numbers = #tpu.dot_dimension_numbers<[2], [1], [1], [2], [0, 0, 0, 1, 1, 2], [0], [0]>} : vector<1x8x8xf32>, vector<1x8x8xf32>, vector<1x8x8xf32> -> vector<1x8x8xf32>
    "tpu.trace_stop"() : () -> ()
    %63 = vector.shape_cast %62 : vector<1x8x8xf32> to vector<8x8xf32>
    %c0_35 = arith.constant 0 : index
    %c8 = arith.constant 8 : index
    %64 = vector.load %arg14[%c0_35, %c8] : memref<8x32xf32, #tpu.memory_space<vmem>>, vector<8x8xf32>
    tpu.vector_store %arg14[%c0_35, %c8], %63 {strides = array<i32>} : memref<8x32xf32, #tpu.memory_space<vmem>>, vector<8x8xf32>,
    %65 = vector.extract_strided_slice %20 {offsets = [0, 0, 16], sizes = [1, 8, 8], strides = [1, 1, 1]} : vector<1x8x32xf32> to vector<1x8x8xf32>
    %66 = vector.extract_strided_slice %21 {offsets = [0, 0, 16], sizes = [1, 8, 8], strides = [1, 1, 1]} : vector<1x8x32xf32> to vector<1x8x8xf32>
    "tpu.trace_start"() <{level = 10 : i32, message = "bqd,bkd->bqk"}> : () -> ()
    %cst_36 = arith.constant dense<0.000000e+00> : vector<1x8x8xf32>
    %67 = tpu.matmul %65, %66, %cst_36 {dimension_numbers = #tpu.dot_dimension_numbers<[2], [2], [1], [1], [0, 0, 0, 1, 1, 1], [0], [0]>} : vector<1x8x8xf32>, vector<1x8x8xf32>, vector<1x8x8xf32> -> vector<1x8x8xf32>
    %cst_37 = arith.constant -1.000000e+09 : f32
    "tpu.trace_stop"() : () -> ()
    %68 = vector.broadcast %cst_37 : f32 to vector<1x8x8xf32>
    %69 = arith.select %26, %68, %67 : vector<1x8x8xi1>, vector<1x8x8xf32>
    %cst_38 = arith.constant dense<0xFF800000> : vector<1x8xf32>
    %70 = vector.multi_reduction <maximumf>, %69, %cst_38 [2] : vector<1x8x8xf32> to vector<1x8xf32>
    %71 = vector.shape_cast %70 : vector<1x8xf32> to vector<1x8x1xf32>
    %72 = vector.broadcast %71 : vector<1x8x1xf32> to vector<1x8x8xf32>
    %73 = arith.subf %69, %72 : vector<1x8x8xf32>
    %74 = math.exp %73 : vector<1x8x8xf32>
    %cst_39 = arith.constant dense<0.000000e+00> : vector<1x8xf32>
    %75 = vector.multi_reduction <add>, %74, %cst_39 [2] : vector<1x8x8xf32> to vector<1x8xf32>
    %76 = vector.shape_cast %75 : vector<1x8xf32> to vector<1x8x1xf32>
    %77 = tpu.reciprocal %76 : vector<1x8x1xf32> -> vector<1x8x1xf32>
    %78 = vector.broadcast %77 : vector<1x8x1xf32> to vector<1x8x8xf32>
    %79 = arith.mulf %74, %78 : vector<1x8x8xf32>
    %80 = vector.extract_strided_slice %22 {offsets = [0, 0, 16], sizes = [1, 8, 8], strides = [1, 1, 1]} : vector<1x8x32xf32> to vector<1x8x8xf32>
    "tpu.trace_start"() <{level = 10 : i32, message = "bqk,bkd->bqd"}> : () -> ()
    %cst_40 = arith.constant dense<0.000000e+00> : vector<1x8x8xf32>
    %81 = tpu.matmul %79, %80, %cst_40 {dimension_numbers = #tpu.dot_dimension_numbers<[2], [1], [1], [2], [0, 0, 0, 1, 1, 2], [0], [0]>} : vector<1x8x8xf32>, vector<1x8x8xf32>, vector<1x8x8xf32> -> vector<1x8x8xf32>
    "tpu.trace_stop"() : () -> ()
    %82 = vector.shape_cast %81 : vector<1x8x8xf32> to vector<8x8xf32>
    %c0_41 = arith.constant 0 : index
    %c16 = arith.constant 16 : index
    %83 = vector.load %arg14[%c0_41, %c16] : memref<8x32xf32, #tpu.memory_space<vmem>>, vector<8x8xf32>
    tpu.vector_store %arg14[%c0_41, %c16], %82 {strides = array<i32>} : memref<8x32xf32, #tpu.memory_space<vmem>>, vector<8x8xf32>,
    %84 = vector.extract_strided_slice %20 {offsets = [0, 0, 24], sizes = [1, 8, 8], strides = [1, 1, 1]} : vector<1x8x32xf32> to vector<1x8x8xf32>
    %85 = vector.extract_strided_slice %21 {offsets = [0, 0, 24], sizes = [1, 8, 8], strides = [1, 1, 1]} : vector<1x8x32xf32> to vector<1x8x8xf32>
    "tpu.trace_start"() <{level = 10 : i32, message = "bqd,bkd->bqk"}> : () -> ()
    %cst_42 = arith.constant dense<0.000000e+00> : vector<1x8x8xf32>
    %86 = tpu.matmul %84, %85, %cst_42 {dimension_numbers = #tpu.dot_dimension_numbers<[2], [2], [1], [1], [0, 0, 0, 1, 1, 1], [0], [0]>} : vector<1x8x8xf32>, vector<1x8x8xf32>, vector<1x8x8xf32> -> vector<1x8x8xf32>
    %cst_43 = arith.constant -1.000000e+09 : f32
    "tpu.trace_stop"() : () -> ()
    %87 = vector.broadcast %cst_43 : f32 to vector<1x8x8xf32>
    %88 = arith.select %26, %87, %86 : vector<1x8x8xi1>, vector<1x8x8xf32>
    %cst_44 = arith.constant dense<0xFF800000> : vector<1x8xf32>
    %89 = vector.multi_reduction <maximumf>, %88, %cst_44 [2] : vector<1x8x8xf32> to vector<1x8xf32>
    %90 = vector.shape_cast %89 : vector<1x8xf32> to vector<1x8x1xf32>
    %91 = vector.broadcast %90 : vector<1x8x1xf32> to vector<1x8x8xf32>
    %92 = arith.subf %88, %91 : vector<1x8x8xf32>
    %93 = math.exp %92 : vector<1x8x8xf32>
    %cst_45 = arith.constant dense<0.000000e+00> : vector<1x8xf32>
    %94 = vector.multi_reduction <add>, %93, %cst_45 [2] : vector<1x8x8xf32> to vector<1x8xf32>
    %95 = vector.shape_cast %94 : vector<1x8xf32> to vector<1x8x1xf32>
    %96 = tpu.reciprocal %95 : vector<1x8x1xf32> -> vector<1x8x1xf32>
    %97 = vector.broadcast %96 : vector<1x8x1xf32> to vector<1x8x8xf32>
    %98 = arith.mulf %93, %97 : vector<1x8x8xf32>
    %99 = vector.extract_strided_slice %22 {offsets = [0, 0, 24], sizes = [1, 8, 8], strides = [1, 1, 1]} : vector<1x8x32xf32> to vector<1x8x8xf32>
    "tpu.trace_start"() <{level = 10 : i32, message = "bqk,bkd->bqd"}> : () -> ()
    %cst_46 = arith.constant dense<0.000000e+00> : vector<1x8x8xf32>
    %100 = tpu.matmul %98, %99, %cst_46 {dimension_numbers = #tpu.dot_dimension_numbers<[2], [1], [1], [2], [0, 0, 0, 1, 1, 2], [0], [0]>} : vector<1x8x8xf32>, vector<1x8x8xf32>, vector<1x8x8xf32> -> vector<1x8x8xf32>
    "tpu.trace_stop"() : () -> ()
    %101 = vector.shape_cast %100 : vector<1x8x8xf32> to vector<8x8xf32>
    %c0_47 = arith.constant 0 : index
    %c24 = arith.constant 24 : index
    %102 = vector.load %arg14[%c0_47, %c24] : memref<8x32xf32, #tpu.memory_space<vmem>>, vector<8x8xf32>
    tpu.vector_store %arg14[%c0_47, %c24], %101 {strides = array<i32>} : memref<8x32xf32, #tpu.memory_space<vmem>>, vector<8x8xf32>,
    %c0_48 = arith.constant 0 : index
    %c0_49 = arith.constant 0 : index
    %103 = vector.load %arg14[%c0_48, %c0_49] : memref<8x32xf32, #tpu.memory_space<vmem>>, vector<8x32xf32>
    %c0_50 = arith.constant 0 : index
    %c0_51 = arith.constant 0 : index
    %104 = vector.load %arg11[%c0_50, %c0_51] : memref<32x32xf32, #tpu.memory_space<vmem>>, vector<32x32xf32>
    %cst_52 = arith.constant dense<0.000000e+00> : vector<8x32xf32>
    %105 = tpu.matmul %103, %104, %cst_52 {dimension_numbers = #tpu.dot_dimension_numbers<[1], [0], [0], [1], [0, 0, 1, 1], [], []>} : vector<8x32xf32>, vector<32x32xf32>, vector<8x32xf32> -> vector<8x32xf32>
    %c0_53 = arith.constant 0 : index
    %c0_54 = arith.constant 0 : index
    %106 = vector.load %arg12[%c0_53, %c0_54] : memref<1x32xf32, #tpu.memory_space<vmem>>, vector<1x32xf32>
    %107 = vector.broadcast %106 : vector<1x32xf32> to vector<8x32xf32>
    %108 = arith.addf %105, %107 : vector<8x32xf32>
    %c0_55 = arith.constant 0 : index
    %c0_56 = arith.constant 0 : index
    %109 = vector.load %arg13[%c0_55, %c0_56] : memref<8x32xf32, #tpu.memory_space<vmem>>, vector<8x32xf32>
    tpu.vector_store %arg13[%c0_55, %c0_56], %108 {strides = array<i32>} : memref<8x32xf32, #tpu.memory_space<vmem>>, vector<8x32xf32>,
    return
  }
  func.func @transform_0(%arg0: i32) -> (i32, i32) {
    %c0_i32 = arith.constant 0 : i32
    %c0_i32_0 = arith.constant 0 : i32
    return %arg0, %c0_i32 : i32, i32
  }
  func.func @transform_1(%arg0: i32) -> (i32, i32) {
    %c0_i32 = arith.constant 0 : i32
    %c0_i32_0 = arith.constant 0 : i32
    return %arg0, %c0_i32 : i32, i32
  }
  func.func @transform_2(%arg0: i32) -> (i32, i32) {
    %c0_i32 = arith.constant 0 : i32
    %c0_i32_0 = arith.constant 0 : i32
    return %arg0, %c0_i32 : i32, i32
  }
  func.func @transform_3(%arg0: i32) -> (i32, i32, i32) {
    %c0_i32 = arith.constant 0 : i32
    %c0_i32_0 = arith.constant 0 : i32
    %c0_i32_1 = arith.constant 0 : i32
    return %arg0, %c0_i32, %c0_i32_0 : i32, i32, i32
  }
  func.func @transform_4(%arg0: i32) -> (i32, i32) {
    %c0_i32 = arith.constant 0 : i32
    %c0_i32_0 = arith.constant 0 : i32
    %c0_i32_1 = arith.constant 0 : i32
    return %c0_i32, %c0_i32_0 : i32, i32
  }
  func.func @transform_5(%arg0: i32) -> (i32, i32) {
    %c0_i32 = arith.constant 0 : i32
    %c0_i32_0 = arith.constant 0 : i32
    %c0_i32_1 = arith.constant 0 : i32
    return %c0_i32, %c0_i32_0 : i32, i32
  }
  func.func @transform_6(%arg0: i32) -> (i32, i32) {
    %c0_i32 = arith.constant 0 : i32
    %c0_i32_0 = arith.constant 0 : i32
    %c0_i32_1 = arith.constant 0 : i32
    return %c0_i32, %c0_i32_0 : i32, i32
  }
  func.func @transform_7(%arg0: i32) -> (i32, i32) {
    %c0_i32 = arith.constant 0 : i32
    %c0_i32_0 = arith.constant 0 : i32
    %c0_i32_1 = arith.constant 0 : i32
    return %c0_i32, %c0_i32_0 : i32, i32
  }
  func.func @transform_8(%arg0: i32) -> (i32, i32) {
    %c0_i32 = arith.constant 0 : i32
    %c0_i32_0 = arith.constant 0 : i32
    %c0_i32_1 = arith.constant 0 : i32
    return %c0_i32, %c0_i32_0 : i32, i32
  }
  func.func @transform_9(%arg0: i32) -> (i32, i32) {
    %c0_i32 = arith.constant 0 : i32
    %c0_i32_0 = arith.constant 0 : i32
    %c0_i32_1 = arith.constant 0 : i32
    return %c0_i32, %c0_i32_0 : i32, i32
  }
  func.func @transform_10(%arg0: i32) -> (i32, i32) {
    %c0_i32 = arith.constant 0 : i32
    %c0_i32_0 = arith.constant 0 : i32
    %c0_i32_1 = arith.constant 0 : i32
    return %c0_i32, %c0_i32_0 : i32, i32
  }
  func.func @transform_11(%arg0: i32) -> (i32, i32) {
    %c0_i32 = arith.constant 0 : i32
    %c0_i32_0 = arith.constant 0 : i32
    %c0_i32_1 = arith.constant 0 : i32
    return %c0_i32, %c0_i32_0 : i32, i32
  }
  func.func @transform_12(%arg0: i32) -> (i32, i32) {
    %c0_i32 = arith.constant 0 : i32
    %c0_i32_0 = arith.constant 0 : i32
    return %arg0, %c0_i32 : i32, i32
  }
}

module attributes {stable_mosaic.version = 11 : i64} {
  func.func @impl(%arg0: i32, %arg1: memref<8x32xf32, #tpu.memory_space<vmem>>, %arg2: memref<8x32xf32, #tpu.memory_space<vmem>>, %arg3: memref<8x32xf32, #tpu.memory_space<vmem>>, %arg4: memref<1x8x8xi8, #tpu.memory_space<vmem>>, %arg5: memref<32x32xf32, #tpu.memory_space<vmem>>, %arg6: memref<1x32xf32, #tpu.memory_space<vmem>>, %arg7: memref<32x32xf32, #tpu.memory_space<vmem>>, %arg8: memref<1x32xf32, #tpu.memory_space<vmem>>, %arg9: memref<32x32xf32, #tpu.memory_space<vmem>>, %arg10: memref<1x32xf32, #tpu.memory_space<vmem>>, %arg11: memref<32x32xf32, #tpu.memory_space<vmem>>, %arg12: memref<1x32xf32, #tpu.memory_space<vmem>>, %arg13: memref<8x32xf32, #tpu.memory_space<vmem>>, %arg14: memref<8x32xf32, #tpu.memory_space<vmem>>) attributes {dimension_semantics = [#tpu.dimension_semantics<parallel>], iteration_bounds = array<i64: 2>, scalar_prefetch = 0 : i64, scratch_operands = 1 : i64, tpu.core_type = #tpu.core_type<tc>, window_params = [{transform_indices = @transform_0, window_bounds = array<i64: 8, 32>}, {transform_indices = @transform_1, window_bounds = array<i64: 8, 32>}, {transform_indices = @transform_2, window_bounds = array<i64: 8, 32>}, {transform_indices = @transform_3, window_bounds = array<i64: 1, 8, 8>}, {pipeline_mode = #tpu.pipeline_mode<synchronous>, transform_indices = @transform_4, window_bounds = array<i64: 32, 32>}, {pipeline_mode = #tpu.pipeline_mode<synchronous>, transform_indices = @transform_5, window_bounds = array<i64: 1, 32>}, {pipeline_mode = #tpu.pipeline_mode<synchronous>, transform_indices = @transform_6, window_bounds = array<i64: 32, 32>}, {pipeline_mode = #tpu.pipeline_mode<synchronous>, transform_indices = @transform_7, window_bounds = array<i64: 1, 32>}, {pipeline_mode = #tpu.pipeline_mode<synchronous>, transform_indices = @transform_8, window_bounds = array<i64: 32, 32>}, {pipeline_mode = #tpu.pipeline_mode<synchronous>, transform_indices = @transform_9, window_bounds = array<i64: 1, 32>}, {pipeline_mode = #tpu.pipeline_mode<synchronous>, transform_indices = @transform_10, window_bounds = array<i64: 32, 32>}, {pipeline_mode = #tpu.pipeline_mode<synchronous>, transform_indices = @transform_11, window_bounds = array<i64: 1, 32>}, {transform_indices = @transform_12, window_bounds = array<i64: 8, 32>}]} {
    %c0 = arith.constant 0 : index
    %c0_0 = arith.constant 0 : index
    %0 = vector.load %arg1[%c0, %c0_0] : memref<8x32xf32, #tpu.memory_space<vmem>>, vector<8x32xf32>
    %c0_1 = arith.constant 0 : index
    %c0_2 = arith.constant 0 : index
    %1 = vector.load %arg5[%c0_1, %c0_2] : memref<32x32xf32, #tpu.memory_space<vmem>>, vector<32x32xf32>
    %cst = arith.constant dense<0.000000e+00> : vector<8x32xf32>
    %2 = tpu.matmul %0, %1, %cst {dimension_numbers = #tpu.dot_dimension_numbers<[1], [0], [0], [1], [0, 0, 1, 1], [], []>} : vector<8x32xf32>, vector<32x32xf32>, vector<8x32xf32> -> vector<8x32xf32>
    %c0_3 = arith.constant 0 : index
    %c0_4 = arith.constant 0 : index
    %3 = vector.load %arg6[%c0_3, %c0_4] : memref<1x32xf32, #tpu.memory_space<vmem>>, vector<1x32xf32>
    %4 = vector.broadcast %3 : vector<1x32xf32> to vector<8x32xf32>
    %5 = arith.addf %2, %4 : vector<8x32xf32>
    %c0_5 = arith.constant 0 : index
    %c0_6 = arith.constant 0 : index
    %6 = vector.load %arg2[%c0_5, %c0_6] : memref<8x32xf32, #tpu.memory_space<vmem>>, vector<8x32xf32>
    %c0_7 = arith.constant 0 : index
    %c0_8 = arith.constant 0 : index
    %7 = vector.load %arg7[%c0_7, %c0_8] : memref<32x32xf32, #tpu.memory_space<vmem>>, vector<32x32xf32>
    %cst_9 = arith.constant dense<0.000000e+00> : vector<8x32xf32>
    %8 = tpu.matmul %6, %7, %cst_9 {dimension_numbers = #tpu.dot_dimension_numbers<[1], [0], [0], [1], [0, 0, 1, 1], [], []>} : vector<8x32xf32>, vector<32x32xf32>, vector<8x32xf32> -> vector<8x32xf32>
    %c0_10 = arith.constant 0 : index
    %c0_11 = arith.constant 0 : index
    %9 = vector.load %arg8[%c0_10, %c0_11] : memref<1x32xf32, #tpu.memory_space<vmem>>, vector<1x32xf32>
    %10 = vector.broadcast %9 : vector<1x32xf32> to vector<8x32xf32>
    %11 = arith.addf %8, %10 : vector<8x32xf32>
    %c0_12 = arith.constant 0 : index
    %c0_13 = arith.constant 0 : index
    %12 = vector.load %arg3[%c0_12, %c0_13] : memref<8x32xf32, #tpu.memory_space<vmem>>, vector<8x32xf32>
    %c0_14 = arith.constant 0 : index
    %c0_15 = arith.constant 0 : index
    %13 = vector.load %arg9[%c0_14, %c0_15] : memref<32x32xf32, #tpu.memory_space<vmem>>, vector<32x32xf32>
    %cst_16 = arith.constant dense<0.000000e+00> : vector<8x32xf32>
    %14 = tpu.matmul %12, %13, %cst_16 {dimension_numbers = #tpu.dot_dimension_numbers<[1], [0], [0], [1], [0, 0, 1, 1], [], []>} : vector<8x32xf32>, vector<32x32xf32>, vector<8x32xf32> -> vector<8x32xf32>
    %c0_17 = arith.constant 0 : index
    %c0_18 = arith.constant 0 : index
    %15 = vector.load %arg10[%c0_17, %c0_18] : memref<1x32xf32, #tpu.memory_space<vmem>>, vector<1x32xf32>
    %16 = vector.broadcast %15 : vector<1x32xf32> to vector<8x32xf32>
    %17 = arith.addf %14, %16 : vector<8x32xf32>
    %cst_19 = arith.constant 0.353553385 : f32
    %18 = vector.broadcast %cst_19 : f32 to vector<8x32xf32>
    %19 = arith.mulf %5, %18 : vector<8x32xf32>
    %20 = vector.shape_cast %19 : vector<8x32xf32> to vector<1x8x32xf32>
    %21 = vector.shape_cast %11 : vector<8x32xf32> to vector<1x8x32xf32>
    %22 = vector.shape_cast %17 : vector<8x32xf32> to vector<1x8x32xf32>
    %c0_20 = arith.constant 0 : index
    %c0_21 = arith.constant 0 : index
    %c0_22 = arith.constant 0 : index
    %23 = vector.load %arg4[%c0_20, %c0_21, %c0_22] : memref<1x8x8xi8, #tpu.memory_space<vmem>>, vector<1x8x8xi8>
    %24 = arith.extsi %23 : vector<1x8x8xi8> to vector<1x8x8xi32>
    %c0_i32 = arith.constant 0 : i32
    %25 = vector.broadcast %c0_i32 : i32 to vector<1x8x8xi32>
    %26 = arith.cmpi eq, %24, %25 : vector<1x8x8xi32>
    %27 = vector.extract_strided_slice %20 {offsets = [0, 0, 0], sizes = [1, 8, 8], strides = [1, 1, 1]} : vector<1x8x32xf32> to vector<1x8x8xf32>
    %28 = vector.extract_strided_slice %21 {offsets = [0, 0, 0], sizes = [1, 8, 8], strides = [1, 1, 1]} : vector<1x8x32xf32> to vector<1x8x8xf32>
    "tpu.trace_start"() <{level = 10 : i32, message = "bqd,bkd->bqk"}> : () -> ()
    %cst_23 = arith.constant dense<0.000000e+00> : vector<1x8x8xf32>
    %29 = tpu.matmul %27, %28, %cst_23 {dimension_numbers = #tpu.dot_dimension_numbers<[2], [2], [1], [1], [0, 0, 0, 1, 1, 1], [0], [0]>} : vector<1x8x8xf32>, vector<1x8x8xf32>, vector<1x8x8xf32> -> vector<1x8x8xf32>
    %cst_24 = arith.constant -1.000000e+09 : f32
    "tpu.trace_stop"() : () -> ()
    %30 = vector.broadcast %cst_24 : f32 to vector<1x8x8xf32>
    %31 = arith.select %26, %30, %29 : vector<1x8x8xi1>, vector<1x8x8xf32>
    %cst_25 = arith.constant dense<0xFF800000> : vector<1x8xf32>
    %32 = vector.multi_reduction <maximumf>, %31, %cst_25 [2] : vector<1x8x8xf32> to vector<1x8xf32>
    %33 = vector.shape_cast %32 : vector<1x8xf32> to vector<1x8x1xf32>
    %34 = vector.broadcast %33 : vector<1x8x1xf32> to vector<1x8x8xf32>
    %35 = arith.subf %31, %34 : vector<1x8x8xf32>
    %36 = math.exp %35 : vector<1x8x8xf32>
    %cst_26 = arith.constant dense<0.000000e+00> : vector<1x8xf32>
    %37 = vector.multi_reduction <add>, %36, %cst_26 [2] : vector<1x8x8xf32> to vector<1x8xf32>
    %38 = vector.shape_cast %37 : vector<1x8xf32> to vector<1x8x1xf32>
    %39 = tpu.reciprocal %38 : vector<1x8x1xf32> -> vector<1x8x1xf32>
    %40 = vector.broadcast %39 : vector<1x8x1xf32> to vector<1x8x8xf32>
    %41 = arith.mulf %36, %40 : vector<1x8x8xf32>
    %42 = vector.extract_strided_slice %22 {offsets = [0, 0, 0], sizes = [1, 8, 8], strides = [1, 1, 1]} : vector<1x8x32xf32> to vector<1x8x8xf32>
    "tpu.trace_start"() <{level = 10 : i32, message = "bqk,bkd->bqd"}> : () -> ()
    %cst_27 = arith.constant dense<0.000000e+00> : vector<1x8x8xf32>
    %43 = tpu.matmul %41, %42, %cst_27 {dimension_numbers = #tpu.dot_dimension_numbers<[2], [1], [1], [2], [0, 0, 0, 1, 1, 2], [0], [0]>} : vector<1x8x8xf32>, vector<1x8x8xf32>, vector<1x8x8xf32> -> vector<1x8x8xf32>
    "tpu.trace_stop"() : () -> ()
    %44 = vector.shape_cast %43 : vector<1x8x8xf32> to vector<8x8xf32>
    %c0_28 = arith.constant 0 : index
    %c0_29 = arith.constant 0 : index
    %45 = vector.load %arg14[%c0_28, %c0_29] : memref<8x32xf32, #tpu.memory_space<vmem>>, vector<8x8xf32>
    tpu.vector_store %arg14[%c0_28, %c0_29], %44 {strides = array<i32>} : memref<8x32xf32, #tpu.memory_space<vmem>>, vector<8x8xf32>,
    %46 = vector.extract_strided_slice %20 {offsets = [0, 0, 8], sizes = [1, 8, 8], strides = [1, 1, 1]} : vector<1x8x32xf32> to vector<1x8x8xf32>
    %47 = vector.extract_strided_slice %21 {offsets = [0, 0, 8], sizes = [1, 8, 8], strides = [1, 1, 1]} : vector<1x8x32xf32> to vector<1x8x8xf32>
    "tpu.trace_start"() <{level = 10 : i32, message = "bqd,bkd->bqk"}> : () -> ()
    %cst_30 = arith.constant dense<0.000000e+00> : vector<1x8x8xf32>
    %48 = tpu.matmul %46, %47, %cst_30 {dimension_numbers = #tpu.dot_dimension_numbers<[2], [2], [1], [1], [0, 0, 0, 1, 1, 1], [0], [0]>} : vector<1x8x8xf32>, vector<1x8x8xf32>, vector<1x8x8xf32> -> vector<1x8x8xf32>
    %cst_31 = arith.constant -1.000000e+09 : f32
    "tpu.trace_stop"() : () -> ()
    %49 = vector.broadcast %cst_31 : f32 to vector<1x8x8xf32>
    %50 = arith.select %26, %49, %48 : vector<1x8x8xi1>, vector<1x8x8xf32>
    %cst_32 = arith.constant dense<0xFF800000> : vector<1x8xf32>
    %51 = vector.multi_reduction <maximumf>, %50, %cst_32 [2] : vector<1x8x8xf32> to vector<1x8xf32>
    %52 = vector.shape_cast %51 : vector<1x8xf32> to vector<1x8x1xf32>
    %53 = vector.broadcast %52 : vector<1x8x1xf32> to vector<1x8x8xf32>
    %54 = arith.subf %50, %53 : vector<1x8x8xf32>
    %55 = math.exp %54 : vector<1x8x8xf32>
    %cst_33 = arith.constant dense<0.000000e+00> : vector<1x8xf32>
    %56 = vector.multi_reduction <add>, %55, %cst_33 [2] : vector<1x8x8xf32> to vector<1x8xf32>
    %57 = vector.shape_cast %56 : vector<1x8xf32> to vector<1x8x1xf32>
    %58 = tpu.reciprocal %57 : vector<1x8x1xf32> -> vector<1x8x1xf32>
    %59 = vector.broadcast %58 : vector<1x8x1xf32> to vector<1x8x8xf32>
    %60 = arith.mulf %55, %59 : vector<1x8x8xf32>
    %61 = vector.extract_strided_slice %22 {offsets = [0, 0, 8], sizes = [1, 8, 8], strides = [1, 1, 1]} : vector<1x8x32xf32> to vector<1x8x8xf32>
    "tpu.trace_start"() <{level = 10 : i32, message = "bqk,bkd->bqd"}> : () -> ()
    %cst_34 = arith.constant dense<0.000000e+00> : vector<1x8x8xf32>
    %62 = tpu.matmul %60, %61, %cst_34 {dimension_numbers = #tpu.dot_dimension_numbers<[2], [1], [1], [2], [0, 0, 0, 1, 1, 2], [0], [0]>} : vector<1x8x8xf32>, vector<1x8x8xf32>, vector<1x8x8xf32> -> vector<1x8x8xf32>
    "tpu.trace_stop"() : () -> ()
    %63 = vector.shape_cast %62 : vector<1x8x8xf32> to vector<8x8xf32>
    %c0_35 = arith.constant 0 : index
    %c8 = arith.constant 8 : index
    %64 = vector.load %arg14[%c0_35, %c8] : memref<8x32xf32, #tpu.memory_space<vmem>>, vector<8x8xf32>
    tpu.vector_store %arg14[%c0_35, %c8], %63 {strides = array<i32>} : memref<8x32xf32, #tpu.memory_space<vmem>>, vector<8x8xf32>,
    %65 = vector.extract_strided_slice %20 {offsets = [0, 0, 16], sizes = [1, 8, 8], strides = [1, 1, 1]} : vector<1x8x32xf32> to vector<1x8x8xf32>
    %66 = vector.extract_strided_slice %21 {offsets = [0, 0, 16], sizes = [1, 8, 8], strides = [1, 1, 1]} : vector<1x8x32xf32> to vector<1x8x8xf32>
    "tpu.trace_start"() <{level = 10 : i32, message = "bqd,bkd->bqk"}> : () -> ()
    %cst_36 = arith.constant dense<0.000000e+00> : vector<1x8x8xf32>
    %67 = tpu.matmul %65, %66, %cst_36 {dimension_numbers = #tpu.dot_dimension_numbers<[2], [2], [1], [1], [0, 0, 0, 1, 1, 1], [0], [0]>} : vector<1x8x8xf32>, vector<1x8x8xf32>, vector<1x8x8xf32> -> vector<1x8x8xf32>
    %cst_37 = arith.constant -1.000000e+09 : f32
    "tpu.trace_stop"() : () -> ()
    %68 = vector.broadcast %cst_37 : f32 to vector<1x8x8xf32>
    %69 = arith.select %26, %68, %67 : vector<1x8x8xi1>, vector<1x8x8xf32>
    %cst_38 = arith.constant dense<0xFF800000> : vector<1x8xf32>
    %70 = vector.multi_reduction <maximumf>, %69, %cst_38 [2] : vector<1x8x8xf32> to vector<1x8xf32>
    %71 = vector.shape_cast %70 : vector<1x8xf32> to vector<1x8x1xf32>
    %72 = vector.broadcast %71 : vector<1x8x1xf32> to vector<1x8x8xf32>
    %73 = arith.subf %69, %72 : vector<1x8x8xf32>
    %74 = math.exp %73 : vector<1x8x8xf32>
    %cst_39 = arith.constant dense<0.000000e+00> : vector<1x8xf32>
    %75 = vector.multi_reduction <add>, %74, %cst_39 [2] : vector<1x8x8xf32> to vector<1x8xf32>
    %76 = vector.shape_cast %75 : vector<1x8xf32> to vector<1x8x1xf32>
    %77 = tpu.reciprocal %76 : vector<1x8x1xf32> -> vector<1x8x1xf32>
    %78 = vector.broadcast %77 : vector<1x8x1xf32> to vector<1x8x8xf32>
    %79 = arith.mulf %74, %78 : vector<1x8x8xf32>
    %80 = vector.extract_strided_slice %22 {offsets = [0, 0, 16], sizes = [1, 8, 8], strides = [1, 1, 1]} : vector<1x8x32xf32> to vector<1x8x8xf32>
    "tpu.trace_start"() <{level = 10 : i32, message = "bqk,bkd->bqd"}> : () -> ()
    %cst_40 = arith.constant dense<0.000000e+00> : vector<1x8x8xf32>
    %81 = tpu.matmul %79, %80, %cst_40 {dimension_numbers = #tpu.dot_dimension_numbers<[2], [1], [1], [2], [0, 0, 0, 1, 1, 2], [0], [0]>} : vector<1x8x8xf32>, vector<1x8x8xf32>, vector<1x8x8xf32> -> vector<1x8x8xf32>
    "tpu.trace_stop"() : () -> ()
    %82 = vector.shape_cast %81 : vector<1x8x8xf32> to vector<8x8xf32>
    %c0_41 = arith.constant 0 : index
    %c16 = arith.constant 16 : index
    %83 = vector.load %arg14[%c0_41, %c16] : memref<8x32xf32, #tpu.memory_space<vmem>>, vector<8x8xf32>
    tpu.vector_store %arg14[%c0_41, %c16], %82 {strides = array<i32>} : memref<8x32xf32, #tpu.memory_space<vmem>>, vector<8x8xf32>,
    %84 = vector.extract_strided_slice %20 {offsets = [0, 0, 24], sizes = [1, 8, 8], strides = [1, 1, 1]} : vector<1x8x32xf32> to vector<1x8x8xf32>
    %85 = vector.extract_strided_slice %21 {offsets = [0, 0, 24], sizes = [1, 8, 8], strides = [1, 1, 1]} : vector<1x8x32xf32> to vector<1x8x8xf32>
    "tpu.trace_start"() <{level = 10 : i32, message = "bqd,bkd->bqk"}> : () -> ()
    %cst_42 = arith.constant dense<0.000000e+00> : vector<1x8x8xf32>
    %86 = tpu.matmul %84, %85, %cst_42 {dimension_numbers = #tpu.dot_dimension_numbers<[2], [2], [1], [1], [0, 0, 0, 1, 1, 1], [0], [0]>} : vector<1x8x8xf32>, vector<1x8x8xf32>, vector<1x8x8xf32> -> vector<1x8x8xf32>
    %cst_43 = arith.constant -1.000000e+09 : f32
    "tpu.trace_stop"() : () -> ()
    %87 = vector.broadcast %cst_43 : f32 to vector<1x8x8xf32>
    %88 = arith.select %26, %87, %86 : vector<1x8x8xi1>, vector<1x8x8xf32>
    %cst_44 = arith.constant dense<0xFF800000> : vector<1x8xf32>
    %89 = vector.multi_reduction <maximumf>, %88, %cst_44 [2] : vector<1x8x8xf32> to vector<1x8xf32>
    %90 = vector.shape_cast %89 : vector<1x8xf32> to vector<1x8x1xf32>
    %91 = vector.broadcast %90 : vector<1x8x1xf32> to vector<1x8x8xf32>
    %92 = arith.subf %88, %91 : vector<1x8x8xf32>
    %93 = math.exp %92 : vector<1x8x8xf32>
    %cst_45 = arith.constant dense<0.000000e+00> : vector<1x8xf32>
    %94 = vector.multi_reduction <add>, %93, %cst_45 [2] : vector<1x8x8xf32> to vector<1x8xf32>
    %95 = vector.shape_cast %94 : vector<1x8xf32> to vector<1x8x1xf32>
    %96 = tpu.reciprocal %95 : vector<1x8x1xf32> -> vector<1x8x1xf32>
    %97 = vector.broadcast %96 : vector<1x8x1xf32> to vector<1x8x8xf32>
    %98 = arith.mulf %93, %97 : vector<1x8x8xf32>
    %99 = vector.extract_strided_slice %22 {offsets = [0, 0, 24], sizes = [1, 8, 8], strides = [1, 1, 1]} : vector<1x8x32xf32> to vector<1x8x8xf32>
    "tpu.trace_start"() <{level = 10 : i32, message = "bqk,bkd->bqd"}> : () -> ()
    %cst_46 = arith.constant dense<0.000000e+00> : vector<1x8x8xf32>
    %100 = tpu.matmul %98, %99, %cst_46 {dimension_numbers = #tpu.dot_dimension_numbers<[2], [1], [1], [2], [0, 0, 0, 1, 1, 2], [0], [0]>} : vector<1x8x8xf32>, vector<1x8x8xf32>, vector<1x8x8xf32> -> vector<1x8x8xf32>
    "tpu.trace_stop"() : () -> ()
    %101 = vector.shape_cast %100 : vector<1x8x8xf32> to vector<8x8xf32>
    %c0_47 = arith.constant 0 : index
    %c24 = arith.constant 24 : index
    %102 = vector.load %arg14[%c0_47, %c24] : memref<8x32xf32, #tpu.memory_space<vmem>>, vector<8x8xf32>
    tpu.vector_store %arg14[%c0_47, %c24], %101 {strides = array<i32>} : memref<8x32xf32, #tpu.memory_space<vmem>>, vector<8x8xf32>,
    %c0_48 = arith.constant 0 : index
    %c0_49 = arith.constant 0 : index
    %103 = vector.load %arg14[%c0_48, %c0_49] : memref<8x32xf32, #tpu.memory_space<vmem>>, vector<8x32xf32>
    %c0_50 = arith.constant 0 : index
    %c0_51 = arith.constant 0 : index
    %104 = vector.load %arg11[%c0_50, %c0_51] : memref<32x32xf32, #tpu.memory_space<vmem>>, vector<32x32xf32>
    %cst_52 = arith.constant dense<0.000000e+00> : vector<8x32xf32>
    %105 = tpu.matmul %103, %104, %cst_52 {dimension_numbers = #tpu.dot_dimension_numbers<[1], [0], [0], [1], [0, 0, 1, 1], [], []>} : vector<8x32xf32>, vector<32x32xf32>, vector<8x32xf32> -> vector<8x32xf32>
    %c0_53 = arith.constant 0 : index
    %c0_54 = arith.constant 0 : index
    %106 = vector.load %arg12[%c0_53, %c0_54] : memref<1x32xf32, #tpu.memory_space<vmem>>, vector<1x32xf32>
    %107 = vector.broadcast %106 : vector<1x32xf32> to vector<8x32xf32>
    %108 = arith.addf %105, %107 : vector<8x32xf32>
    %c0_55 = arith.constant 0 : index
    %c0_56 = arith.constant 0 : index
    %109 = vector.load %arg13[%c0_55, %c0_56] : memref<8x32xf32, #tpu.memory_space<vmem>>, vector<8x32xf32>
    tpu.vector_store %arg13[%c0_55, %c0_56], %108 {strides = array<i32>} : memref<8x32xf32, #tpu.memory_space<vmem>>, vector<8x32xf32>,
    return
  }
  func.func @transform_0(%arg0: i32) -> (i32, i32) {
    %c0_i32 = arith.constant 0 : i32
    %c0_i32_0 = arith.constant 0 : i32
    return %arg0, %c0_i32 : i32, i32
  }
  func.func @transform_1(%arg0: i32) -> (i32, i32) {
    %c0_i32 = arith.constant 0 : i32
    %c0_i32_0 = arith.constant 0 : i32
    return %arg0, %c0_i32 : i32, i32
  }
  func.func @transform_2(%arg0: i32) -> (i32, i32) {
    %c0_i32 = arith.constant 0 : i32
    %c0_i32_0 = arith.constant 0 : i32
    return %arg0, %c0_i32 : i32, i32
  }
  func.func @transform_3(%arg0: i32) -> (i32, i32, i32) {
    %c0_i32 = arith.constant 0 : i32
    %c0_i32_0 = arith.constant 0 : i32
    %c0_i32_1 = arith.constant 0 : i32
    return %arg0, %c0_i32, %c0_i32_0 : i32, i32, i32
  }
  func.func @transform_4(%arg0: i32) -> (i32, i32) {
    %c0_i32 = arith.constant 0 : i32
    %c0_i32_0 = arith.constant 0 : i32
    %c0_i32_1 = arith.constant 0 : i32
    return %c0_i32, %c0_i32_0 : i32, i32
  }
  func.func @transform_5(%arg0: i32) -> (i32, i32) {
    %c0_i32 = arith.constant 0 : i32
    %c0_i32_0 = arith.constant 0 : i32
    %c0_i32_1 = arith.constant 0 : i32
    return %c0_i32, %c0_i32_0 : i32, i32
  }
  func.func @transform_6(%arg0: i32) -> (i32, i32) {
    %c0_i32 = arith.constant 0 : i32
    %c0_i32_0 = arith.constant 0 : i32
    %c0_i32_1 = arith.constant 0 : i32
    return %c0_i32, %c0_i32_0 : i32, i32
  }
  func.func @transform_7(%arg0: i32) -> (i32, i32) {
    %c0_i32 = arith.constant 0 : i32
    %c0_i32_0 = arith.constant 0 : i32
    %c0_i32_1 = arith.constant 0 : i32
    return %c0_i32, %c0_i32_0 : i32, i32
  }
  func.func @transform_8(%arg0: i32) -> (i32, i32) {
    %c0_i32 = arith.constant 0 : i32
    %c0_i32_0 = arith.constant 0 : i32
    %c0_i32_1 = arith.constant 0 : i32
    return %c0_i32, %c0_i32_0 : i32, i32
  }
  func.func @transform_9(%arg0: i32) -> (i32, i32) {
    %c0_i32 = arith.constant 0 : i32
    %c0_i32_0 = arith.constant 0 : i32
    %c0_i32_1 = arith.constant 0 : i32
    return %c0_i32, %c0_i32_0 : i32, i32
  }
  func.func @transform_10(%arg0: i32) -> (i32, i32) {
    %c0_i32 = arith.constant 0 : i32
    %c0_i32_0 = arith.constant 0 : i32
    %c0_i32_1 = arith.constant 0 : i32
    return %c0_i32, %c0_i32_0 : i32, i32
  }
  func.func @transform_11(%arg0: i32) -> (i32, i32) {
    %c0_i32 = arith.constant 0 : i32
    %c0_i32_0 = arith.constant 0 : i32
    %c0_i32_1 = arith.constant 0 : i32
    return %c0_i32, %c0_i32_0 : i32, i32
  }
  func.func @transform_12(%arg0: i32) -> (i32, i32) {
    %c0_i32 = arith.constant 0 : i32
    %c0_i32_0 = arith.constant 0 : i32
    return %arg0, %c0_i32 : i32, i32
  }
}

</mosaic_0001>

<llo_original>
// kernel: tpu_custom_call.1
$region0: #{tpu_custom_call.1}
  #allocation0 [shape = 'u32[]', space=smem, size = 0x4, offset = 0x4, fixed_abs, tag = 'smem constant byte address 0x4 - core index']
  #allocation1 [shape = 'u32[144,128]{1,0:T(1,128)}', space=vmem, size = 0x12000, scoped, tag = 'internal scratch']
  #allocation2 [shape = 'f32[8,32]{1,0:T(8,128)}', space=vmem, size = 0x1000, scoped, tag = 'scratch operand']
  %s0 = inlined_call_operand.hbm [shape: f32[16,32], index: 0, kind: input, shape index: {}]
  %s1 = inlined_call_operand.hbm [shape: f32[16,32], index: 1, kind: input, shape index: {}]
  %s2 = inlined_call_operand.hbm [shape: f32[16,32], index: 2, kind: input, shape index: {}]
  %s3 = inlined_call_operand.vmem [shape: s8[2,8,8], index: 3, kind: input, shape index: {}]
  %s4 = inlined_call_operand.hbm [shape: f32[32,32], index: 4, kind: input, shape index: {}]
  %s5 = inlined_call_operand.vmem [shape: f32[1,32], index: 5, kind: input, shape index: {}]
  %s6 = inlined_call_operand.hbm [shape: f32[32,32], index: 6, kind: input, shape index: {}]
  %s7 = inlined_call_operand.vmem [shape: f32[1,32], index: 7, kind: input, shape index: {}]
  %s8 = inlined_call_operand.hbm [shape: f32[32,32], index: 8, kind: input, shape index: {}]
  %s9 = inlined_call_operand.vmem [shape: f32[1,32], index: 9, kind: input, shape index: {}]
  %s10 = inlined_call_operand.hbm [shape: f32[32,32], index: 10, kind: input, shape index: {}]
  %s11 = inlined_call_operand.vmem [shape: f32[1,32], index: 11, kind: input, shape index: {}]
  %s12 = inlined_call_operand.hbm [shape: f32[16,32], index: 12, kind: output, shape index: {}]
  %s13 = sld [smem:[#allocation0]]
  $region109: #{tpu_custom_call.1} parent=0
    _
  %s15 = ssub.s32 1, %s13
  %s16 = scalar_select 0, %s15, %s13
  $region1: #{tpu_custom_call.1} parent=0
    #allocation3 [shape = 'u8[8192]{0}', space=vmem, size = 0x2000, scoped, tag = 'input window, operand 0']
    #allocation4 [shape = 's32[2]{0}', space=sflag, size = 0x8, scoped, tag = 'scoped memory for tpu_custom_call.1']
    #allocation5 [shape = 's32[2]{0}', space=sflag, size = 0x8, scoped, tag = 'scoped memory for tpu_custom_call.1']
    #allocation6 [shape = 'u8[8192]{0}', space=vmem, size = 0x2000, scoped, tag = 'input window, operand 1']
    #allocation7 [shape = 's32[2]{0}', space=sflag, size = 0x8, scoped, tag = 'scoped memory for tpu_custom_call.1']
    #allocation8 [shape = 'u8[8192]{0}', space=vmem, size = 0x2000, scoped, tag = 'input window, operand 2']
    #allocation9 [shape = 'u8[16384]{0}', space=vmem, size = 0x4000, scoped, tag = 'input window, operand 4, single buffered']
    #allocation10 [shape = 's32[1]{0}', space=sflag, size = 0x4, scoped, tag = 'scoped memory for tpu_custom_call.1']
    #allocation11 [shape = 'u8[16384]{0}', space=vmem, size = 0x4000, scoped, tag = 'input window, operand 6, single buffered']
    #allocation12 [shape = 'u8[16384]{0}', space=vmem, size = 0x4000, scoped, tag = 'input window, operand 8, single buffered']
    #allocation13 [shape = 's32[1]{0}', space=sflag, size = 0x4, scoped, tag = 'scoped memory for tpu_custom_call.1']
    #allocation14 [shape = 'u8[16384]{0}', space=vmem, size = 0x4000, scoped, tag = 'input window, operand 10, single buffered']
    #allocation15 [shape = 'u8[8192]{0}', space=vmem, size = 0x2000, scoped, tag = 'output window, operand 0']
    %17 = vsyncpa [#allocation4], 0
    %s18 = scalar_lea.sflag [#allocation4], 1
    %19 = vsyncpa %s18, 0
    %20 = vsyncpa [#allocation7], 0
    %s21 = scalar_lea.sflag [#allocation7], 1
    %22 = vsyncpa %s21, 0
    %23 = vsyncpa [#allocation10], 0
    %24 = vsyncpa [#allocation13], 0
    %25 = vsyncpa [#allocation5], 0
    %s26 = scalar_lea.sflag [#allocation5], 1
    %27 = vsyncpa %s26, 0
    loop: start=0, step=1, limit=4
    $region2: #{tpu_custom_call.1} parent=1 // loop_pre_header
      _
    $region3: #{tpu_custom_call.1} parent=1 // loop_header
      %s29 = sphi 0, %s33
      %p30 = scmp.ge.s32.totalorder %s29, 4
      %s39 = sphi 0, %s41
      %s42 = sphi 0, %s39
      %s43 = sphi 0, %s42
      %s59 = sphi 0, %s43
      %s65 = sphi 0, %s67
      %s68 = sphi 0, %s65
      %s69 = sphi 0, %s68
      %s85 = sphi 0, %s69
      %s91 = sphi 0, %s93
      %s94 = sphi 0, %s91
      %s95 = sphi 0, %s94
      %s111 = sphi 0, %s95
      %s117 = sphi 0, %s119
      %s120 = sphi 0, %s117
      %s121 = sphi 0, %s120
      %s137 = sphi 0, %s121
      %s141 = sphi 0, %s141
      %s143 = sphi 0, %s141
      %s144 = sphi 0, %s143
      %s158 = sphi 0, %s144
      %s162 = sphi 0, %s162
      %s164 = sphi 0, %s162
      %s165 = sphi 0, %s164
      %s179 = sphi 0, %s165
      %s183 = sphi 0, %s183
      %s185 = sphi 0, %s183
      %s186 = sphi 0, %s185
      %s200 = sphi 0, %s186
      %s204 = sphi 0, %s204
      %s206 = sphi 0, %s204
      %s207 = sphi 0, %s206
      %s221 = sphi 0, %s207
      %s225 = sphi 0, %s225
      %s227 = sphi 0, %s225
      %s228 = sphi 0, %s227
      %s242 = sphi 0, %s228
      %s246 = sphi 0, %s246
      %s248 = sphi 0, %s246
      %s249 = sphi 0, %s248
      %s263 = sphi 0, %s249
      %s267 = sphi 0, %s267
      %s269 = sphi 0, %s267
      %s270 = sphi 0, %s269
      %s284 = sphi 0, %s270
      %s288 = sphi 0, %s288
      %s290 = sphi 0, %s288
      %s291 = sphi 0, %s290
      %s305 = sphi 0, %s291
      %s311 = sphi 0, %s313
      %s314 = sphi 0, %s311
      %s315 = sphi 0, %s314
      %s331 = sphi 0, %s315
    $region4: #{tpu_custom_call.1} parent=1 // loop_header_branch
      %32 = sbr.rel (%p30) target = $region8
    $region5: #{tpu_custom_call.1} parent=1 // loop_body
      %s34 = ssub.s32 %s29, 1
      %s35 = ssub.s32 %s29, 2
      %s36 = sadd.s32 %s29, 1
      %s37 = ssub.s32 %s29, %s36
      %p38 = scmp.eq.s32.totalorder %s37, 0
      %s40 = sadd.s32 %s39, 1
      %s41 = scalar_select %p38, %s39, %s40
      %p44 = pneg %p38
      %p45 = scmp.eq.s32.totalorder %s29, 1
      %p46 = por %p44, %p45
      %p47 = scmp.ne.s32.totalorder %s39, %s42
      %p48 = scmp.eq.s32.totalorder %s29, 0
      %p49 = por %p47, %p48
      %p50 = scmp.ne.s32.totalorder %s39, %s42
      %p51 = scmp.eq.s32.totalorder %s34, 1
      %p52 = por %p50, %p51
      %p53 = scmp.ne.s32.totalorder %s42, %s43
      %p54 = scmp.eq.s32.totalorder %s34, 0
      %p55 = por %p53, %p54
      %p56 = scmp.ne.s32.totalorder %s42, %s43
      %p57 = scmp.eq.s32.totalorder %s35, 1
      %p58 = por %p56, %p57
      %p60 = scmp.ne.s32.totalorder %s43, %s59
      %p61 = scmp.eq.s32.totalorder %s35, 0
      %p62 = por %p60, %p61
      %s63 = ssub.s32 %s29, %s36
      %p64 = scmp.eq.s32.totalorder %s63, 0
      %s66 = sadd.s32 %s65, 1
      %s67 = scalar_select %p64, %s65, %s66
      %p70 = pneg %p64
      %p71 = scmp.eq.s32.totalorder %s29, 1
      %p72 = por %p70, %p71
      %p73 = scmp.ne.s32.totalorder %s65, %s68
      %p74 = scmp.eq.s32.totalorder %s29, 0
      %p75 = por %p73, %p74
      %p76 = scmp.ne.s32.totalorder %s65, %s68
      %p77 = scmp.eq.s32.totalorder %s34, 1
      %p78 = por %p76, %p77
      %p79 = scmp.ne.s32.totalorder %s68, %s69
      %p80 = scmp.eq.s32.totalorder %s34, 0
      %p81 = por %p79, %p80
      %p82 = scmp.ne.s32.totalorder %s68, %s69
      %p83 = scmp.eq.s32.totalorder %s35, 1
      %p84 = por %p82, %p83
      %p86 = scmp.ne.s32.totalorder %s69, %s85
      %p87 = scmp.eq.s32.totalorder %s35, 0
      %p88 = por %p86, %p87
      %s89 = ssub.s32 %s29, %s36
      %p90 = scmp.eq.s32.totalorder %s89, 0
      %s92 = sadd.s32 %s91, 1
      %s93 = scalar_select %p90, %s91, %s92
      %p96 = pneg %p90
      %p97 = scmp.eq.s32.totalorder %s29, 1
      %p98 = por %p96, %p97
      %p99 = scmp.ne.s32.totalorder %s91, %s94
      %p100 = scmp.eq.s32.totalorder %s29, 0
      %p101 = por %p99, %p100
      %p102 = scmp.ne.s32.totalorder %s91, %s94
      %p103 = scmp.eq.s32.totalorder %s34, 1
      %p104 = por %p102, %p103
      %p105 = scmp.ne.s32.totalorder %s94, %s95
      %p106 = scmp.eq.s32.totalorder %s34, 0
      %p107 = por %p105, %p106
      %p108 = scmp.ne.s32.totalorder %s94, %s95
      %p109 = scmp.eq.s32.totalorder %s35, 1
      %p110 = por %p108, %p109
      %p112 = scmp.ne.s32.totalorder %s95, %s111
      %p113 = scmp.eq.s32.totalorder %s35, 0
      %p114 = por %p112, %p113
      %s115 = ssub.s32 %s29, %s36
      %p116 = scmp.eq.s32.totalorder %s115, 0
      %s118 = sadd.s32 %s117, 1
      %s119 = scalar_select %p116, %s117, %s118
      %p122 = pneg %p116
      %p123 = scmp.eq.s32.totalorder %s29, 1
      %p124 = por %p122, %p123
      %p125 = scmp.ne.s32.totalorder %s117, %s120
      %p126 = scmp.eq.s32.totalorder %s29, 0
      %p127 = por %p125, %p126
      %p128 = scmp.ne.s32.totalorder %s117, %s120
      %p129 = scmp.eq.s32.totalorder %s34, 1
      %p130 = por %p128, %p129
      %p131 = scmp.ne.s32.totalorder %s120, %s121
      %p132 = scmp.eq.s32.totalorder %s34, 0
      %p133 = por %p131, %p132
      %p134 = scmp.ne.s32.totalorder %s120, %s121
      %p135 = scmp.eq.s32.totalorder %s35, 1
      %p136 = por %p134, %p135
      %p138 = scmp.ne.s32.totalorder %s121, %s137
      %p139 = scmp.eq.s32.totalorder %s35, 0
      %p140 = por %p138, %p139
      %s142 = sadd.s32 %s141, 1
      %p145 = scmp.eq.s32.totalorder %s29, 1
      %p146 = scmp.ne.s32.totalorder %s141, %s143
      %p147 = scmp.eq.s32.totalorder %s29, 0
      %p148 = por %p146, %p147
      %p149 = scmp.ne.s32.totalorder %s141, %s143
      %p150 = scmp.eq.s32.totalorder %s34, 1
      %p151 = por %p149, %p150
      %p152 = scmp.ne.s32.totalorder %s143, %s144
      %p153 = scmp.eq.s32.totalorder %s34, 0
      %p154 = por %p152, %p153
      %p155 = scmp.ne.s32.totalorder %s143, %s144
      %p156 = scmp.eq.s32.totalorder %s35, 1
      %p157 = por %p155, %p156
      %p159 = scmp.ne.s32.totalorder %s144, %s158
      %p160 = scmp.eq.s32.totalorder %s35, 0
      %p161 = por %p159, %p160
      %s163 = sadd.s32 %s162, 1
      %p166 = scmp.eq.s32.totalorder %s29, 1
      %p167 = scmp.ne.s32.totalorder %s162, %s164
      %p168 = scmp.eq.s32.totalorder %s29, 0
      %p169 = por %p167, %p168
      %p170 = scmp.ne.s32.totalorder %s162, %s164
      %p171 = scmp.eq.s32.totalorder %s34, 1
      %p172 = por %p170, %p171
      %p173 = scmp.ne.s32.totalorder %s164, %s165
      %p174 = scmp.eq.s32.totalorder %s34, 0
      %p175 = por %p173, %p174
      %p176 = scmp.ne.s32.totalorder %s164, %s165
      %p177 = scmp.eq.s32.totalorder %s35, 1
      %p178 = por %p176, %p177
      %p180 = scmp.ne.s32.totalorder %s165, %s179
      %p181 = scmp.eq.s32.totalorder %s35, 0
      %p182 = por %p180, %p181
      %s184 = sadd.s32 %s183, 1
      %p187 = scmp.eq.s32.totalorder %s29, 1
      %p188 = scmp.ne.s32.totalorder %s183, %s185
      %p189 = scmp.eq.s32.totalorder %s29, 0
      %p190 = por %p188, %p189
      %p191 = scmp.ne.s32.totalorder %s183, %s185
      %p192 = scmp.eq.s32.totalorder %s34, 1
      %p193 = por %p191, %p192
      %p194 = scmp.ne.s32.totalorder %s185, %s186
      %p195 = scmp.eq.s32.totalorder %s34, 0
      %p196 = por %p194, %p195
      %p197 = scmp.ne.s32.totalorder %s185, %s186
      %p198 = scmp.eq.s32.totalorder %s35, 1
      %p199 = por %p197, %p198
      %p201 = scmp.ne.s32.totalorder %s186, %s200
      %p202 = scmp.eq.s32.totalorder %s35, 0
      %p203 = por %p201, %p202
      %s205 = sadd.s32 %s204, 1
      %p208 = scmp.eq.s32.totalorder %s29, 1
      %p209 = scmp.ne.s32.totalorder %s204, %s206
      %p210 = scmp.eq.s32.totalorder %s29, 0
      %p211 = por %p209, %p210
      %p212 = scmp.ne.s32.totalorder %s204, %s206
      %p213 = scmp.eq.s32.totalorder %s34, 1
      %p214 = por %p212, %p213
      %p215 = scmp.ne.s32.totalorder %s206, %s207
      %p216 = scmp.eq.s32.totalorder %s34, 0
      %p217 = por %p215, %p216
      %p218 = scmp.ne.s32.totalorder %s206, %s207
      %p219 = scmp.eq.s32.totalorder %s35, 1
      %p220 = por %p218, %p219
      %p222 = scmp.ne.s32.totalorder %s207, %s221
      %p223 = scmp.eq.s32.totalorder %s35, 0
      %p224 = por %p222, %p223
      %s226 = sadd.s32 %s225, 1
      %p229 = scmp.eq.s32.totalorder %s29, 1
      %p230 = scmp.ne.s32.totalorder %s225, %s227
      %p231 = scmp.eq.s32.totalorder %s29, 0
      %p232 = por %p230, %p231
      %p233 = scmp.ne.s32.totalorder %s225, %s227
      %p234 = scmp.eq.s32.totalorder %s34, 1
      %p235 = por %p233, %p234
      %p236 = scmp.ne.s32.totalorder %s227, %s228
      %p237 = scmp.eq.s32.totalorder %s34, 0
      %p238 = por %p236, %p237
      %p239 = scmp.ne.s32.totalorder %s227, %s228
      %p240 = scmp.eq.s32.totalorder %s35, 1
      %p241 = por %p239, %p240
      %p243 = scmp.ne.s32.totalorder %s228, %s242
      %p244 = scmp.eq.s32.totalorder %s35, 0
      %p245 = por %p243, %p244
      %s247 = sadd.s32 %s246, 1
      %p250 = scmp.eq.s32.totalorder %s29, 1
      %p251 = scmp.ne.s32.totalorder %s246, %s248
      %p252 = scmp.eq.s32.totalorder %s29, 0
      %p253 = por %p251, %p252
      %p254 = scmp.ne.s32.totalorder %s246, %s248
      %p255 = scmp.eq.s32.totalorder %s34, 1
      %p256 = por %p254, %p255
      %p257 = scmp.ne.s32.totalorder %s248, %s249
      %p258 = scmp.eq.s32.totalorder %s34, 0
      %p259 = por %p257, %p258
      %p260 = scmp.ne.s32.totalorder %s248, %s249
      %p261 = scmp.eq.s32.totalorder %s35, 1
      %p262 = por %p260, %p261
      %p264 = scmp.ne.s32.totalorder %s249, %s263
      %p265 = scmp.eq.s32.totalorder %s35, 0
      %p266 = por %p264, %p265
      %s268 = sadd.s32 %s267, 1
      %p271 = scmp.eq.s32.totalorder %s29, 1
      %p272 = scmp.ne.s32.totalorder %s267, %s269
      %p273 = scmp.eq.s32.totalorder %s29, 0
      %p274 = por %p272, %p273
      %p275 = scmp.ne.s32.totalorder %s267, %s269
      %p276 = scmp.eq.s32.totalorder %s34, 1
      %p277 = por %p275, %p276
      %p278 = scmp.ne.s32.totalorder %s269, %s270
      %p279 = scmp.eq.s32.totalorder %s34, 0
      %p280 = por %p278, %p279
      %p281 = scmp.ne.s32.totalorder %s269, %s270
      %p282 = scmp.eq.s32.totalorder %s35, 1
      %p283 = por %p281, %p282
      %p285 = scmp.ne.s32.totalorder %s270, %s284
      %p286 = scmp.eq.s32.totalorder %s35, 0
      %p287 = por %p285, %p286
      %s289 = sadd.s32 %s288, 1
      %p292 = scmp.eq.s32.totalorder %s29, 1
      %p293 = scmp.ne.s32.totalorder %s288, %s290
      %p294 = scmp.eq.s32.totalorder %s29, 0
      %p295 = por %p293, %p294
      %p296 = scmp.ne.s32.totalorder %s288, %s290
      %p297 = scmp.eq.s32.totalorder %s34, 1
      %p298 = por %p296, %p297
      %p299 = scmp.ne.s32.totalorder %s290, %s291
      %p300 = scmp.eq.s32.totalorder %s34, 0
      %p301 = por %p299, %p300
      %p302 = scmp.ne.s32.totalorder %s290, %s291
      %p303 = scmp.eq.s32.totalorder %s35, 1
      %p304 = por %p302, %p303
      %p306 = scmp.ne.s32.totalorder %s291, %s305
      %p307 = scmp.eq.s32.totalorder %s35, 0
      %p308 = por %p306, %p307
      %s309 = ssub.s32 %s29, %s36
      %p310 = scmp.eq.s32.totalorder %s309, 0
      %s312 = sadd.s32 %s311, 1
      %s313 = scalar_select %p310, %s311, %s312
      %p316 = pneg %p310
      %p317 = scmp.eq.s32.totalorder %s29, 1
      %p318 = por %p316, %p317
      %p319 = scmp.ne.s32.totalorder %s311, %s314
      %p320 = scmp.eq.s32.totalorder %s29, 0
      %p321 = por %p319, %p320
      %p322 = scmp.ne.s32.totalorder %s311, %s314
      %p323 = scmp.eq.s32.totalorder %s34, 1
      %p324 = por %p322, %p323
      %p325 = scmp.ne.s32.totalorder %s314, %s315
      %p326 = scmp.eq.s32.totalorder %s34, 0
      %p327 = por %p325, %p326
      %p328 = scmp.ne.s32.totalorder %s314, %s315
      %p329 = scmp.eq.s32.totalorder %s35, 1
      %p330 = por %p328, %p329
      %p332 = scmp.ne.s32.totalorder %s315, %s331
      %p333 = scmp.eq.s32.totalorder %s35, 0
      %p334 = por %p332, %p333
      %p335 = scmp.le.s32.totalorder 1, %s29
      %p336 = scmp.lt.s32.totalorder %s29, 3
      %p337 = pnand %p335, %p336
      %p338 = pneg %p337
      // Predicated region
      $region9: #{tpu_custom_call.1} parent=5 // pred_check
        _
      $region10: #{tpu_custom_call.1} parent=5 // pred_check_branch
        %340 = sbr.rel (%p337) target = $region12
      $region11: #{tpu_custom_call.1} parent=5 // pred_region
        %s341 = ssub.s32 %s29, 1
        // Predicated region
        $region13: #{tpu_custom_call.1} parent=11 // pred_check
          %p342 = pneg %p154
        $region14: #{tpu_custom_call.1} parent=11 // pred_check_branch
          %344 = sbr.rel (%p342) target = $region16
        $region15: #{tpu_custom_call.1} parent=11 // pred_region
          %s346 = ssub.s32 512, 512
          %347 = vsyncadd [#allocation10], %s346
          %s348 = sshll.u32 [#allocation9], 4
          %s349 = int_to_ptr.vmem [resolvable:$true] %s348
          %354 = dma.hbm_to_vmem [thread:$0]  %s4, 512, %s349, [#allocation10], 128, 128, 8
        $region16: #{tpu_custom_call.1} parent=11 // pred_fallthru
          _
        // Predicated region
        $region17: #{tpu_custom_call.1} parent=11 // pred_check
          %p355 = pneg %p175
        $region18: #{tpu_custom_call.1} parent=11 // pred_check_branch
          %357 = sbr.rel (%p355) target = $region20
        $region19: #{tpu_custom_call.1} parent=11 // pred_region
          _
        $region20: #{tpu_custom_call.1} parent=11 // pred_fallthru
          _
        // Predicated region
        $region21: #{tpu_custom_call.1} parent=11 // pred_check
          %p358 = pneg %p196
        $region22: #{tpu_custom_call.1} parent=11 // pred_check_branch
          %360 = sbr.rel (%p358) target = $region24
        $region23: #{tpu_custom_call.1} parent=11 // pred_region
          %s362 = ssub.s32 512, 512
          %363 = vsyncadd [#allocation10], %s362
          %s364 = sshll.u32 [#allocation11], 4
          %s365 = int_to_ptr.vmem [resolvable:$true] %s364
          %370 = dma.hbm_to_vmem [thread:$0]  %s6, 512, %s365, [#allocation10], 128, 128, 8
        $region24: #{tpu_custom_call.1} parent=11 // pred_fallthru
          _
        // Predicated region
        $region25: #{tpu_custom_call.1} parent=11 // pred_check
          %p371 = pneg %p217
        $region26: #{tpu_custom_call.1} parent=11 // pred_check_branch
          %373 = sbr.rel (%p371) target = $region28
        $region27: #{tpu_custom_call.1} parent=11 // pred_region
          _
        $region28: #{tpu_custom_call.1} parent=11 // pred_fallthru
          _
        // Predicated region
        $region29: #{tpu_custom_call.1} parent=11 // pred_check
          %p374 = pneg %p238
        $region30: #{tpu_custom_call.1} parent=11 // pred_check_branch
          %376 = sbr.rel (%p374) target = $region32
        $region31: #{tpu_custom_call.1} parent=11 // pred_region
          %s378 = ssub.s32 512, 512
          %379 = vsyncadd [#allocation13], %s378
          %s380 = sshll.u32 [#allocation12], 4
          %s381 = int_to_ptr.vmem [resolvable:$true] %s380
          %386 = dma.hbm_to_vmem [thread:$0]  %s8, 512, %s381, [#allocation13], 128, 128, 8
        $region32: #{tpu_custom_call.1} parent=11 // pred_fallthru
          _
        // Predicated region
        $region33: #{tpu_custom_call.1} parent=11 // pred_check
          %p387 = pneg %p259
        $region34: #{tpu_custom_call.1} parent=11 // pred_check_branch
          %389 = sbr.rel (%p387) target = $region36
        $region35: #{tpu_custom_call.1} parent=11 // pred_region
          _
        $region36: #{tpu_custom_call.1} parent=11 // pred_fallthru
          _
        // Predicated region
        $region37: #{tpu_custom_call.1} parent=11 // pred_check
          %p390 = pneg %p280
        $region38: #{tpu_custom_call.1} parent=11 // pred_check_branch
          %392 = sbr.rel (%p390) target = $region40
        $region39: #{tpu_custom_call.1} parent=11 // pred_region
          %s394 = ssub.s32 512, 512
          %395 = vsyncadd [#allocation13], %s394
          %s396 = sshll.u32 [#allocation14], 4
          %s397 = int_to_ptr.vmem [resolvable:$true] %s396
          %402 = dma.hbm_to_vmem [thread:$0]  %s10, 512, %s397, [#allocation13], 128, 128, 8
        $region40: #{tpu_custom_call.1} parent=11 // pred_fallthru
          _
        // Predicated region
        $region41: #{tpu_custom_call.1} parent=11 // pred_check
          %p403 = pneg %p301
        $region42: #{tpu_custom_call.1} parent=11 // pred_check_branch
          %405 = sbr.rel (%p403) target = $region44
        $region43: #{tpu_custom_call.1} parent=11 // pred_region
          _
        $region44: #{tpu_custom_call.1} parent=11 // pred_fallthru
          _
      $region12: #{tpu_custom_call.1} parent=5 // pred_fallthru
        _
      %p406 = scmp.lt.s32.totalorder %s29, 2
      // Predicated region
      $region45: #{tpu_custom_call.1} parent=5 // pred_check
        %p407 = pneg %p406
      $region46: #{tpu_custom_call.1} parent=5 // pred_check_branch
        %409 = sbr.rel (%p407) target = $region48
      $region47: #{tpu_custom_call.1} parent=5 // pred_region
        // Predicated region
        $region49: #{tpu_custom_call.1} parent=47 // pred_check
          %p410 = pneg %p49
        $region50: #{tpu_custom_call.1} parent=47 // pred_check_branch
          %412 = sbr.rel (%p410) target = $region52
        $region51: #{tpu_custom_call.1} parent=47 // pred_region
          %s413 = sand.u32 %s39, 1
          %s414 = scalar_lea.sflag [#allocation4], %s413
          %s415 = sand.u32 %s39, 1
          %s416 = smul.addr %s415, 8
          %s417 = scalar_lea.vmem [#allocation3], %s416
          %s419 = ssub.s32 128, 128
          %420 = vsyncadd %s414, %s419
          %s421 = smul.addr %s29, 128
          %s422 = scalar_lea.hbm %s0, %s421
          %s424 = sshll.u32 %s417, 4
          %s425 = int_to_ptr.vmem [resolvable:$true] %s424
          %427 = dma.hbm_to_vmem [thread:$0]  %s422, 128, %s425, %s414
        $region52: #{tpu_custom_call.1} parent=47 // pred_fallthru
          _
        // Predicated region
        $region53: #{tpu_custom_call.1} parent=47 // pred_check
          %p428 = pneg %p75
        $region54: #{tpu_custom_call.1} parent=47 // pred_check_branch
          %430 = sbr.rel (%p428) target = $region56
        $region55: #{tpu_custom_call.1} parent=47 // pred_region
          %s431 = sand.u32 %s29, 1
          %s432 = scalar_lea.sflag [#allocation7], %s431
          %s433 = sand.u32 %s65, 1
          %s434 = smul.addr %s433, 8
          %s435 = scalar_lea.vmem [#allocation6], %s434
          %s437 = ssub.s32 128, 128
          %438 = vsyncadd %s432, %s437
          %s439 = smul.addr %s29, 128
          %s440 = scalar_lea.hbm %s1, %s439
          %s442 = sshll.u32 %s435, 4
          %s443 = int_to_ptr.vmem [resolvable:$true] %s442
          %445 = dma.hbm_to_vmem [thread:$0]  %s440, 128, %s443, %s432
        $region56: #{tpu_custom_call.1} parent=47 // pred_fallthru
          _
        // Predicated region
        $region57: #{tpu_custom_call.1} parent=47 // pred_check
          %p446 = pneg %p101
        $region58: #{tpu_custom_call.1} parent=47 // pred_check_branch
          %448 = sbr.rel (%p446) target = $region60
        $region59: #{tpu_custom_call.1} parent=47 // pred_region
          %s449 = sand.u32 %s29, 1
          %s450 = scalar_lea.sflag [#allocation7], %s449
          %s451 = sand.u32 %s91, 1
          %s452 = smul.addr %s451, 8
          %s453 = scalar_lea.vmem [#allocation8], %s452
          %s455 = ssub.s32 128, 128
          %456 = vsyncadd %s450, %s455
          %s457 = smul.addr %s29, 128
          %s458 = scalar_lea.hbm %s2, %s457
          %s460 = sshll.u32 %s453, 4
          %s461 = int_to_ptr.vmem [resolvable:$true] %s460
          %463 = dma.hbm_to_vmem [thread:$0]  %s458, 128, %s461, %s450
        $region60: #{tpu_custom_call.1} parent=47 // pred_fallthru
          _
        // Predicated region
        $region61: #{tpu_custom_call.1} parent=47 // pred_check
          %p464 = pneg %p127
        $region62: #{tpu_custom_call.1} parent=47 // pred_check_branch
          %466 = sbr.rel (%p464) target = $region64
        $region63: #{tpu_custom_call.1} parent=47 // pred_region
          %p467 = scmp.lt.s32.totalorder %s29, 1
          %s468 = scalar_select %p467, %s29, 1
          %s469 = smul.addr %s468, 2
          %s470 = scalar_lea.vmem %s3, %s469
        $region64: #{tpu_custom_call.1} parent=47 // pred_fallthru
          _
      $region48: #{tpu_custom_call.1} parent=5 // pred_fallthru
        _
      %p471 = scmp.le.s32.totalorder 1, %s29
      %p472 = scmp.lt.s32.totalorder %s29, 3
      %p473 = pnand %p471, %p472
      %p474 = pneg %p473
      // Predicated region
      $region65: #{tpu_custom_call.1} parent=5 // pred_check
        _
      $region66: #{tpu_custom_call.1} parent=5 // pred_check_branch
        %476 = sbr.rel (%p473) target = $region68
      $region67: #{tpu_custom_call.1} parent=5 // pred_region
        %s477 = ssub.s32 %s29, 1
        %s478 = sand.u32 %s42, 1
        %s479 = scalar_lea.sflag [#allocation4], %s478
        %s480 = sand.u32 %s42, 1
        %s481 = smul.addr %s480, 8
        %s482 = scalar_lea.vmem [#allocation3], %s481
        // Predicated region
        $region69: #{tpu_custom_call.1} parent=67 // pred_check
          %p483 = pneg %p55
        $region70: #{tpu_custom_call.1} parent=67 // pred_check_branch
          %485 = sbr.rel (%p483) target = $region72
        $region71: #{tpu_custom_call.1} parent=67 // pred_region
          %486 = dma.done %s479, 128
        $region72: #{tpu_custom_call.1} parent=67 // pred_fallthru
          _
        %s487 = sand.u32 %s34, 1
        %s488 = scalar_lea.sflag [#allocation7], %s487
        %s489 = sand.u32 %s68, 1
        %s490 = smul.addr %s489, 8
        %s491 = scalar_lea.vmem [#allocation6], %s490
        // Predicated region
        $region73: #{tpu_custom_call.1} parent=67 // pred_check
          %p492 = pneg %p81
        $region74: #{tpu_custom_call.1} parent=67 // pred_check_branch
          %494 = sbr.rel (%p492) target = $region76
        $region75: #{tpu_custom_call.1} parent=67 // pred_region
          %495 = dma.done %s488, 128
        $region76: #{tpu_custom_call.1} parent=67 // pred_fallthru
          _
        %s496 = sand.u32 %s34, 1
        %s497 = scalar_lea.sflag [#allocation7], %s496
        %s498 = sand.u32 %s94, 1
        %s499 = smul.addr %s498, 8
        %s500 = scalar_lea.vmem [#allocation8], %s499
        // Predicated region
        $region77: #{tpu_custom_call.1} parent=67 // pred_check
          %p501 = pneg %p107
        $region78: #{tpu_custom_call.1} parent=67 // pred_check_branch
          %503 = sbr.rel (%p501) target = $region80
        $region79: #{tpu_custom_call.1} parent=67 // pred_region
          %504 = dma.done %s497, 128
        $region80: #{tpu_custom_call.1} parent=67 // pred_fallthru
          _
        // Predicated region
        $region81: #{tpu_custom_call.1} parent=67 // pred_check
          %p505 = pneg %p154
        $region82: #{tpu_custom_call.1} parent=67 // pred_check_branch
          %507 = sbr.rel (%p505) target = $region84
        $region83: #{tpu_custom_call.1} parent=67 // pred_region
          %508 = dma.done [#allocation10], 512
        $region84: #{tpu_custom_call.1} parent=67 // pred_fallthru
          _
        // Predicated region
        $region85: #{tpu_custom_call.1} parent=67 // pred_check
          %p509 = pneg %p196
        $region86: #{tpu_custom_call.1} parent=67 // pred_check_branch
          %511 = sbr.rel (%p509) target = $region88
        $region87: #{tpu_custom_call.1} parent=67 // pred_region
          %512 = dma.done [#allocation10], 512
        $region88: #{tpu_custom_call.1} parent=67 // pred_fallthru
          _
        // Predicated region
        $region89: #{tpu_custom_call.1} parent=67 // pred_check
          %p513 = pneg %p238
        $region90: #{tpu_custom_call.1} parent=67 // pred_check_branch
          %515 = sbr.rel (%p513) target = $region92
        $region91: #{tpu_custom_call.1} parent=67 // pred_region
          %516 = dma.done [#allocation13], 512
        $region92: #{tpu_custom_call.1} parent=67 // pred_fallthru
          _
        // Predicated region
        $region93: #{tpu_custom_call.1} parent=67 // pred_check
          %p517 = pneg %p280
        $region94: #{tpu_custom_call.1} parent=67 // pred_check_branch
          %519 = sbr.rel (%p517) target = $region96
        $region95: #{tpu_custom_call.1} parent=67 // pred_region
          %520 = dma.done [#allocation13], 512
        $region96: #{tpu_custom_call.1} parent=67 // pred_fallthru
          _
        %s521 = sand.u32 %s42, 1
        %s522 = scalar_lea.sflag [#allocation4], %s521
        %s523 = sand.u32 %s42, 1
        %s524 = smul.addr %s523, 8
        %s525 = scalar_lea.vmem [#allocation3], %s524
        %p526 = pneg %p55
        %p527 = pneg %p52
        %s528 = sand.u32 %s34, 1
        %s529 = scalar_lea.sflag [#allocation7], %s528
        %s530 = sand.u32 %s68, 1
        %s531 = smul.addr %s530, 8
        %s532 = scalar_lea.vmem [#allocation6], %s531
        %p533 = pneg %p81
        %p534 = pneg %p78
        %s535 = sand.u32 %s34, 1
        %s536 = scalar_lea.sflag [#allocation7], %s535
        %s537 = sand.u32 %s94, 1
        %s538 = smul.addr %s537, 8
        %s539 = scalar_lea.vmem [#allocation8], %s538
        %p540 = pneg %p107
        %p541 = pneg %p104
        %p542 = scmp.lt.s32.totalorder %s34, 1
        %s543 = scalar_select %p542, %s34, 1
        %s544 = smul.addr %s543, 2
        %s545 = scalar_lea.vmem %s3, %s544
        %p546 = pneg %p133
        %p547 = pneg %p130
        %p548 = pneg %p154
        %p549 = pneg %p151
        %p550 = pneg %p175
        %p551 = pneg %p172
        %p552 = pneg %p196
        %p553 = pneg %p193
        %p554 = pneg %p217
        %p555 = pneg %p214
        %p556 = pneg %p238
        %p557 = pneg %p235
        %p558 = pneg %p259
        %p559 = pneg %p256
        %p560 = pneg %p280
        %p561 = pneg %p277
        %p562 = pneg %p301
        %p563 = pneg %p298
        %p564 = pneg %p327
        %p565 = pneg %p324
        %s566 = sand.u32 %s314, 1
        %s567 = scalar_lea.sflag [#allocation5], %s566
        %s568 = sand.u32 %s314, 1
        %s569 = smul.addr %s568, 8
        %s570 = scalar_lea.vmem [#allocation15], %s569
        %p571 = scmp.lt.s32.totalorder %s34, 1
        %s572 = scalar_select %p571, %s34, 1
        %s573 = smul.addr %s572, 2
        %s574 = scalar_lea.vmem %s3, %s573
        %v575 = vld [vmem:[%s482] sm:$0xff]
        %v576 = vld [vmem:[#allocation9] sm:$0xff]
        %v577 = vld [vmem:[#allocation9 + $0x8] sm:$0xff]
        %v578 = vld [vmem:[#allocation9 + $0x10] sm:$0xff]
        %v579 = vld [vmem:[#allocation9 + $0x18] sm:$0xff]
        %v580 = vld [vmem:[%s5] sm:$0x1]
        %v582 = vlaneseq
        %v583 = vshrl.u32 %v582, 7
        %v584 = vsub.s32 0, %v583
        %v585 = vrot.slane %v580, %v584
        %vm587 = vcmask 261120
        %v589 = vsel %vm587, %v575, 0
        %591 = vmatprep.subr.mxu0 0.0
        %592 = vmatpush1.msra.mxu0 0.0
        %593 = vmatprep.subr.mxu0 0.0
        %594 = vmatpush1.msra.mxu0 0.0
        %595 = vmatprep.subr.mxu0 0.0
        %596 = vmatpush1.msra.mxu0 0.0
        %597 = vmatprep.subr.mxu0 0.0
        %598 = vmatpush1.msra.mxu0 0.0
        %599 = vmatprep.subr.mxu0 0.0
        %600 = vmatpush1.msra.mxu0 0.0
        %601 = vmatprep.subr.mxu0 0.0
        %602 = vmatpush1.msra.mxu0 0.0
        %603 = vmatprep.subr.mxu0 0.0
        %604 = vmatpush1.msra.mxu0 0.0
        %605 = vmatprep.subr.mxu0 0.0
        %606 = vmatpush1.msra.mxu0 0.0
        %607 = vmatprep.subr.mxu0 0.0
        %608 = vmatpush1.msra.mxu0 0.0
        %609 = vmatprep.subr.mxu0 0.0
        %610 = vmatpush1.msra.mxu0 0.0
        %611 = vmatprep.subr.mxu0 0.0
        %612 = vmatpush1.msra.mxu0 0.0
        %613 = vmatprep.subr.mxu0 0.0
        %614 = vmatpush1.msra.mxu0 0.0
        %615 = vmatprep.subr.mxu0 0.0
        %616 = vmatpush1.msra.mxu0 %v579
        %617 = vmatprep.subr.mxu0 0.0
        %618 = vmatpush1.msra.mxu0 %v578
        %619 = vmatprep.subr.mxu0 0.0
        %620 = vmatpush1.msra.mxu0 %v577
        %621 = vmatprep.subr.mxu0 0.0
        %622 = vmatpush1.msra.mxu0 %v576
        %623 = vmatprep.subr.mxu0 0.0
        %624 = vmatpush2.msra.mxu0 0.0
        %625 = vmatprep.subr.mxu0 0.0
        %626 = vmatpush2.msra.mxu0 0.0
        %627 = vmatprep.subr.mxu0 0.0
        %628 = vmatpush2.msra.mxu0 0.0
        %629 = vmatprep.subr.mxu0 0.0
        %630 = vmatpush2.msra.mxu0 0.0
        %631 = vmatprep.subr.mxu0 0.0
        %632 = vmatpush2.msra.mxu0 0.0
        %633 = vmatprep.subr.mxu0 0.0
        %634 = vmatpush2.msra.mxu0 0.0
        %635 = vmatprep.subr.mxu0 0.0
        %636 = vmatpush2.msra.mxu0 0.0
        %637 = vmatprep.subr.mxu0 0.0
        %638 = vmatpush2.msra.mxu0 0.0
        %639 = vmatprep.subr.mxu0 0.0
        %640 = vmatpush2.msra.mxu0 0.0
        %641 = vmatprep.subr.mxu0 0.0
        %642 = vmatpush2.msra.mxu0 0.0
        %643 = vmatprep.subr.mxu0 0.0
        %644 = vmatpush2.msra.mxu0 0.0
        %645 = vmatprep.subr.mxu0 0.0
        %646 = vmatpush2.msra.mxu0 0.0
        %647 = vmatprep.subr.mxu0 0.0
        %648 = vmatpush2.msra.mxu0 0.0
        %649 = vmatprep.subr.mxu0 0.0
        %650 = vmatpush2.msra.mxu0 0.0
        %651 = vmatprep.subr.mxu0 0.0
        %652 = vmatpush2.msra.mxu0 0.0
        %653 = vmatprep.subr.mxu0 0.0
        %654 = vmatpush2.msra.mxu0 0.0
        %655 = vmatprep.mubr.f32.mxu0 0.0
        %656 = vmatmul.mubr.f32.gmra.mxu0 %v589
        %v657 = vpop.f32.mrf.mxu0
        %v658 = vadd.f32 %v585, %v657
        %v659 = vpop.f32.mrf.mxu0
        %660 = vdwg.mxu0
        %v661 = vld [vmem:[%s491] sm:$0xff]
        %v662 = vld [vmem:[#allocation11] sm:$0xff]
        %v663 = vld [vmem:[#allocation11 + $0x8] sm:$0xff]
        %v664 = vld [vmem:[#allocation11 + $0x10] sm:$0xff]
        %v665 = vld [vmem:[#allocation11 + $0x18] sm:$0xff]
        %v666 = vld [vmem:[%s7] sm:$0x1]
        %v668 = vlaneseq
        %v669 = vshrl.u32 %v668, 7
        %v670 = vsub.s32 0, %v669
        %v671 = vrot.slane %v666, %v670
        %v674 = vsel %vm587, %v661, 0
        %676 = vmatprep.subr.mxu0 0.0
        %677 = vmatpush1.msra.mxu0 0.0
        %678 = vmatprep.subr.mxu0 0.0
        %679 = vmatpush1.msra.mxu0 0.0
        %680 = vmatprep.subr.mxu0 0.0
        %681 = vmatpush1.msra.mxu0 0.0
        %682 = vmatprep.subr.mxu0 0.0
        %683 = vmatpush1.msra.mxu0 0.0
        %684 = vmatprep.subr.mxu0 0.0
        %685 = vmatpush1.msra.mxu0 0.0
        %686 = vmatprep.subr.mxu0 0.0
        %687 = vmatpush1.msra.mxu0 0.0
        %688 = vmatprep.subr.mxu0 0.0
        %689 = vmatpush1.msra.mxu0 0.0
        %690 = vmatprep.subr.mxu0 0.0
        %691 = vmatpush1.msra.mxu0 0.0
        %692 = vmatprep.subr.mxu0 0.0
        %693 = vmatpush1.msra.mxu0 0.0
        %694 = vmatprep.subr.mxu0 0.0
        %695 = vmatpush1.msra.mxu0 0.0
        %696 = vmatprep.subr.mxu0 0.0
        %697 = vmatpush1.msra.mxu0 0.0
        %698 = vmatprep.subr.mxu0 0.0
        %699 = vmatpush1.msra.mxu0 0.0
        %700 = vmatprep.subr.mxu0 0.0
        %701 = vmatpush1.msra.mxu0 %v665
        %702 = vmatprep.subr.mxu0 0.0
        %703 = vmatpush1.msra.mxu0 %v664
        %704 = vmatprep.subr.mxu0 0.0
        %705 = vmatpush1.msra.mxu0 %v663
        %706 = vmatprep.subr.mxu0 0.0
        %707 = vmatpush1.msra.mxu0 %v662
        %708 = vmatprep.subr.mxu0 0.0
        %709 = vmatpush2.msra.mxu0 0.0
        %710 = vmatprep.subr.mxu0 0.0
        %711 = vmatpush2.msra.mxu0 0.0
        %712 = vmatprep.subr.mxu0 0.0
        %713 = vmatpush2.msra.mxu0 0.0
        %714 = vmatprep.subr.mxu0 0.0
        %715 = vmatpush2.msra.mxu0 0.0
        %716 = vmatprep.subr.mxu0 0.0
        %717 = vmatpush2.msra.mxu0 0.0
        %718 = vmatprep.subr.mxu0 0.0
        %719 = vmatpush2.msra.mxu0 0.0
        %720 = vmatprep.subr.mxu0 0.0
        %721 = vmatpush2.msra.mxu0 0.0
        %722 = vmatprep.subr.mxu0 0.0
        %723 = vmatpush2.msra.mxu0 0.0
        %724 = vmatprep.subr.mxu0 0.0
        %725 = vmatpush2.msra.mxu0 0.0
        %726 = vmatprep.subr.mxu0 0.0
        %727 = vmatpush2.msra.mxu0 0.0
        %728 = vmatprep.subr.mxu0 0.0
        %729 = vmatpush2.msra.mxu0 0.0
        %730 = vmatprep.subr.mxu0 0.0
        %731 = vmatpush2.msra.mxu0 0.0
        %732 = vmatprep.subr.mxu0 0.0
        %733 = vmatpush2.msra.mxu0 0.0
        %734 = vmatprep.subr.mxu0 0.0
        %735 = vmatpush2.msra.mxu0 0.0
        %736 = vmatprep.subr.mxu0 0.0
        %737 = vmatpush2.msra.mxu0 0.0
        %738 = vmatprep.subr.mxu0 0.0
        %739 = vmatpush2.msra.mxu0 0.0
        %740 = vmatprep.mubr.f32.mxu0 0.0
        %741 = vmatmul.mubr.f32.gmra.mxu0 %v674
        %v742 = vpop.f32.mrf.mxu0
        %v743 = vadd.f32 %v671, %v742
        %v744 = vpop.f32.mrf.mxu0
        %745 = vdwg.mxu0
        %v746 = vld [vmem:[%s500] sm:$0xff]
        %v747 = vld [vmem:[#allocation12] sm:$0xff]
        %v748 = vld [vmem:[#allocation12 + $0x8] sm:$0xff]
        %v749 = vld [vmem:[#allocation12 + $0x10] sm:$0xff]
        %v750 = vld [vmem:[#allocation12 + $0x18] sm:$0xff]
        %v751 = vld [vmem:[%s9] sm:$0x1]
        %v753 = vlaneseq
        %v754 = vshrl.u32 %v753, 7
        %v755 = vsub.s32 0, %v754
        %v756 = vrot.slane %v751, %v755
        %v759 = vsel %vm587, %v746, 0
        %761 = vmatprep.subr.mxu0 0.0
        %762 = vmatpush1.msra.mxu0 0.0
        %763 = vmatprep.subr.mxu0 0.0
        %764 = vmatpush1.msra.mxu0 0.0
        %765 = vmatprep.subr.mxu0 0.0
        %766 = vmatpush1.msra.mxu0 0.0
        %767 = vmatprep.subr.mxu0 0.0
        %768 = vmatpush1.msra.mxu0 0.0
        %769 = vmatprep.subr.mxu0 0.0
        %770 = vmatpush1.msra.mxu0 0.0
        %771 = vmatprep.subr.mxu0 0.0
        %772 = vmatpush1.msra.mxu0 0.0
        %773 = vmatprep.subr.mxu0 0.0
        %774 = vmatpush1.msra.mxu0 0.0
        %775 = vmatprep.subr.mxu0 0.0
        %776 = vmatpush1.msra.mxu0 0.0
        %777 = vmatprep.subr.mxu0 0.0
        %778 = vmatpush1.msra.mxu0 0.0
        %779 = vmatprep.subr.mxu0 0.0
        %780 = vmatpush1.msra.mxu0 0.0
        %781 = vmatprep.subr.mxu0 0.0
        %782 = vmatpush1.msra.mxu0 0.0
        %783 = vmatprep.subr.mxu0 0.0
        %784 = vmatpush1.msra.mxu0 0.0
        %785 = vmatprep.subr.mxu0 0.0
        %786 = vmatpush1.msra.mxu0 %v750
        %787 = vmatprep.subr.mxu0 0.0
        %788 = vmatpush1.msra.mxu0 %v749
        %789 = vmatprep.subr.mxu0 0.0
        %790 = vmatpush1.msra.mxu0 %v748
        %791 = vmatprep.subr.mxu0 0.0
        %792 = vmatpush1.msra.mxu0 %v747
        %793 = vmatprep.subr.mxu0 0.0
        %794 = vmatpush2.msra.mxu0 0.0
        %795 = vmatprep.subr.mxu0 0.0
        %796 = vmatpush2.msra.mxu0 0.0
        %797 = vmatprep.subr.mxu0 0.0
        %798 = vmatpush2.msra.mxu0 0.0
        %799 = vmatprep.subr.mxu0 0.0
        %800 = vmatpush2.msra.mxu0 0.0
        %801 = vmatprep.subr.mxu0 0.0
        %802 = vmatpush2.msra.mxu0 0.0
        %803 = vmatprep.subr.mxu0 0.0
        %804 = vmatpush2.msra.mxu0 0.0
        %805 = vmatprep.subr.mxu0 0.0
        %806 = vmatpush2.msra.mxu0 0.0
        %807 = vmatprep.subr.mxu0 0.0
        %808 = vmatpush2.msra.mxu0 0.0
        %809 = vmatprep.subr.mxu0 0.0
        %810 = vmatpush2.msra.mxu0 0.0
        %811 = vmatprep.subr.mxu0 0.0
        %812 = vmatpush2.msra.mxu0 0.0
        %813 = vmatprep.subr.mxu0 0.0
        %814 = vmatpush2.msra.mxu0 0.0
        %815 = vmatprep.subr.mxu0 0.0
        %816 = vmatpush2.msra.mxu0 0.0
        %817 = vmatprep.subr.mxu0 0.0
        %818 = vmatpush2.msra.mxu0 0.0
        %819 = vmatprep.subr.mxu0 0.0
        %820 = vmatpush2.msra.mxu0 0.0
        %821 = vmatprep.subr.mxu0 0.0
        %822 = vmatpush2.msra.mxu0 0.0
        %823 = vmatprep.subr.mxu0 0.0
        %824 = vmatpush2.msra.mxu0 0.0
        %825 = vmatprep.mubr.f32.mxu0 0.0
        %826 = vmatmul.mubr.f32.gmra.mxu0 %v759
        %v827 = vpop.f32.mrf.mxu0
        %v828 = vadd.f32 %v756, %v827
        %v829 = vpop.f32.mrf.mxu0
        %830 = vdwg.mxu0
        %v831 = vmul.f32 %v658, 0.35355338
        %v832 = vld [vmem:[%s574] sm:$0x3]
        %v833 = vunpack.c.0.s8 %v832
        %vm834 = vcmp.eq.s32.totalorder %v833, 0
        %vm835 = vcmask 64512
        %v837 = vsel %vm835, %v831, 0
        %v840 = vsel %vm835, %v743, 0
        %842 = vmatprep.subr.mxu0 0.0
        %843 = vmatpush1.xpose.msra.mxu0 0.0
        %844 = vmatprep.subr.mxu0 0.0
        %845 = vmatpush1.xpose.msra.mxu0 0.0
        %846 = vmatprep.subr.mxu0 0.0
        %847 = vmatpush1.xpose.msra.mxu0 0.0
        %848 = vmatprep.subr.mxu0 0.0
        %849 = vmatpush1.xpose.msra.mxu0 0.0
        %850 = vmatprep.subr.mxu0 0.0
        %851 = vmatpush1.xpose.msra.mxu0 0.0
        %852 = vmatprep.subr.mxu0 0.0
        %853 = vmatpush1.xpose.msra.mxu0 0.0
        %854 = vmatprep.subr.mxu0 0.0
        %855 = vmatpush1.xpose.msra.mxu0 0.0
        %856 = vmatprep.subr.mxu0 0.0
        %857 = vmatpush1.xpose.msra.mxu0 0.0
        %858 = vmatprep.subr.mxu0 0.0
        %859 = vmatpush1.xpose.msra.mxu0 0.0
        %860 = vmatprep.subr.mxu0 0.0
        %861 = vmatpush1.xpose.msra.mxu0 0.0
        %862 = vmatprep.subr.mxu0 0.0
        %863 = vmatpush1.xpose.msra.mxu0 0.0
        %864 = vmatprep.subr.mxu0 0.0
        %865 = vmatpush1.xpose.msra.mxu0 0.0
        %866 = vmatprep.subr.mxu0 0.0
        %867 = vmatpush1.xpose.msra.mxu0 0.0
        %868 = vmatprep.subr.mxu0 0.0
        %869 = vmatpush1.xpose.msra.mxu0 0.0
        %870 = vmatprep.subr.mxu0 0.0
        %871 = vmatpush1.xpose.msra.mxu0 0.0
        %872 = vmatprep.subr.mxu0 0.0
        %873 = vmatpush1.xpose.msra.mxu0 %v840
        %874 = vmatprep.subr.mxu0 0.0
        %875 = vmatpush2.xpose.msra.mxu0 0.0
        %876 = vmatprep.subr.mxu0 0.0
        %877 = vmatpush2.xpose.msra.mxu0 0.0
        %878 = vmatprep.subr.mxu0 0.0
        %879 = vmatpush2.xpose.msra.mxu0 0.0
        %880 = vmatprep.subr.mxu0 0.0
        %881 = vmatpush2.xpose.msra.mxu0 0.0
        %882 = vmatprep.subr.mxu0 0.0
        %883 = vmatpush2.xpose.msra.mxu0 0.0
        %884 = vmatprep.subr.mxu0 0.0
        %885 = vmatpush2.xpose.msra.mxu0 0.0
        %886 = vmatprep.subr.mxu0 0.0
        %887 = vmatpush2.xpose.msra.mxu0 0.0
        %888 = vmatprep.subr.mxu0 0.0
        %889 = vmatpush2.xpose.msra.mxu0 0.0
        %890 = vmatprep.subr.mxu0 0.0
        %891 = vmatpush2.xpose.msra.mxu0 0.0
        %892 = vmatprep.subr.mxu0 0.0
        %893 = vmatpush2.xpose.msra.mxu0 0.0
        %894 = vmatprep.subr.mxu0 0.0
        %895 = vmatpush2.xpose.msra.mxu0 0.0
        %896 = vmatprep.subr.mxu0 0.0
        %897 = vmatpush2.xpose.msra.mxu0 0.0
        %898 = vmatprep.subr.mxu0 0.0
        %899 = vmatpush2.xpose.msra.mxu0 0.0
        %900 = vmatprep.subr.mxu0 0.0
        %901 = vmatpush2.xpose.msra.mxu0 0.0
        %902 = vmatprep.subr.mxu0 0.0
        %903 = vmatpush2.xpose.msra.mxu0 0.0
        %904 = vmatprep.subr.mxu0 0.0
        %905 = vmatpush2.xpose.msra.mxu0 0.0
        %906 = vmatprep.mubr.f32.mxu0 0.0
        %907 = vmatmul.mubr.f32.gmra.mxu0 %v837
        %v908 = vpop.f32.mrf.mxu0
        %v909 = vadd.f32 0.0, %v908
        %v910 = vpop.f32.mrf.mxu0
        %911 = vdwg.mxu0
        %v912 = vsel %vm834, -1e+09, %v909
        %v913 = vsel %vm835, %v912, -inf
        %914 = vmax.xlane.f32.xlu0 %v913
        %v915 = vpop.xlane.xlu0 %914
        %v916 = vsub.f32 %v912, %v915
        %v917 = vmul.f32 %v916, 1.442695
        %v918 = vpow.pop %v917
        %v919 = vsel %vm835, %v918, 0.0
        %920 = vadd.xlane.f32.xlu0 %v919
        %v921 = vpop.xlane.xlu0 %920
        %v922 = vrcp.pop %v921
        %v923 = vmul.f32 %v918, %v922
        %v925 = vsel %vm835, %v923, 0
        %927 = vmatprep.subr.mxu0 0.0
        %928 = vmatpush1.msra.mxu0 0.0
        %929 = vmatprep.subr.mxu0 0.0
        %930 = vmatpush1.msra.mxu0 0.0
        %931 = vmatprep.subr.mxu0 0.0
        %932 = vmatpush1.msra.mxu0 0.0
        %933 = vmatprep.subr.mxu0 0.0
        %934 = vmatpush1.msra.mxu0 0.0
        %935 = vmatprep.subr.mxu0 0.0
        %936 = vmatpush1.msra.mxu0 0.0
        %937 = vmatprep.subr.mxu0 0.0
        %938 = vmatpush1.msra.mxu0 0.0
        %939 = vmatprep.subr.mxu0 0.0
        %940 = vmatpush1.msra.mxu0 0.0
        %941 = vmatprep.subr.mxu0 0.0
        %942 = vmatpush1.msra.mxu0 0.0
        %943 = vmatprep.subr.mxu0 0.0
        %944 = vmatpush1.msra.mxu0 0.0
        %945 = vmatprep.subr.mxu0 0.0
        %946 = vmatpush1.msra.mxu0 0.0
        %947 = vmatprep.subr.mxu0 0.0
        %948 = vmatpush1.msra.mxu0 0.0
        %949 = vmatprep.subr.mxu0 0.0
        %950 = vmatpush1.msra.mxu0 0.0
        %951 = vmatprep.subr.mxu0 0.0
        %952 = vmatpush1.msra.mxu0 0.0
        %953 = vmatprep.subr.mxu0 0.0
        %954 = vmatpush1.msra.mxu0 0.0
        %955 = vmatprep.subr.mxu0 0.0
        %956 = vmatpush1.msra.mxu0 0.0
        %957 = vmatprep.subr.mxu0 0.0
        %958 = vmatpush1.msra.mxu0 %v828
        %959 = vmatprep.subr.mxu0 0.0
        %960 = vmatpush2.msra.mxu0 0.0
        %961 = vmatprep.subr.mxu0 0.0
        %962 = vmatpush2.msra.mxu0 0.0
        %963 = vmatprep.subr.mxu0 0.0
        %964 = vmatpush2.msra.mxu0 0.0
        %965 = vmatprep.subr.mxu0 0.0
        %966 = vmatpush2.msra.mxu0 0.0
        %967 = vmatprep.subr.mxu0 0.0
        %968 = vmatpush2.msra.mxu0 0.0
        %969 = vmatprep.subr.mxu0 0.0
        %970 = vmatpush2.msra.mxu0 0.0
        %971 = vmatprep.subr.mxu0 0.0
        %972 = vmatpush2.msra.mxu0 0.0
        %973 = vmatprep.subr.mxu0 0.0
        %974 = vmatpush2.msra.mxu0 0.0
        %975 = vmatprep.subr.mxu0 0.0
        %976 = vmatpush2.msra.mxu0 0.0
        %977 = vmatprep.subr.mxu0 0.0
        %978 = vmatpush2.msra.mxu0 0.0
        %979 = vmatprep.subr.mxu0 0.0
        %980 = vmatpush2.msra.mxu0 0.0
        %981 = vmatprep.subr.mxu0 0.0
        %982 = vmatpush2.msra.mxu0 0.0
        %983 = vmatprep.subr.mxu0 0.0
        %984 = vmatpush2.msra.mxu0 0.0
        %985 = vmatprep.subr.mxu0 0.0
        %986 = vmatpush2.msra.mxu0 0.0
        %987 = vmatprep.subr.mxu0 0.0
        %988 = vmatpush2.msra.mxu0 0.0
        %989 = vmatprep.subr.mxu0 0.0
        %990 = vmatpush2.msra.mxu0 0.0
        %991 = vmatprep.mubr.f32.mxu0 0.0
        %992 = vmatmul.mubr.f32.gmra.mxu0 %v925
        %v993 = vpop.f32.mrf.mxu0
        %v994 = vadd.f32 0.0, %v993
        %v995 = vpop.f32.mrf.mxu0
        %996 = vdwg.mxu0
        %997 = vst.msk [vmem:[#allocation2] sm:$0xff] %vm835, %v994
        %998 = vrot.lane.b32.xlu0 %v831, 120
        %v999 = vpop.permute.xlu0 %998
        %1000 = vrot.lane.b32.xlu0 %v743, 120
        %v1001 = vpop.permute.xlu0 %1000
        %v1002 = vsel %vm835, %v999, 0
        %v1004 = vsel %vm835, %v1001, 0
        %1006 = vmatprep.subr.mxu0 0.0
        %1007 = vmatpush1.xpose.msra.mxu0 0.0
        %1008 = vmatprep.subr.mxu0 0.0
        %1009 = vmatpush1.xpose.msra.mxu0 0.0
        %1010 = vmatprep.subr.mxu0 0.0
        %1011 = vmatpush1.xpose.msra.mxu0 0.0
        %1012 = vmatprep.subr.mxu0 0.0
        %1013 = vmatpush1.xpose.msra.mxu0 0.0
        %1014 = vmatprep.subr.mxu0 0.0
        %1015 = vmatpush1.xpose.msra.mxu0 0.0
        %1016 = vmatprep.subr.mxu0 0.0
        %1017 = vmatpush1.xpose.msra.mxu0 0.0
        %1018 = vmatprep.subr.mxu0 0.0
        %1019 = vmatpush1.xpose.msra.mxu0 0.0
        %1020 = vmatprep.subr.mxu0 0.0
        %1021 = vmatpush1.xpose.msra.mxu0 0.0
        %1022 = vmatprep.subr.mxu0 0.0
        %1023 = vmatpush1.xpose.msra.mxu0 0.0
        %1024 = vmatprep.subr.mxu0 0.0
        %1025 = vmatpush1.xpose.msra.mxu0 0.0
        %1026 = vmatprep.subr.mxu0 0.0
        %1027 = vmatpush1.xpose.msra.mxu0 0.0
        %1028 = vmatprep.subr.mxu0 0.0
        %1029 = vmatpush1.xpose.msra.mxu0 0.0
        %1030 = vmatprep.subr.mxu0 0.0
        %1031 = vmatpush1.xpose.msra.mxu0 0.0
        %1032 = vmatprep.subr.mxu0 0.0
        %1033 = vmatpush1.xpose.msra.mxu0 0.0
        %1034 = vmatprep.subr.mxu0 0.0
        %1035 = vmatpush1.xpose.msra.mxu0 0.0
        %1036 = vmatprep.subr.mxu0 0.0
        %1037 = vmatpush1.xpose.msra.mxu0 %v1004
        %1038 = vmatprep.subr.mxu0 0.0
        %1039 = vmatpush2.xpose.msra.mxu0 0.0
        %1040 = vmatprep.subr.mxu0 0.0
        %1041 = vmatpush2.xpose.msra.mxu0 0.0
        %1042 = vmatprep.subr.mxu0 0.0
        %1043 = vmatpush2.xpose.msra.mxu0 0.0
        %1044 = vmatprep.subr.mxu0 0.0
        %1045 = vmatpush2.xpose.msra.mxu0 0.0
        %1046 = vmatprep.subr.mxu0 0.0
        %1047 = vmatpush2.xpose.msra.mxu0 0.0
        %1048 = vmatprep.subr.mxu0 0.0
        %1049 = vmatpush2.xpose.msra.mxu0 0.0
        %1050 = vmatprep.subr.mxu0 0.0
        %1051 = vmatpush2.xpose.msra.mxu0 0.0
        %1052 = vmatprep.subr.mxu0 0.0
        %1053 = vmatpush2.xpose.msra.mxu0 0.0
        %1054 = vmatprep.subr.mxu0 0.0
        %1055 = vmatpush2.xpose.msra.mxu0 0.0
        %1056 = vmatprep.subr.mxu0 0.0
        %1057 = vmatpush2.xpose.msra.mxu0 0.0
        %1058 = vmatprep.subr.mxu0 0.0
        %1059 = vmatpush2.xpose.msra.mxu0 0.0
        %1060 = vmatprep.subr.mxu0 0.0
        %1061 = vmatpush2.xpose.msra.mxu0 0.0
        %1062 = vmatprep.subr.mxu0 0.0
        %1063 = vmatpush2.xpose.msra.mxu0 0.0
        %1064 = vmatprep.subr.mxu0 0.0
        %1065 = vmatpush2.xpose.msra.mxu0 0.0
        %1066 = vmatprep.subr.mxu0 0.0
        %1067 = vmatpush2.xpose.msra.mxu0 0.0
        %1068 = vmatprep.subr.mxu0 0.0
        %1069 = vmatpush2.xpose.msra.mxu0 0.0
        %1070 = vmatprep.mubr.f32.mxu0 0.0
        %1071 = vmatmul.mubr.f32.gmra.mxu0 %v1002
        %v1072 = vpop.f32.mrf.mxu0
        %v1073 = vadd.f32 0.0, %v1072
        %v1074 = vpop.f32.mrf.mxu0
        %1075 = vdwg.mxu0
        %v1076 = vsel %vm834, -1e+09, %v1073
        %v1077 = vsel %vm835, %v1076, -inf
        %1078 = vmax.xlane.f32.xlu0 %v1077
        %v1079 = vpop.xlane.xlu0 %1078
        %v1080 = vsub.f32 %v1076, %v1079
        %v1081 = vmul.f32 %v1080, 1.442695
        %v1082 = vpow.pop %v1081
        %v1083 = vsel %vm835, %v1082, 0.0
        %1084 = vadd.xlane.f32.xlu0 %v1083
        %v1085 = vpop.xlane.xlu0 %1084
        %v1086 = vrcp.pop %v1085
        %v1087 = vmul.f32 %v1082, %v1086
        %1089 = vrot.lane.b32.xlu0 %v828, 120
        %v1090 = vpop.permute.xlu0 %1089
        %v1093 = vsel %vm835, %v1087, 0
        %1095 = vmatprep.subr.mxu0 0.0
        %1096 = vmatpush1.msra.mxu0 0.0
        %1097 = vmatprep.subr.mxu0 0.0
        %1098 = vmatpush1.msra.mxu0 0.0
        %1099 = vmatprep.subr.mxu0 0.0
        %1100 = vmatpush1.msra.mxu0 0.0
        %1101 = vmatprep.subr.mxu0 0.0
        %1102 = vmatpush1.msra.mxu0 0.0
        %1103 = vmatprep.subr.mxu0 0.0
        %1104 = vmatpush1.msra.mxu0 0.0
        %1105 = vmatprep.subr.mxu0 0.0
        %1106 = vmatpush1.msra.mxu0 0.0
        %1107 = vmatprep.subr.mxu0 0.0
        %1108 = vmatpush1.msra.mxu0 0.0
        %1109 = vmatprep.subr.mxu0 0.0
        %1110 = vmatpush1.msra.mxu0 0.0
        %1111 = vmatprep.subr.mxu0 0.0
        %1112 = vmatpush1.msra.mxu0 0.0
        %1113 = vmatprep.subr.mxu0 0.0
        %1114 = vmatpush1.msra.mxu0 0.0
        %1115 = vmatprep.subr.mxu0 0.0
        %1116 = vmatpush1.msra.mxu0 0.0
        %1117 = vmatprep.subr.mxu0 0.0
        %1118 = vmatpush1.msra.mxu0 0.0
        %1119 = vmatprep.subr.mxu0 0.0
        %1120 = vmatpush1.msra.mxu0 0.0
        %1121 = vmatprep.subr.mxu0 0.0
        %1122 = vmatpush1.msra.mxu0 0.0
        %1123 = vmatprep.subr.mxu0 0.0
        %1124 = vmatpush1.msra.mxu0 0.0
        %1125 = vmatprep.subr.mxu0 0.0
        %1126 = vmatpush1.msra.mxu0 %v1090
        %1127 = vmatprep.subr.mxu0 0.0
        %1128 = vmatpush2.msra.mxu0 0.0
        %1129 = vmatprep.subr.mxu0 0.0
        %1130 = vmatpush2.msra.mxu0 0.0
        %1131 = vmatprep.subr.mxu0 0.0
        %1132 = vmatpush2.msra.mxu0 0.0
        %1133 = vmatprep.subr.mxu0 0.0
        %1134 = vmatpush2.msra.mxu0 0.0
        %1135 = vmatprep.subr.mxu0 0.0
        %1136 = vmatpush2.msra.mxu0 0.0
        %1137 = vmatprep.subr.mxu0 0.0
        %1138 = vmatpush2.msra.mxu0 0.0
        %1139 = vmatprep.subr.mxu0 0.0
        %1140 = vmatpush2.msra.mxu0 0.0
        %1141 = vmatprep.subr.mxu0 0.0
        %1142 = vmatpush2.msra.mxu0 0.0
        %1143 = vmatprep.subr.mxu0 0.0
        %1144 = vmatpush2.msra.mxu0 0.0
        %1145 = vmatprep.subr.mxu0 0.0
        %1146 = vmatpush2.msra.mxu0 0.0
        %1147 = vmatprep.subr.mxu0 0.0
        %1148 = vmatpush2.msra.mxu0 0.0
        %1149 = vmatprep.subr.mxu0 0.0
        %1150 = vmatpush2.msra.mxu0 0.0
        %1151 = vmatprep.subr.mxu0 0.0
        %1152 = vmatpush2.msra.mxu0 0.0
        %1153 = vmatprep.subr.mxu0 0.0
        %1154 = vmatpush2.msra.mxu0 0.0
        %1155 = vmatprep.subr.mxu0 0.0
        %1156 = vmatpush2.msra.mxu0 0.0
        %1157 = vmatprep.subr.mxu0 0.0
        %1158 = vmatpush2.msra.mxu0 0.0
        %1159 = vmatprep.mubr.f32.mxu0 0.0
        %1160 = vmatmul.mubr.f32.gmra.mxu0 %v1093
        %v1161 = vpop.f32.mrf.mxu0
        %v1162 = vadd.f32 0.0, %v1161
        %v1163 = vpop.f32.mrf.mxu0
        %1164 = vdwg.mxu0
        %1166 = vrot.lane.b32.xlu0 %v1162, 8
        %v1167 = vpop.permute.xlu0 %1166
        %vm1169 = vcmask 130112
        %1170 = vst.msk [vmem:[#allocation2] sm:$0xff] %vm1169, %v1167
        %1171 = vrot.lane.b32.xlu0 %v831, 112
        %v1172 = vpop.permute.xlu0 %1171
        %1173 = vrot.lane.b32.xlu0 %v743, 112
        %v1174 = vpop.permute.xlu0 %1173
        %v1175 = vsel %vm835, %v1172, 0
        %v1177 = vsel %vm835, %v1174, 0
        %1179 = vmatprep.subr.mxu0 0.0
        %1180 = vmatpush1.xpose.msra.mxu0 0.0
        %1181 = vmatprep.subr.mxu0 0.0
        %1182 = vmatpush1.xpose.msra.mxu0 0.0
        %1183 = vmatprep.subr.mxu0 0.0
        %1184 = vmatpush1.xpose.msra.mxu0 0.0
        %1185 = vmatprep.subr.mxu0 0.0
        %1186 = vmatpush1.xpose.msra.mxu0 0.0
        %1187 = vmatprep.subr.mxu0 0.0
        %1188 = vmatpush1.xpose.msra.mxu0 0.0
        %1189 = vmatprep.subr.mxu0 0.0
        %1190 = vmatpush1.xpose.msra.mxu0 0.0
        %1191 = vmatprep.subr.mxu0 0.0
        %1192 = vmatpush1.xpose.msra.mxu0 0.0
        %1193 = vmatprep.subr.mxu0 0.0
        %1194 = vmatpush1.xpose.msra.mxu0 0.0
        %1195 = vmatprep.subr.mxu0 0.0
        %1196 = vmatpush1.xpose.msra.mxu0 0.0
        %1197 = vmatprep.subr.mxu0 0.0
        %1198 = vmatpush1.xpose.msra.mxu0 0.0
        %1199 = vmatprep.subr.mxu0 0.0
        %1200 = vmatpush1.xpose.msra.mxu0 0.0
        %1201 = vmatprep.subr.mxu0 0.0
        %1202 = vmatpush1.xpose.msra.mxu0 0.0
        %1203 = vmatprep.subr.mxu0 0.0
        %1204 = vmatpush1.xpose.msra.mxu0 0.0
        %1205 = vmatprep.subr.mxu0 0.0
        %1206 = vmatpush1.xpose.msra.mxu0 0.0
        %1207 = vmatprep.subr.mxu0 0.0
        %1208 = vmatpush1.xpose.msra.mxu0 0.0
        %1209 = vmatprep.subr.mxu0 0.0
        %1210 = vmatpush1.xpose.msra.mxu0 %v1177
        %1211 = vmatprep.subr.mxu0 0.0
        %1212 = vmatpush2.xpose.msra.mxu0 0.0
        %1213 = vmatprep.subr.mxu0 0.0
        %1214 = vmatpush2.xpose.msra.mxu0 0.0
        %1215 = vmatprep.subr.mxu0 0.0
        %1216 = vmatpush2.xpose.msra.mxu0 0.0
        %1217 = vmatprep.subr.mxu0 0.0
        %1218 = vmatpush2.xpose.msra.mxu0 0.0
        %1219 = vmatprep.subr.mxu0 0.0
        %1220 = vmatpush2.xpose.msra.mxu0 0.0
        %1221 = vmatprep.subr.mxu0 0.0
        %1222 = vmatpush2.xpose.msra.mxu0 0.0
        %1223 = vmatprep.subr.mxu0 0.0
        %1224 = vmatpush2.xpose.msra.mxu0 0.0
        %1225 = vmatprep.subr.mxu0 0.0
        %1226 = vmatpush2.xpose.msra.mxu0 0.0
        %1227 = vmatprep.subr.mxu0 0.0
        %1228 = vmatpush2.xpose.msra.mxu0 0.0
        %1229 = vmatprep.subr.mxu0 0.0
        %1230 = vmatpush2.xpose.msra.mxu0 0.0
        %1231 = vmatprep.subr.mxu0 0.0
        %1232 = vmatpush2.xpose.msra.mxu0 0.0
        %1233 = vmatprep.subr.mxu0 0.0
        %1234 = vmatpush2.xpose.msra.mxu0 0.0
        %1235 = vmatprep.subr.mxu0 0.0
        %1236 = vmatpush2.xpose.msra.mxu0 0.0
        %1237 = vmatprep.subr.mxu0 0.0
        %1238 = vmatpush2.xpose.msra.mxu0 0.0
        %1239 = vmatprep.subr.mxu0 0.0
        %1240 = vmatpush2.xpose.msra.mxu0 0.0
        %1241 = vmatprep.subr.mxu0 0.0
        %1242 = vmatpush2.xpose.msra.mxu0 0.0
        %1243 = vmatprep.mubr.f32.mxu0 0.0
        %1244 = vmatmul.mubr.f32.gmra.mxu0 %v1175
        %v1245 = vpop.f32.mrf.mxu0
        %v1246 = vadd.f32 0.0, %v1245
        %v1247 = vpop.f32.mrf.mxu0
        %1248 = vdwg.mxu0
        %v1249 = vsel %vm834, -1e+09, %v1246
        %v1250 = vsel %vm835, %v1249, -inf
        %1251 = vmax.xlane.f32.xlu0 %v1250
        %v1252 = vpop.xlane.xlu0 %1251
        %v1253 = vsub.f32 %v1249, %v1252
        %v1254 = vmul.f32 %v1253, 1.442695
        %v1255 = vpow.pop %v1254
        %v1256 = vsel %vm835, %v1255, 0.0
        %1257 = vadd.xlane.f32.xlu0 %v1256
        %v1258 = vpop.xlane.xlu0 %1257
        %v1259 = vrcp.pop %v1258
        %v1260 = vmul.f32 %v1255, %v1259
        %1261 = vrot.lane.b32.xlu0 %v828, 112
        %v1262 = vpop.permute.xlu0 %1261
        %v1265 = vsel %vm835, %v1260, 0
        %1267 = vmatprep.subr.mxu0 0.0
        %1268 = vmatpush1.msra.mxu0 0.0
        %1269 = vmatprep.subr.mxu0 0.0
        %1270 = vmatpush1.msra.mxu0 0.0
        %1271 = vmatprep.subr.mxu0 0.0
        %1272 = vmatpush1.msra.mxu0 0.0
        %1273 = vmatprep.subr.mxu0 0.0
        %1274 = vmatpush1.msra.mxu0 0.0
        %1275 = vmatprep.subr.mxu0 0.0
        %1276 = vmatpush1.msra.mxu0 0.0
        %1277 = vmatprep.subr.mxu0 0.0
        %1278 = vmatpush1.msra.mxu0 0.0
        %1279 = vmatprep.subr.mxu0 0.0
        %1280 = vmatpush1.msra.mxu0 0.0
        %1281 = vmatprep.subr.mxu0 0.0
        %1282 = vmatpush1.msra.mxu0 0.0
        %1283 = vmatprep.subr.mxu0 0.0
        %1284 = vmatpush1.msra.mxu0 0.0
        %1285 = vmatprep.subr.mxu0 0.0
        %1286 = vmatpush1.msra.mxu0 0.0
        %1287 = vmatprep.subr.mxu0 0.0
        %1288 = vmatpush1.msra.mxu0 0.0
        %1289 = vmatprep.subr.mxu0 0.0
        %1290 = vmatpush1.msra.mxu0 0.0
        %1291 = vmatprep.subr.mxu0 0.0
        %1292 = vmatpush1.msra.mxu0 0.0
        %1293 = vmatprep.subr.mxu0 0.0
        %1294 = vmatpush1.msra.mxu0 0.0
        %1295 = vmatprep.subr.mxu0 0.0
        %1296 = vmatpush1.msra.mxu0 0.0
        %1297 = vmatprep.subr.mxu0 0.0
        %1298 = vmatpush1.msra.mxu0 %v1262
        %1299 = vmatprep.subr.mxu0 0.0
        %1300 = vmatpush2.msra.mxu0 0.0
        %1301 = vmatprep.subr.mxu0 0.0
        %1302 = vmatpush2.msra.mxu0 0.0
        %1303 = vmatprep.subr.mxu0 0.0
        %1304 = vmatpush2.msra.mxu0 0.0
        %1305 = vmatprep.subr.mxu0 0.0
        %1306 = vmatpush2.msra.mxu0 0.0
        %1307 = vmatprep.subr.mxu0 0.0
        %1308 = vmatpush2.msra.mxu0 0.0
        %1309 = vmatprep.subr.mxu0 0.0
        %1310 = vmatpush2.msra.mxu0 0.0
        %1311 = vmatprep.subr.mxu0 0.0
        %1312 = vmatpush2.msra.mxu0 0.0
        %1313 = vmatprep.subr.mxu0 0.0
        %1314 = vmatpush2.msra.mxu0 0.0
        %1315 = vmatprep.subr.mxu0 0.0
        %1316 = vmatpush2.msra.mxu0 0.0
        %1317 = vmatprep.subr.mxu0 0.0
        %1318 = vmatpush2.msra.mxu0 0.0
        %1319 = vmatprep.subr.mxu0 0.0
        %1320 = vmatpush2.msra.mxu0 0.0
        %1321 = vmatprep.subr.mxu0 0.0
        %1322 = vmatpush2.msra.mxu0 0.0
        %1323 = vmatprep.subr.mxu0 0.0
        %1324 = vmatpush2.msra.mxu0 0.0
        %1325 = vmatprep.subr.mxu0 0.0
        %1326 = vmatpush2.msra.mxu0 0.0
        %1327 = vmatprep.subr.mxu0 0.0
        %1328 = vmatpush2.msra.mxu0 0.0
        %1329 = vmatprep.subr.mxu0 0.0
        %1330 = vmatpush2.msra.mxu0 0.0
        %1331 = vmatprep.mubr.f32.mxu0 0.0
        %1332 = vmatmul.mubr.f32.gmra.mxu0 %v1265
        %v1333 = vpop.f32.mrf.mxu0
        %v1334 = vadd.f32 0.0, %v1333
        %v1335 = vpop.f32.mrf.mxu0
        %1336 = vdwg.mxu0
        %1338 = vrot.lane.b32.xlu0 %v1334, 16
        %v1339 = vpop.permute.xlu0 %1338
        %vm1341 = vcmask 195712
        %1342 = vst.msk [vmem:[#allocation2] sm:$0xff] %vm1341, %v1339
        %1343 = vrot.lane.b32.xlu0 %v831, 104
        %v1344 = vpop.permute.xlu0 %1343
        %1345 = vrot.lane.b32.xlu0 %v743, 104
        %v1346 = vpop.permute.xlu0 %1345
        %v1347 = vsel %vm835, %v1344, 0
        %v1349 = vsel %vm835, %v1346, 0
        %1351 = vmatprep.subr.mxu0 0.0
        %1352 = vmatpush1.xpose.msra.mxu0 0.0
        %1353 = vmatprep.subr.mxu0 0.0
        %1354 = vmatpush1.xpose.msra.mxu0 0.0
        %1355 = vmatprep.subr.mxu0 0.0
        %1356 = vmatpush1.xpose.msra.mxu0 0.0
        %1357 = vmatprep.subr.mxu0 0.0
        %1358 = vmatpush1.xpose.msra.mxu0 0.0
        %1359 = vmatprep.subr.mxu0 0.0
        %1360 = vmatpush1.xpose.msra.mxu0 0.0
        %1361 = vmatprep.subr.mxu0 0.0
        %1362 = vmatpush1.xpose.msra.mxu0 0.0
        %1363 = vmatprep.subr.mxu0 0.0
        %1364 = vmatpush1.xpose.msra.mxu0 0.0
        %1365 = vmatprep.subr.mxu0 0.0
        %1366 = vmatpush1.xpose.msra.mxu0 0.0
        %1367 = vmatprep.subr.mxu0 0.0
        %1368 = vmatpush1.xpose.msra.mxu0 0.0
        %1369 = vmatprep.subr.mxu0 0.0
        %1370 = vmatpush1.xpose.msra.mxu0 0.0
        %1371 = vmatprep.subr.mxu0 0.0
        %1372 = vmatpush1.xpose.msra.mxu0 0.0
        %1373 = vmatprep.subr.mxu0 0.0
        %1374 = vmatpush1.xpose.msra.mxu0 0.0
        %1375 = vmatprep.subr.mxu0 0.0
        %1376 = vmatpush1.xpose.msra.mxu0 0.0
        %1377 = vmatprep.subr.mxu0 0.0
        %1378 = vmatpush1.xpose.msra.mxu0 0.0
        %1379 = vmatprep.subr.mxu0 0.0
        %1380 = vmatpush1.xpose.msra.mxu0 0.0
        %1381 = vmatprep.subr.mxu0 0.0
        %1382 = vmatpush1.xpose.msra.mxu0 %v1349
        %1383 = vmatprep.subr.mxu0 0.0
        %1384 = vmatpush2.xpose.msra.mxu0 0.0
        %1385 = vmatprep.subr.mxu0 0.0
        %1386 = vmatpush2.xpose.msra.mxu0 0.0
        %1387 = vmatprep.subr.mxu0 0.0
        %1388 = vmatpush2.xpose.msra.mxu0 0.0
        %1389 = vmatprep.subr.mxu0 0.0
        %1390 = vmatpush2.xpose.msra.mxu0 0.0
        %1391 = vmatprep.subr.mxu0 0.0
        %1392 = vmatpush2.xpose.msra.mxu0 0.0
        %1393 = vmatprep.subr.mxu0 0.0
        %1394 = vmatpush2.xpose.msra.mxu0 0.0
        %1395 = vmatprep.subr.mxu0 0.0
        %1396 = vmatpush2.xpose.msra.mxu0 0.0
        %1397 = vmatprep.subr.mxu0 0.0
        %1398 = vmatpush2.xpose.msra.mxu0 0.0
        %1399 = vmatprep.subr.mxu0 0.0
        %1400 = vmatpush2.xpose.msra.mxu0 0.0
        %1401 = vmatprep.subr.mxu0 0.0
        %1402 = vmatpush2.xpose.msra.mxu0 0.0
        %1403 = vmatprep.subr.mxu0 0.0
        %1404 = vmatpush2.xpose.msra.mxu0 0.0
        %1405 = vmatprep.subr.mxu0 0.0
        %1406 = vmatpush2.xpose.msra.mxu0 0.0
        %1407 = vmatprep.subr.mxu0 0.0
        %1408 = vmatpush2.xpose.msra.mxu0 0.0
        %1409 = vmatprep.subr.mxu0 0.0
        %1410 = vmatpush2.xpose.msra.mxu0 0.0
        %1411 = vmatprep.subr.mxu0 0.0
        %1412 = vmatpush2.xpose.msra.mxu0 0.0
        %1413 = vmatprep.subr.mxu0 0.0
        %1414 = vmatpush2.xpose.msra.mxu0 0.0
        %1415 = vmatprep.mubr.f32.mxu0 0.0
        %1416 = vmatmul.mubr.f32.gmra.mxu0 %v1347
        %v1417 = vpop.f32.mrf.mxu0
        %v1418 = vadd.f32 0.0, %v1417
        %v1419 = vpop.f32.mrf.mxu0
        %1420 = vdwg.mxu0
        %v1421 = vsel %vm834, -1e+09, %v1418
        %v1422 = vsel %vm835, %v1421, -inf
        %1423 = vmax.xlane.f32.xlu0 %v1422
        %v1424 = vpop.xlane.xlu0 %1423
        %v1425 = vsub.f32 %v1421, %v1424
        %v1426 = vmul.f32 %v1425, 1.442695
        %v1427 = vpow.pop %v1426
        %v1428 = vsel %vm835, %v1427, 0.0
        %1429 = vadd.xlane.f32.xlu0 %v1428
        %v1430 = vpop.xlane.xlu0 %1429
        %v1431 = vrcp.pop %v1430
        %v1432 = vmul.f32 %v1427, %v1431
        %1433 = vrot.lane.b32.xlu0 %v828, 104
        %v1434 = vpop.permute.xlu0 %1433
        %v1437 = vsel %vm835, %v1432, 0
        %1439 = vmatprep.subr.mxu0 0.0
        %1440 = vmatpush1.msra.mxu0 0.0
        %1441 = vmatprep.subr.mxu0 0.0
        %1442 = vmatpush1.msra.mxu0 0.0
        %1443 = vmatprep.subr.mxu0 0.0
        %1444 = vmatpush1.msra.mxu0 0.0
        %1445 = vmatprep.subr.mxu0 0.0
        %1446 = vmatpush1.msra.mxu0 0.0
        %1447 = vmatprep.subr.mxu0 0.0
        %1448 = vmatpush1.msra.mxu0 0.0
        %1449 = vmatprep.subr.mxu0 0.0
        %1450 = vmatpush1.msra.mxu0 0.0
        %1451 = vmatprep.subr.mxu0 0.0
        %1452 = vmatpush1.msra.mxu0 0.0
        %1453 = vmatprep.subr.mxu0 0.0
        %1454 = vmatpush1.msra.mxu0 0.0
        %1455 = vmatprep.subr.mxu0 0.0
        %1456 = vmatpush1.msra.mxu0 0.0
        %1457 = vmatprep.subr.mxu0 0.0
        %1458 = vmatpush1.msra.mxu0 0.0
        %1459 = vmatprep.subr.mxu0 0.0
        %1460 = vmatpush1.msra.mxu0 0.0
        %1461 = vmatprep.subr.mxu0 0.0
        %1462 = vmatpush1.msra.mxu0 0.0
        %1463 = vmatprep.subr.mxu0 0.0
        %1464 = vmatpush1.msra.mxu0 0.0
        %1465 = vmatprep.subr.mxu0 0.0
        %1466 = vmatpush1.msra.mxu0 0.0
        %1467 = vmatprep.subr.mxu0 0.0
        %1468 = vmatpush1.msra.mxu0 0.0
        %1469 = vmatprep.subr.mxu0 0.0
        %1470 = vmatpush1.msra.mxu0 %v1434
        %1471 = vmatprep.subr.mxu0 0.0
        %1472 = vmatpush2.msra.mxu0 0.0
        %1473 = vmatprep.subr.mxu0 0.0
        %1474 = vmatpush2.msra.mxu0 0.0
        %1475 = vmatprep.subr.mxu0 0.0
        %1476 = vmatpush2.msra.mxu0 0.0
        %1477 = vmatprep.subr.mxu0 0.0
        %1478 = vmatpush2.msra.mxu0 0.0
        %1479 = vmatprep.subr.mxu0 0.0
        %1480 = vmatpush2.msra.mxu0 0.0
        %1481 = vmatprep.subr.mxu0 0.0
        %1482 = vmatpush2.msra.mxu0 0.0
        %1483 = vmatprep.subr.mxu0 0.0
        %1484 = vmatpush2.msra.mxu0 0.0
        %1485 = vmatprep.subr.mxu0 0.0
        %1486 = vmatpush2.msra.mxu0 0.0
        %1487 = vmatprep.subr.mxu0 0.0
        %1488 = vmatpush2.msra.mxu0 0.0
        %1489 = vmatprep.subr.mxu0 0.0
        %1490 = vmatpush2.msra.mxu0 0.0
        %1491 = vmatprep.subr.mxu0 0.0
        %1492 = vmatpush2.msra.mxu0 0.0
        %1493 = vmatprep.subr.mxu0 0.0
        %1494 = vmatpush2.msra.mxu0 0.0
        %1495 = vmatprep.subr.mxu0 0.0
        %1496 = vmatpush2.msra.mxu0 0.0
        %1497 = vmatprep.subr.mxu0 0.0
        %1498 = vmatpush2.msra.mxu0 0.0
        %1499 = vmatprep.subr.mxu0 0.0
        %1500 = vmatpush2.msra.mxu0 0.0
        %1501 = vmatprep.subr.mxu0 0.0
        %1502 = vmatpush2.msra.mxu0 0.0
        %1503 = vmatprep.mubr.f32.mxu0 0.0
        %1504 = vmatmul.mubr.f32.gmra.mxu0 %v1437
        %v1505 = vpop.f32.mrf.mxu0
        %v1506 = vadd.f32 0.0, %v1505
        %v1507 = vpop.f32.mrf.mxu0
        %1508 = vdwg.mxu0
        %1510 = vrot.lane.b32.xlu0 %v1506, 24
        %v1511 = vpop.permute.xlu0 %1510
        %vm1513 = vcmask 261312
        %1514 = vst.msk [vmem:[#allocation2] sm:$0xff] %vm1513, %v1511
        %v1515 = vld [vmem:[#allocation2] sm:$0xff]
        %v1516 = vld [vmem:[#allocation14] sm:$0xff]
        %v1517 = vld [vmem:[#allocation14 + $0x8] sm:$0xff]
        %v1518 = vld [vmem:[#allocation14 + $0x10] sm:$0xff]
        %v1519 = vld [vmem:[#allocation14 + $0x18] sm:$0xff]
        %v1520 = vld [vmem:[%s11] sm:$0x1]
        %v1522 = vlaneseq
        %v1523 = vshrl.u32 %v1522, 7
        %v1524 = vsub.s32 0, %v1523
        %v1525 = vrot.slane %v1520, %v1524
        %v1528 = vsel %vm587, %v1515, 0
        %1530 = vmatprep.subr.mxu0 0.0
        %1531 = vmatpush1.msra.mxu0 0.0
        %1532 = vmatprep.subr.mxu0 0.0
        %1533 = vmatpush1.msra.mxu0 0.0
        %1534 = vmatprep.subr.mxu0 0.0
        %1535 = vmatpush1.msra.mxu0 0.0
        %1536 = vmatprep.subr.mxu0 0.0
        %1537 = vmatpush1.msra.mxu0 0.0
        %1538 = vmatprep.subr.mxu0 0.0
        %1539 = vmatpush1.msra.mxu0 0.0
        %1540 = vmatprep.subr.mxu0 0.0
        %1541 = vmatpush1.msra.mxu0 0.0
        %1542 = vmatprep.subr.mxu0 0.0
        %1543 = vmatpush1.msra.mxu0 0.0
        %1544 = vmatprep.subr.mxu0 0.0
        %1545 = vmatpush1.msra.mxu0 0.0
        %1546 = vmatprep.subr.mxu0 0.0
        %1547 = vmatpush1.msra.mxu0 0.0
        %1548 = vmatprep.subr.mxu0 0.0
        %1549 = vmatpush1.msra.mxu0 0.0
        %1550 = vmatprep.subr.mxu0 0.0
        %1551 = vmatpush1.msra.mxu0 0.0
        %1552 = vmatprep.subr.mxu0 0.0
        %1553 = vmatpush1.msra.mxu0 0.0
        %1554 = vmatprep.subr.mxu0 0.0
        %1555 = vmatpush1.msra.mxu0 %v1519
        %1556 = vmatprep.subr.mxu0 0.0
        %1557 = vmatpush1.msra.mxu0 %v1518
        %1558 = vmatprep.subr.mxu0 0.0
        %1559 = vmatpush1.msra.mxu0 %v1517
        %1560 = vmatprep.subr.mxu0 0.0
        %1561 = vmatpush1.msra.mxu0 %v1516
        %1562 = vmatprep.subr.mxu0 0.0
        %1563 = vmatpush2.msra.mxu0 0.0
        %1564 = vmatprep.subr.mxu0 0.0
        %1565 = vmatpush2.msra.mxu0 0.0
        %1566 = vmatprep.subr.mxu0 0.0
        %1567 = vmatpush2.msra.mxu0 0.0
        %1568 = vmatprep.subr.mxu0 0.0
        %1569 = vmatpush2.msra.mxu0 0.0
        %1570 = vmatprep.subr.mxu0 0.0
        %1571 = vmatpush2.msra.mxu0 0.0
        %1572 = vmatprep.subr.mxu0 0.0
        %1573 = vmatpush2.msra.mxu0 0.0
        %1574 = vmatprep.subr.mxu0 0.0
        %1575 = vmatpush2.msra.mxu0 0.0
        %1576 = vmatprep.subr.mxu0 0.0
        %1577 = vmatpush2.msra.mxu0 0.0
        %1578 = vmatprep.subr.mxu0 0.0
        %1579 = vmatpush2.msra.mxu0 0.0
        %1580 = vmatprep.subr.mxu0 0.0
        %1581 = vmatpush2.msra.mxu0 0.0
        %1582 = vmatprep.subr.mxu0 0.0
        %1583 = vmatpush2.msra.mxu0 0.0
        %1584 = vmatprep.subr.mxu0 0.0
        %1585 = vmatpush2.msra.mxu0 0.0
        %1586 = vmatprep.subr.mxu0 0.0
        %1587 = vmatpush2.msra.mxu0 0.0
        %1588 = vmatprep.subr.mxu0 0.0
        %1589 = vmatpush2.msra.mxu0 0.0
        %1590 = vmatprep.subr.mxu0 0.0
        %1591 = vmatpush2.msra.mxu0 0.0
        %1592 = vmatprep.subr.mxu0 0.0
        %1593 = vmatpush2.msra.mxu0 0.0
        %1594 = vmatprep.mubr.f32.mxu0 0.0
        %1595 = vmatmul.mubr.f32.gmra.mxu0 %v1528
        %v1596 = vpop.f32.mrf.mxu0
        %v1597 = vadd.f32 %v1525, %v1596
        %v1598 = vpop.f32.mrf.mxu0
        %1599 = vdwg.mxu0
        %1600 = vst.msk [vmem:[%s570] sm:$0xff] %vm587, %v1597
        %s1601 = sand.u32 %s314, 1
        %s1602 = scalar_lea.sflag [#allocation5], %s1601
        %s1603 = sand.u32 %s314, 1
        %s1604 = smul.addr %s1603, 8
        %s1605 = scalar_lea.vmem [#allocation15], %s1604
        // Predicated region
        $region97: #{tpu_custom_call.1} parent=67 // pred_check
          %p1606 = pneg %p324
        $region98: #{tpu_custom_call.1} parent=67 // pred_check_branch
          %1608 = sbr.rel (%p1606) target = $region100
        $region99: #{tpu_custom_call.1} parent=67 // pred_region
          %s1610 = ssub.s32 128, 128
          %1611 = vsyncadd %s1602, %s1610
          %s1612 = smul.addr %s34, 128
          %s1613 = scalar_lea.hbm %s12, %s1612
          %s1615 = sshll.u32 %s1605, 4
          %s1616 = int_to_ptr.vmem [resolvable:$true] %s1615
          %1618 = dma.vmem_to_hbm [thread:$0]  %s1616, 128, %s1613, %s1602
        $region100: #{tpu_custom_call.1} parent=67 // pred_fallthru
          _
      $region68: #{tpu_custom_call.1} parent=5 // pred_fallthru
        _
      %p1619 = scmp.le.s32.totalorder 2, %s29
      // Predicated region
      $region101: #{tpu_custom_call.1} parent=5 // pred_check
        %p1620 = pneg %p1619
      $region102: #{tpu_custom_call.1} parent=5 // pred_check_branch
        %1622 = sbr.rel (%p1620) target = $region104
      $region103: #{tpu_custom_call.1} parent=5 // pred_region
        %s1623 = ssub.s32 %s29, 2
        // Predicated region
        $region105: #{tpu_custom_call.1} parent=103 // pred_check
          %p1624 = pneg %p330
        $region106: #{tpu_custom_call.1} parent=103 // pred_check_branch
          %1626 = sbr.rel (%p1624) target = $region108
        $region107: #{tpu_custom_call.1} parent=103 // pred_region
          %s1627 = sand.u32 %s315, 1
          %s1628 = scalar_lea.sflag [#allocation5], %s1627
          %s1629 = sand.u32 %s315, 1
          %s1630 = smul.addr %s1629, 8
          %s1631 = scalar_lea.vmem [#allocation15], %s1630
          %1632 = dma.done %s1628, 128
        $region108: #{tpu_custom_call.1} parent=103 // pred_fallthru
          _
      $region104: #{tpu_custom_call.1} parent=5 // pred_fallthru
        _
    $region6: #{tpu_custom_call.1} parent=1 // loop_footer
      %s33 = sadd.s32 1, %s29
    $region7: #{tpu_custom_call.1} parent=1 // loop_footer_branch
      %28 = sbr.rel target = $region3
    $region8: #{tpu_custom_call.1} parent=1 // loop_exit
      _
    %1633 = vsyncpa [#allocation4], 1
    %s1634 = scalar_lea.sflag [#allocation4], 1
    %1635 = vsyncpa %s1634, 1
    %1636 = vsyncpa [#allocation7], 1
    %s1637 = scalar_lea.sflag [#allocation7], 1
    %1638 = vsyncpa %s1637, 1
    %1639 = vsyncpa [#allocation10], 1
    %1640 = vsyncpa [#allocation13], 1
    %1641 = vsyncpa [#allocation5], 1
    %s1642 = scalar_lea.sflag [#allocation5], 1
    %1643 = vsyncpa %s1642, 1

// kernel: tpu_custom_call.1
$region0: #{tpu_custom_call.1}
  #allocation0 [shape = 'u32[]', space=smem, size = 0x4, offset = 0x4, fixed_abs, tag = 'smem constant byte address 0x4 - core index']
  #allocation1 [shape = 'u32[144,128]{1,0:T(1,128)}', space=vmem, size = 0x12000, scoped, tag = 'internal scratch']
  #allocation2 [shape = 'f32[8,32]{1,0:T(8,128)}', space=vmem, size = 0x1000, scoped, tag = 'scratch operand']
  %s0 = inlined_call_operand.hbm [shape: f32[16,32], index: 0, kind: input, shape index: {}]
  %s1 = inlined_call_operand.hbm [shape: f32[16,32], index: 1, kind: input, shape index: {}]
  %s2 = inlined_call_operand.hbm [shape: f32[16,32], index: 2, kind: input, shape index: {}]
  %s3 = inlined_call_operand.vmem [shape: s8[2,8,8], index: 3, kind: input, shape index: {}]
  %s4 = inlined_call_operand.hbm [shape: f32[32,32], index: 4, kind: input, shape index: {}]
  %s5 = inlined_call_operand.vmem [shape: f32[1,32], index: 5, kind: input, shape index: {}]
  %s6 = inlined_call_operand.hbm [shape: f32[32,32], index: 6, kind: input, shape index: {}]
  %s7 = inlined_call_operand.vmem [shape: f32[1,32], index: 7, kind: input, shape index: {}]
  %s8 = inlined_call_operand.hbm [shape: f32[32,32], index: 8, kind: input, shape index: {}]
  %s9 = inlined_call_operand.vmem [shape: f32[1,32], index: 9, kind: input, shape index: {}]
  %s10 = inlined_call_operand.hbm [shape: f32[32,32], index: 10, kind: input, shape index: {}]
  %s11 = inlined_call_operand.vmem [shape: f32[1,32], index: 11, kind: input, shape index: {}]
  %s12 = inlined_call_operand.hbm [shape: f32[16,32], index: 12, kind: output, shape index: {}]
  %s13 = sld [smem:[#allocation0]]
  $region109: #{tpu_custom_call.1} parent=0
    _
  %s15 = ssub.s32 1, %s13
  %s16 = scalar_select 0, %s15, %s13
  $region1: #{tpu_custom_call.1} parent=0
    #allocation3 [shape = 'u8[8192]{0}', space=vmem, size = 0x2000, scoped, tag = 'input window, operand 0']
    #allocation4 [shape = 's32[2]{0}', space=sflag, size = 0x8, scoped, tag = 'scoped memory for tpu_custom_call.1']
    #allocation5 [shape = 's32[2]{0}', space=sflag, size = 0x8, scoped, tag = 'scoped memory for tpu_custom_call.1']
    #allocation6 [shape = 'u8[8192]{0}', space=vmem, size = 0x2000, scoped, tag = 'input window, operand 1']
    #allocation7 [shape = 's32[2]{0}', space=sflag, size = 0x8, scoped, tag = 'scoped memory for tpu_custom_call.1']
    #allocation8 [shape = 'u8[8192]{0}', space=vmem, size = 0x2000, scoped, tag = 'input window, operand 2']
    #allocation9 [shape = 'u8[16384]{0}', space=vmem, size = 0x4000, scoped, tag = 'input window, operand 4, single buffered']
    #allocation10 [shape = 's32[1]{0}', space=sflag, size = 0x4, scoped, tag = 'scoped memory for tpu_custom_call.1']
    #allocation11 [shape = 'u8[16384]{0}', space=vmem, size = 0x4000, scoped, tag = 'input window, operand 6, single buffered']
    #allocation12 [shape = 'u8[16384]{0}', space=vmem, size = 0x4000, scoped, tag = 'input window, operand 8, single buffered']
    #allocation13 [shape = 's32[1]{0}', space=sflag, size = 0x4, scoped, tag = 'scoped memory for tpu_custom_call.1']
    #allocation14 [shape = 'u8[16384]{0}', space=vmem, size = 0x4000, scoped, tag = 'input window, operand 10, single buffered']
    #allocation15 [shape = 'u8[8192]{0}', space=vmem, size = 0x2000, scoped, tag = 'output window, operand 0']
    %17 = vsyncpa [#allocation4], 0
    %s18 = scalar_lea.sflag [#allocation4], 1
    %19 = vsyncpa %s18, 0
    %20 = vsyncpa [#allocation7], 0
    %s21 = scalar_lea.sflag [#allocation7], 1
    %22 = vsyncpa %s21, 0
    %23 = vsyncpa [#allocation10], 0
    %24 = vsyncpa [#allocation13], 0
    %25 = vsyncpa [#allocation5], 0
    %s26 = scalar_lea.sflag [#allocation5], 1
    %27 = vsyncpa %s26, 0
    loop: start=0, step=1, limit=4
    $region2: #{tpu_custom_call.1} parent=1 // loop_pre_header
      _
    $region3: #{tpu_custom_call.1} parent=1 // loop_header
      %s29 = sphi 0, %s33
      %p30 = scmp.ge.s32.totalorder %s29, 4
      %s39 = sphi 0, %s41
      %s42 = sphi 0, %s39
      %s43 = sphi 0, %s42
      %s59 = sphi 0, %s43
      %s65 = sphi 0, %s67
      %s68 = sphi 0, %s65
      %s69 = sphi 0, %s68
      %s85 = sphi 0, %s69
      %s91 = sphi 0, %s93
      %s94 = sphi 0, %s91
      %s95 = sphi 0, %s94
      %s111 = sphi 0, %s95
      %s117 = sphi 0, %s119
      %s120 = sphi 0, %s117
      %s121 = sphi 0, %s120
      %s137 = sphi 0, %s121
      %s141 = sphi 0, %s141
      %s143 = sphi 0, %s141
      %s144 = sphi 0, %s143
      %s158 = sphi 0, %s144
      %s162 = sphi 0, %s162
      %s164 = sphi 0, %s162
      %s165 = sphi 0, %s164
      %s179 = sphi 0, %s165
      %s183 = sphi 0, %s183
      %s185 = sphi 0, %s183
      %s186 = sphi 0, %s185
      %s200 = sphi 0, %s186
      %s204 = sphi 0, %s204
      %s206 = sphi 0, %s204
      %s207 = sphi 0, %s206
      %s221 = sphi 0, %s207
      %s225 = sphi 0, %s225
      %s227 = sphi 0, %s225
      %s228 = sphi 0, %s227
      %s242 = sphi 0, %s228
      %s246 = sphi 0, %s246
      %s248 = sphi 0, %s246
      %s249 = sphi 0, %s248
      %s263 = sphi 0, %s249
      %s267 = sphi 0, %s267
      %s269 = sphi 0, %s267
      %s270 = sphi 0, %s269
      %s284 = sphi 0, %s270
      %s288 = sphi 0, %s288
      %s290 = sphi 0, %s288
      %s291 = sphi 0, %s290
      %s305 = sphi 0, %s291
      %s311 = sphi 0, %s313
      %s314 = sphi 0, %s311
      %s315 = sphi 0, %s314
      %s331 = sphi 0, %s315
    $region4: #{tpu_custom_call.1} parent=1 // loop_header_branch
      %32 = sbr.rel (%p30) target = $region8
    $region5: #{tpu_custom_call.1} parent=1 // loop_body
      %s34 = ssub.s32 %s29, 1
      %s35 = ssub.s32 %s29, 2
      %s36 = sadd.s32 %s29, 1
      %s37 = ssub.s32 %s29, %s36
      %p38 = scmp.eq.s32.totalorder %s37, 0
      %s40 = sadd.s32 %s39, 1
      %s41 = scalar_select %p38, %s39, %s40
      %p44 = pneg %p38
      %p45 = scmp.eq.s32.totalorder %s29, 1
      %p46 = por %p44, %p45
      %p47 = scmp.ne.s32.totalorder %s39, %s42
      %p48 = scmp.eq.s32.totalorder %s29, 0
      %p49 = por %p47, %p48
      %p50 = scmp.ne.s32.totalorder %s39, %s42
      %p51 = scmp.eq.s32.totalorder %s34, 1
      %p52 = por %p50, %p51
      %p53 = scmp.ne.s32.totalorder %s42, %s43
      %p54 = scmp.eq.s32.totalorder %s34, 0
      %p55 = por %p53, %p54
      %p56 = scmp.ne.s32.totalorder %s42, %s43
      %p57 = scmp.eq.s32.totalorder %s35, 1
      %p58 = por %p56, %p57
      %p60 = scmp.ne.s32.totalorder %s43, %s59
      %p61 = scmp.eq.s32.totalorder %s35, 0
      %p62 = por %p60, %p61
      %s63 = ssub.s32 %s29, %s36
      %p64 = scmp.eq.s32.totalorder %s63, 0
      %s66 = sadd.s32 %s65, 1
      %s67 = scalar_select %p64, %s65, %s66
      %p70 = pneg %p64
      %p71 = scmp.eq.s32.totalorder %s29, 1
      %p72 = por %p70, %p71
      %p73 = scmp.ne.s32.totalorder %s65, %s68
      %p74 = scmp.eq.s32.totalorder %s29, 0
      %p75 = por %p73, %p74
      %p76 = scmp.ne.s32.totalorder %s65, %s68
      %p77 = scmp.eq.s32.totalorder %s34, 1
      %p78 = por %p76, %p77
      %p79 = scmp.ne.s32.totalorder %s68, %s69
      %p80 = scmp.eq.s32.totalorder %s34, 0
      %p81 = por %p79, %p80
      %p82 = scmp.ne.s32.totalorder %s68, %s69
      %p83 = scmp.eq.s32.totalorder %s35, 1
      %p84 = por %p82, %p83
      %p86 = scmp.ne.s32.totalorder %s69, %s85
      %p87 = scmp.eq.s32.totalorder %s35, 0
      %p88 = por %p86, %p87
      %s89 = ssub.s32 %s29, %s36
      %p90 = scmp.eq.s32.totalorder %s89, 0
      %s92 = sadd.s32 %s91, 1
      %s93 = scalar_select %p90, %s91, %s92
      %p96 = pneg %p90
      %p97 = scmp.eq.s32.totalorder %s29, 1
      %p98 = por %p96, %p97
      %p99 = scmp.ne.s32.totalorder %s91, %s94
      %p100 = scmp.eq.s32.totalorder %s29, 0
      %p101 = por %p99, %p100
      %p102 = scmp.ne.s32.totalorder %s91, %s94
      %p103 = scmp.eq.s32.totalorder %s34, 1
      %p104 = por %p102, %p103
      %p105 = scmp.ne.s32.totalorder %s94, %s95
      %p106 = scmp.eq.s32.totalorder %s34, 0
      %p107 = por %p105, %p106
      %p108 = scmp.ne.s32.totalorder %s94, %s95
      %p109 = scmp.eq.s32.totalorder %s35, 1
      %p110 = por %p108, %p109
      %p112 = scmp.ne.s32.totalorder %s95, %s111
      %p113 = scmp.eq.s32.totalorder %s35, 0
      %p114 = por %p112, %p113
      %s115 = ssub.s32 %s29, %s36
      %p116 = scmp.eq.s32.totalorder %s115, 0
      %s118 = sadd.s32 %s117, 1
      %s119 = scalar_select %p116, %s117, %s118
      %p122 = pneg %p116
      %p123 = scmp.eq.s32.totalorder %s29, 1
      %p124 = por %p122, %p123
      %p125 = scmp.ne.s32.totalorder %s117, %s120
      %p126 = scmp.eq.s32.totalorder %s29, 0
      %p127 = por %p125, %p126
      %p128 = scmp.ne.s32.totalorder %s117, %s120
      %p129 = scmp.eq.s32.totalorder %s34, 1
      %p130 = por %p128, %p129
      %p131 = scmp.ne.s32.totalorder %s120, %s121
      %p132 = scmp.eq.s32.totalorder %s34, 0
      %p133 = por %p131, %p132
      %p134 = scmp.ne.s32.totalorder %s120, %s121
      %p135 = scmp.eq.s32.totalorder %s35, 1
      %p136 = por %p134, %p135
      %p138 = scmp.ne.s32.totalorder %s121, %s137
      %p139 = scmp.eq.s32.totalorder %s35, 0
      %p140 = por %p138, %p139
      %s142 = sadd.s32 %s141, 1
      %p145 = scmp.eq.s32.totalorder %s29, 1
      %p146 = scmp.ne.s32.totalorder %s141, %s143
      %p147 = scmp.eq.s32.totalorder %s29, 0
      %p148 = por %p146, %p147
      %p149 = scmp.ne.s32.totalorder %s141, %s143
      %p150 = scmp.eq.s32.totalorder %s34, 1
      %p151 = por %p149, %p150
      %p152 = scmp.ne.s32.totalorder %s143, %s144
      %p153 = scmp.eq.s32.totalorder %s34, 0
      %p154 = por %p152, %p153
      %p155 = scmp.ne.s32.totalorder %s143, %s144
      %p156 = scmp.eq.s32.totalorder %s35, 1
      %p157 = por %p155, %p156
      %p159 = scmp.ne.s32.totalorder %s144, %s158
      %p160 = scmp.eq.s32.totalorder %s35, 0
      %p161 = por %p159, %p160
      %s163 = sadd.s32 %s162, 1
      %p166 = scmp.eq.s32.totalorder %s29, 1
      %p167 = scmp.ne.s32.totalorder %s162, %s164
      %p168 = scmp.eq.s32.totalorder %s29, 0
      %p169 = por %p167, %p168
      %p170 = scmp.ne.s32.totalorder %s162, %s164
      %p171 = scmp.eq.s32.totalorder %s34, 1
      %p172 = por %p170, %p171
      %p173 = scmp.ne.s32.totalorder %s164, %s165
      %p174 = scmp.eq.s32.totalorder %s34, 0
      %p175 = por %p173, %p174
      %p176 = scmp.ne.s32.totalorder %s164, %s165
      %p177 = scmp.eq.s32.totalorder %s35, 1
      %p178 = por %p176, %p177
      %p180 = scmp.ne.s32.totalorder %s165, %s179
      %p181 = scmp.eq.s32.totalorder %s35, 0
      %p182 = por %p180, %p181
      %s184 = sadd.s32 %s183, 1
      %p187 = scmp.eq.s32.totalorder %s29, 1
      %p188 = scmp.ne.s32.totalorder %s183, %s185
      %p189 = scmp.eq.s32.totalorder %s29, 0
      %p190 = por %p188, %p189
      %p191 = scmp.ne.s32.totalorder %s183, %s185
      %p192 = scmp.eq.s32.totalorder %s34, 1
      %p193 = por %p191, %p192
      %p194 = scmp.ne.s32.totalorder %s185, %s186
      %p195 = scmp.eq.s32.totalorder %s34, 0
      %p196 = por %p194, %p195
      %p197 = scmp.ne.s32.totalorder %s185, %s186
      %p198 = scmp.eq.s32.totalorder %s35, 1
      %p199 = por %p197, %p198
      %p201 = scmp.ne.s32.totalorder %s186, %s200
      %p202 = scmp.eq.s32.totalorder %s35, 0
      %p203 = por %p201, %p202
      %s205 = sadd.s32 %s204, 1
      %p208 = scmp.eq.s32.totalorder %s29, 1
      %p209 = scmp.ne.s32.totalorder %s204, %s206
      %p210 = scmp.eq.s32.totalorder %s29, 0
      %p211 = por %p209, %p210
      %p212 = scmp.ne.s32.totalorder %s204, %s206
      %p213 = scmp.eq.s32.totalorder %s34, 1
      %p214 = por %p212, %p213
      %p215 = scmp.ne.s32.totalorder %s206, %s207
      %p216 = scmp.eq.s32.totalorder %s34, 0
      %p217 = por %p215, %p216
      %p218 = scmp.ne.s32.totalorder %s206, %s207
      %p219 = scmp.eq.s32.totalorder %s35, 1
      %p220 = por %p218, %p219
      %p222 = scmp.ne.s32.totalorder %s207, %s221
      %p223 = scmp.eq.s32.totalorder %s35, 0
      %p224 = por %p222, %p223
      %s226 = sadd.s32 %s225, 1
      %p229 = scmp.eq.s32.totalorder %s29, 1
      %p230 = scmp.ne.s32.totalorder %s225, %s227
      %p231 = scmp.eq.s32.totalorder %s29, 0
      %p232 = por %p230, %p231
      %p233 = scmp.ne.s32.totalorder %s225, %s227
      %p234 = scmp.eq.s32.totalorder %s34, 1
      %p235 = por %p233, %p234
      %p236 = scmp.ne.s32.totalorder %s227, %s228
      %p237 = scmp.eq.s32.totalorder %s34, 0
      %p238 = por %p236, %p237
      %p239 = scmp.ne.s32.totalorder %s227, %s228
      %p240 = scmp.eq.s32.totalorder %s35, 1
      %p241 = por %p239, %p240
      %p243 = scmp.ne.s32.totalorder %s228, %s242
      %p244 = scmp.eq.s32.totalorder %s35, 0
      %p245 = por %p243, %p244
      %s247 = sadd.s32 %s246, 1
      %p250 = scmp.eq.s32.totalorder %s29, 1
      %p251 = scmp.ne.s32.totalorder %s246, %s248
      %p252 = scmp.eq.s32.totalorder %s29, 0
      %p253 = por %p251, %p252
      %p254 = scmp.ne.s32.totalorder %s246, %s248
      %p255 = scmp.eq.s32.totalorder %s34, 1
      %p256 = por %p254, %p255
      %p257 = scmp.ne.s32.totalorder %s248, %s249
      %p258 = scmp.eq.s32.totalorder %s34, 0
      %p259 = por %p257, %p258
      %p260 = scmp.ne.s32.totalorder %s248, %s249
      %p261 = scmp.eq.s32.totalorder %s35, 1
      %p262 = por %p260, %p261
      %p264 = scmp.ne.s32.totalorder %s249, %s263
      %p265 = scmp.eq.s32.totalorder %s35, 0
      %p266 = por %p264, %p265
      %s268 = sadd.s32 %s267, 1
      %p271 = scmp.eq.s32.totalorder %s29, 1
      %p272 = scmp.ne.s32.totalorder %s267, %s269
      %p273 = scmp.eq.s32.totalorder %s29, 0
      %p274 = por %p272, %p273
      %p275 = scmp.ne.s32.totalorder %s267, %s269
      %p276 = scmp.eq.s32.totalorder %s34, 1
      %p277 = por %p275, %p276
      %p278 = scmp.ne.s32.totalorder %s269, %s270
      %p279 = scmp.eq.s32.totalorder %s34, 0
      %p280 = por %p278, %p279
      %p281 = scmp.ne.s32.totalorder %s269, %s270
      %p282 = scmp.eq.s32.totalorder %s35, 1
      %p283 = por %p281, %p282
      %p285 = scmp.ne.s32.totalorder %s270, %s284
      %p286 = scmp.eq.s32.totalorder %s35, 0
      %p287 = por %p285, %p286
      %s289 = sadd.s32 %s288, 1
      %p292 = scmp.eq.s32.totalorder %s29, 1
      %p293 = scmp.ne.s32.totalorder %s288, %s290
      %p294 = scmp.eq.s32.totalorder %s29, 0
      %p295 = por %p293, %p294
      %p296 = scmp.ne.s32.totalorder %s288, %s290
      %p297 = scmp.eq.s32.totalorder %s34, 1
      %p298 = por %p296, %p297
      %p299 = scmp.ne.s32.totalorder %s290, %s291
      %p300 = scmp.eq.s32.totalorder %s34, 0
      %p301 = por %p299, %p300
      %p302 = scmp.ne.s32.totalorder %s290, %s291
      %p303 = scmp.eq.s32.totalorder %s35, 1
      %p304 = por %p302, %p303
      %p306 = scmp.ne.s32.totalorder %s291, %s305
      %p307 = scmp.eq.s32.totalorder %s35, 0
      %p308 = por %p306, %p307
      %s309 = ssub.s32 %s29, %s36
      %p310 = scmp.eq.s32.totalorder %s309, 0
      %s312 = sadd.s32 %s311, 1
      %s313 = scalar_select %p310, %s311, %s312
      %p316 = pneg %p310
      %p317 = scmp.eq.s32.totalorder %s29, 1
      %p318 = por %p316, %p317
      %p319 = scmp.ne.s32.totalorder %s311, %s314
      %p320 = scmp.eq.s32.totalorder %s29, 0
      %p321 = por %p319, %p320
      %p322 = scmp.ne.s32.totalorder %s311, %s314
      %p323 = scmp.eq.s32.totalorder %s34, 1
      %p324 = por %p322, %p323
      %p325 = scmp.ne.s32.totalorder %s314, %s315
      %p326 = scmp.eq.s32.totalorder %s34, 0
      %p327 = por %p325, %p326
      %p328 = scmp.ne.s32.totalorder %s314, %s315
      %p329 = scmp.eq.s32.totalorder %s35, 1
      %p330 = por %p328, %p329
      %p332 = scmp.ne.s32.totalorder %s315, %s331
      %p333 = scmp.eq.s32.totalorder %s35, 0
      %p334 = por %p332, %p333
      %p335 = scmp.le.s32.totalorder 1, %s29
      %p336 = scmp.lt.s32.totalorder %s29, 3
      %p337 = pnand %p335, %p336
      %p338 = pneg %p337
      // Predicated region
      $region9: #{tpu_custom_call.1} parent=5 // pred_check
        _
      $region10: #{tpu_custom_call.1} parent=5 // pred_check_branch
        %340 = sbr.rel (%p337) target = $region12
      $region11: #{tpu_custom_call.1} parent=5 // pred_region
        %s341 = ssub.s32 %s29, 1
        // Predicated region
        $region13: #{tpu_custom_call.1} parent=11 // pred_check
          %p342 = pneg %p154
        $region14: #{tpu_custom_call.1} parent=11 // pred_check_branch
          %344 = sbr.rel (%p342) target = $region16
        $region15: #{tpu_custom_call.1} parent=11 // pred_region
          %s346 = ssub.s32 512, 512
          %347 = vsyncadd [#allocation10], %s346
          %s348 = sshll.u32 [#allocation9], 4
          %s349 = int_to_ptr.vmem [resolvable:$true] %s348
          %354 = dma.hbm_to_vmem [thread:$0]  %s4, 512, %s349, [#allocation10], 128, 128, 8
        $region16: #{tpu_custom_call.1} parent=11 // pred_fallthru
          _
        // Predicated region
        $region17: #{tpu_custom_call.1} parent=11 // pred_check
          %p355 = pneg %p175
        $region18: #{tpu_custom_call.1} parent=11 // pred_check_branch
          %357 = sbr.rel (%p355) target = $region20
        $region19: #{tpu_custom_call.1} parent=11 // pred_region
          _
        $region20: #{tpu_custom_call.1} parent=11 // pred_fallthru
          _
        // Predicated region
        $region21: #{tpu_custom_call.1} parent=11 // pred_check
          %p358 = pneg %p196
        $region22: #{tpu_custom_call.1} parent=11 // pred_check_branch
          %360 = sbr.rel (%p358) target = $region24
        $region23: #{tpu_custom_call.1} parent=11 // pred_region
          %s362 = ssub.s32 512, 512
          %363 = vsyncadd [#allocation10], %s362
          %s364 = sshll.u32 [#allocation11], 4
          %s365 = int_to_ptr.vmem [resolvable:$true] %s364
          %370 = dma.hbm_to_vmem [thread:$0]  %s6, 512, %s365, [#allocation10], 128, 128, 8
        $region24: #{tpu_custom_call.1} parent=11 // pred_fallthru
          _
        // Predicated region
        $region25: #{tpu_custom_call.1} parent=11 // pred_check
          %p371 = pneg %p217
        $region26: #{tpu_custom_call.1} parent=11 // pred_check_branch
          %373 = sbr.rel (%p371) target = $region28
        $region27: #{tpu_custom_call.1} parent=11 // pred_region
          _
        $region28: #{tpu_custom_call.1} parent=11 // pred_fallthru
          _
        // Predicated region
        $region29: #{tpu_custom_call.1} parent=11 // pred_check
          %p374 = pneg %p238
        $region30: #{tpu_custom_call.1} parent=11 // pred_check_branch
          %376 = sbr.rel (%p374) target = $region32
        $region31: #{tpu_custom_call.1} parent=11 // pred_region
          %s378 = ssub.s32 512, 512
          %379 = vsyncadd [#allocation13], %s378
          %s380 = sshll.u32 [#allocation12], 4
          %s381 = int_to_ptr.vmem [resolvable:$true] %s380
          %386 = dma.hbm_to_vmem [thread:$0]  %s8, 512, %s381, [#allocation13], 128, 128, 8
        $region32: #{tpu_custom_call.1} parent=11 // pred_fallthru
          _
        // Predicated region
        $region33: #{tpu_custom_call.1} parent=11 // pred_check
          %p387 = pneg %p259
        $region34: #{tpu_custom_call.1} parent=11 // pred_check_branch
          %389 = sbr.rel (%p387) target = $region36
        $region35: #{tpu_custom_call.1} parent=11 // pred_region
          _
        $region36: #{tpu_custom_call.1} parent=11 // pred_fallthru
          _
        // Predicated region
        $region37: #{tpu_custom_call.1} parent=11 // pred_check
          %p390 = pneg %p280
        $region38: #{tpu_custom_call.1} parent=11 // pred_check_branch
          %392 = sbr.rel (%p390) target = $region40
        $region39: #{tpu_custom_call.1} parent=11 // pred_region
          %s394 = ssub.s32 512, 512
          %395 = vsyncadd [#allocation13], %s394
          %s396 = sshll.u32 [#allocation14], 4
          %s397 = int_to_ptr.vmem [resolvable:$true] %s396
          %402 = dma.hbm_to_vmem [thread:$0]  %s10, 512, %s397, [#allocation13], 128, 128, 8
        $region40: #{tpu_custom_call.1} parent=11 // pred_fallthru
          _
        // Predicated region
        $region41: #{tpu_custom_call.1} parent=11 // pred_check
          %p403 = pneg %p301
        $region42: #{tpu_custom_call.1} parent=11 // pred_check_branch
          %405 = sbr.rel (%p403) target = $region44
        $region43: #{tpu_custom_call.1} parent=11 // pred_region
          _
        $region44: #{tpu_custom_call.1} parent=11 // pred_fallthru
          _
      $region12: #{tpu_custom_call.1} parent=5 // pred_fallthru
        _
      %p406 = scmp.lt.s32.totalorder %s29, 2
      // Predicated region
      $region45: #{tpu_custom_call.1} parent=5 // pred_check
        %p407 = pneg %p406
      $region46: #{tpu_custom_call.1} parent=5 // pred_check_branch
        %409 = sbr.rel (%p407) target = $region48
      $region47: #{tpu_custom_call.1} parent=5 // pred_region
        // Predicated region
        $region49: #{tpu_custom_call.1} parent=47 // pred_check
          %p410 = pneg %p49
        $region50: #{tpu_custom_call.1} parent=47 // pred_check_branch
          %412 = sbr.rel (%p410) target = $region52
        $region51: #{tpu_custom_call.1} parent=47 // pred_region
          %s413 = sand.u32 %s39, 1
          %s414 = scalar_lea.sflag [#allocation4], %s413
          %s415 = sand.u32 %s39, 1
          %s416 = smul.addr %s415, 8
          %s417 = scalar_lea.vmem [#allocation3], %s416
          %s419 = ssub.s32 128, 128
          %420 = vsyncadd %s414, %s419
          %s421 = smul.addr %s29, 128
          %s422 = scalar_lea.hbm %s0, %s421
          %s424 = sshll.u32 %s417, 4
          %s425 = int_to_ptr.vmem [resolvable:$true] %s424
          %427 = dma.hbm_to_vmem [thread:$0]  %s422, 128, %s425, %s414
        $region52: #{tpu_custom_call.1} parent=47 // pred_fallthru
          _
        // Predicated region
        $region53: #{tpu_custom_call.1} parent=47 // pred_check
          %p428 = pneg %p75
        $region54: #{tpu_custom_call.1} parent=47 // pred_check_branch
          %430 = sbr.rel (%p428) target = $region56
        $region55: #{tpu_custom_call.1} parent=47 // pred_region
          %s431 = sand.u32 %s29, 1
          %s432 = scalar_lea.sflag [#allocation7], %s431
          %s433 = sand.u32 %s65, 1
          %s434 = smul.addr %s433, 8
          %s435 = scalar_lea.vmem [#allocation6], %s434
          %s437 = ssub.s32 128, 128
          %438 = vsyncadd %s432, %s437
          %s439 = smul.addr %s29, 128
          %s440 = scalar_lea.hbm %s1, %s439
          %s442 = sshll.u32 %s435, 4
          %s443 = int_to_ptr.vmem [resolvable:$true] %s442
          %445 = dma.hbm_to_vmem [thread:$0]  %s440, 128, %s443, %s432
        $region56: #{tpu_custom_call.1} parent=47 // pred_fallthru
          _
        // Predicated region
        $region57: #{tpu_custom_call.1} parent=47 // pred_check
          %p446 = pneg %p101
        $region58: #{tpu_custom_call.1} parent=47 // pred_check_branch
          %448 = sbr.rel (%p446) target = $region60
        $region59: #{tpu_custom_call.1} parent=47 // pred_region
          %s449 = sand.u32 %s29, 1
          %s450 = scalar_lea.sflag [#allocation7], %s449
          %s451 = sand.u32 %s91, 1
          %s452 = smul.addr %s451, 8
          %s453 = scalar_lea.vmem [#allocation8], %s452
          %s455 = ssub.s32 128, 128
          %456 = vsyncadd %s450, %s455
          %s457 = smul.addr %s29, 128
          %s458 = scalar_lea.hbm %s2, %s457
          %s460 = sshll.u32 %s453, 4
          %s461 = int_to_ptr.vmem [resolvable:$true] %s460
          %463 = dma.hbm_to_vmem [thread:$0]  %s458, 128, %s461, %s450
        $region60: #{tpu_custom_call.1} parent=47 // pred_fallthru
          _
        // Predicated region
        $region61: #{tpu_custom_call.1} parent=47 // pred_check
          %p464 = pneg %p127
        $region62: #{tpu_custom_call.1} parent=47 // pred_check_branch
          %466 = sbr.rel (%p464) target = $region64
        $region63: #{tpu_custom_call.1} parent=47 // pred_region
          %p467 = scmp.lt.s32.totalorder %s29, 1
          %s468 = scalar_select %p467, %s29, 1
          %s469 = smul.addr %s468, 2
          %s470 = scalar_lea.vmem %s3, %s469
        $region64: #{tpu_custom_call.1} parent=47 // pred_fallthru
          _
      $region48: #{tpu_custom_call.1} parent=5 // pred_fallthru
        _
      %p471 = scmp.le.s32.totalorder 1, %s29
      %p472 = scmp.lt.s32.totalorder %s29, 3
      %p473 = pnand %p471, %p472
      %p474 = pneg %p473
      // Predicated region
      $region65: #{tpu_custom_call.1} parent=5 // pred_check
        _
      $region66: #{tpu_custom_call.1} parent=5 // pred_check_branch
        %476 = sbr.rel (%p473) target = $region68
      $region67: #{tpu_custom_call.1} parent=5 // pred_region
        %s477 = ssub.s32 %s29, 1
        %s478 = sand.u32 %s42, 1
        %s479 = scalar_lea.sflag [#allocation4], %s478
        %s480 = sand.u32 %s42, 1
        %s481 = smul.addr %s480, 8
        %s482 = scalar_lea.vmem [#allocation3], %s481
        // Predicated region
        $region69: #{tpu_custom_call.1} parent=67 // pred_check
          %p483 = pneg %p55
        $region70: #{tpu_custom_call.1} parent=67 // pred_check_branch
          %485 = sbr.rel (%p483) target = $region72
        $region71: #{tpu_custom_call.1} parent=67 // pred_region
          %486 = dma.done %s479, 128
        $region72: #{tpu_custom_call.1} parent=67 // pred_fallthru
          _
        %s487 = sand.u32 %s34, 1
        %s488 = scalar_lea.sflag [#allocation7], %s487
        %s489 = sand.u32 %s68, 1
        %s490 = smul.addr %s489, 8
        %s491 = scalar_lea.vmem [#allocation6], %s490
        // Predicated region
        $region73: #{tpu_custom_call.1} parent=67 // pred_check
          %p492 = pneg %p81
        $region74: #{tpu_custom_call.1} parent=67 // pred_check_branch
          %494 = sbr.rel (%p492) target = $region76
        $region75: #{tpu_custom_call.1} parent=67 // pred_region
          %495 = dma.done %s488, 128
        $region76: #{tpu_custom_call.1} parent=67 // pred_fallthru
          _
        %s496 = sand.u32 %s34, 1
        %s497 = scalar_lea.sflag [#allocation7], %s496
        %s498 = sand.u32 %s94, 1
        %s499 = smul.addr %s498, 8
        %s500 = scalar_lea.vmem [#allocation8], %s499
        // Predicated region
        $region77: #{tpu_custom_call.1} parent=67 // pred_check
          %p501 = pneg %p107
        $region78: #{tpu_custom_call.1} parent=67 // pred_check_branch
          %503 = sbr.rel (%p501) target = $region80
        $region79: #{tpu_custom_call.1} parent=67 // pred_region
          %504 = dma.done %s497, 128
        $region80: #{tpu_custom_call.1} parent=67 // pred_fallthru
          _
        // Predicated region
        $region81: #{tpu_custom_call.1} parent=67 // pred_check
          %p505 = pneg %p154
        $region82: #{tpu_custom_call.1} parent=67 // pred_check_branch
          %507 = sbr.rel (%p505) target = $region84
        $region83: #{tpu_custom_call.1} parent=67 // pred_region
          %508 = dma.done [#allocation10], 512
        $region84: #{tpu_custom_call.1} parent=67 // pred_fallthru
          _
        // Predicated region
        $region85: #{tpu_custom_call.1} parent=67 // pred_check
          %p509 = pneg %p196
        $region86: #{tpu_custom_call.1} parent=67 // pred_check_branch
          %511 = sbr.rel (%p509) target = $region88
        $region87: #{tpu_custom_call.1} parent=67 // pred_region
          %512 = dma.done [#allocation10], 512
        $region88: #{tpu_custom_call.1} parent=67 // pred_fallthru
          _
        // Predicated region
        $region89: #{tpu_custom_call.1} parent=67 // pred_check
          %p513 = pneg %p238
        $region90: #{tpu_custom_call.1} parent=67 // pred_check_branch
          %515 = sbr.rel (%p513) target = $region92
        $region91: #{tpu_custom_call.1} parent=67 // pred_region
          %516 = dma.done [#allocation13], 512
        $region92: #{tpu_custom_call.1} parent=67 // pred_fallthru
          _
        // Predicated region
        $region93: #{tpu_custom_call.1} parent=67 // pred_check
          %p517 = pneg %p280
        $region94: #{tpu_custom_call.1} parent=67 // pred_check_branch
          %519 = sbr.rel (%p517) target = $region96
        $region95: #{tpu_custom_call.1} parent=67 // pred_region
          %520 = dma.done [#allocation13], 512
        $region96: #{tpu_custom_call.1} parent=67 // pred_fallthru
          _
        %s521 = sand.u32 %s42, 1
        %s522 = scalar_lea.sflag [#allocation4], %s521
        %s523 = sand.u32 %s42, 1
        %s524 = smul.addr %s523, 8
        %s525 = scalar_lea.vmem [#allocation3], %s524
        %p526 = pneg %p55
        %p527 = pneg %p52
        %s528 = sand.u32 %s34, 1
        %s529 = scalar_lea.sflag [#allocation7], %s528
        %s530 = sand.u32 %s68, 1
        %s531 = smul.addr %s530, 8
        %s532 = scalar_lea.vmem [#allocation6], %s531
        %p533 = pneg %p81
        %p534 = pneg %p78
        %s535 = sand.u32 %s34, 1
        %s536 = scalar_lea.sflag [#allocation7], %s535
        %s537 = sand.u32 %s94, 1
        %s538 = smul.addr %s537, 8
        %s539 = scalar_lea.vmem [#allocation8], %s538
        %p540 = pneg %p107
        %p541 = pneg %p104
        %p542 = scmp.lt.s32.totalorder %s34, 1
        %s543 = scalar_select %p542, %s34, 1
        %s544 = smul.addr %s543, 2
        %s545 = scalar_lea.vmem %s3, %s544
        %p546 = pneg %p133
        %p547 = pneg %p130
        %p548 = pneg %p154
        %p549 = pneg %p151
        %p550 = pneg %p175
        %p551 = pneg %p172
        %p552 = pneg %p196
        %p553 = pneg %p193
        %p554 = pneg %p217
        %p555 = pneg %p214
        %p556 = pneg %p238
        %p557 = pneg %p235
        %p558 = pneg %p259
        %p559 = pneg %p256
        %p560 = pneg %p280
        %p561 = pneg %p277
        %p562 = pneg %p301
        %p563 = pneg %p298
        %p564 = pneg %p327
        %p565 = pneg %p324
        %s566 = sand.u32 %s314, 1
        %s567 = scalar_lea.sflag [#allocation5], %s566
        %s568 = sand.u32 %s314, 1
        %s569 = smul.addr %s568, 8
        %s570 = scalar_lea.vmem [#allocation15], %s569
        %p571 = scmp.lt.s32.totalorder %s34, 1
        %s572 = scalar_select %p571, %s34, 1
        %s573 = smul.addr %s572, 2
        %s574 = scalar_lea.vmem %s3, %s573
        %v575 = vld [vmem:[%s482] sm:$0xff]
        %v576 = vld [vmem:[#allocation9] sm:$0xff]
        %v577 = vld [vmem:[#allocation9 + $0x8] sm:$0xff]
        %v578 = vld [vmem:[#allocation9 + $0x10] sm:$0xff]
        %v579 = vld [vmem:[#allocation9 + $0x18] sm:$0xff]
        %v580 = vld [vmem:[%s5] sm:$0x1]
        %v582 = vlaneseq
        %v583 = vshrl.u32 %v582, 7
        %v584 = vsub.s32 0, %v583
        %v585 = vrot.slane %v580, %v584
        %vm587 = vcmask 261120
        %v589 = vsel %vm587, %v575, 0
        %591 = vmatprep.subr.mxu0 0.0
        %592 = vmatpush1.msra.mxu0 0.0
        %593 = vmatprep.subr.mxu0 0.0
        %594 = vmatpush1.msra.mxu0 0.0
        %595 = vmatprep.subr.mxu0 0.0
        %596 = vmatpush1.msra.mxu0 0.0
        %597 = vmatprep.subr.mxu0 0.0
        %598 = vmatpush1.msra.mxu0 0.0
        %599 = vmatprep.subr.mxu0 0.0
        %600 = vmatpush1.msra.mxu0 0.0
        %601 = vmatprep.subr.mxu0 0.0
        %602 = vmatpush1.msra.mxu0 0.0
        %603 = vmatprep.subr.mxu0 0.0
        %604 = vmatpush1.msra.mxu0 0.0
        %605 = vmatprep.subr.mxu0 0.0
        %606 = vmatpush1.msra.mxu0 0.0
        %607 = vmatprep.subr.mxu0 0.0
        %608 = vmatpush1.msra.mxu0 0.0
        %609 = vmatprep.subr.mxu0 0.0
        %610 = vmatpush1.msra.mxu0 0.0
        %611 = vmatprep.subr.mxu0 0.0
        %612 = vmatpush1.msra.mxu0 0.0
        %613 = vmatprep.subr.mxu0 0.0
        %614 = vmatpush1.msra.mxu0 0.0
        %615 = vmatprep.subr.mxu0 0.0
        %616 = vmatpush1.msra.mxu0 %v579
        %617 = vmatprep.subr.mxu0 0.0
        %618 = vmatpush1.msra.mxu0 %v578
        %619 = vmatprep.subr.mxu0 0.0
        %620 = vmatpush1.msra.mxu0 %v577
        %621 = vmatprep.subr.mxu0 0.0
        %622 = vmatpush1.msra.mxu0 %v576
        %623 = vmatprep.subr.mxu0 0.0
        %624 = vmatpush2.msra.mxu0 0.0
        %625 = vmatprep.subr.mxu0 0.0
        %626 = vmatpush2.msra.mxu0 0.0
        %627 = vmatprep.subr.mxu0 0.0
        %628 = vmatpush2.msra.mxu0 0.0
        %629 = vmatprep.subr.mxu0 0.0
        %630 = vmatpush2.msra.mxu0 0.0
        %631 = vmatprep.subr.mxu0 0.0
        %632 = vmatpush2.msra.mxu0 0.0
        %633 = vmatprep.subr.mxu0 0.0
        %634 = vmatpush2.msra.mxu0 0.0
        %635 = vmatprep.subr.mxu0 0.0
        %636 = vmatpush2.msra.mxu0 0.0
        %637 = vmatprep.subr.mxu0 0.0
        %638 = vmatpush2.msra.mxu0 0.0
        %639 = vmatprep.subr.mxu0 0.0
        %640 = vmatpush2.msra.mxu0 0.0
        %641 = vmatprep.subr.mxu0 0.0
        %642 = vmatpush2.msra.mxu0 0.0
        %643 = vmatprep.subr.mxu0 0.0
        %644 = vmatpush2.msra.mxu0 0.0
        %645 = vmatprep.subr.mxu0 0.0
        %646 = vmatpush2.msra.mxu0 0.0
        %647 = vmatprep.subr.mxu0 0.0
        %648 = vmatpush2.msra.mxu0 0.0
        %649 = vmatprep.subr.mxu0 0.0
        %650 = vmatpush2.msra.mxu0 0.0
        %651 = vmatprep.subr.mxu0 0.0
        %652 = vmatpush2.msra.mxu0 0.0
        %653 = vmatprep.subr.mxu0 0.0
        %654 = vmatpush2.msra.mxu0 0.0
        %655 = vmatprep.mubr.f32.mxu0 0.0
        %656 = vmatmul.mubr.f32.gmra.mxu0 %v589
        %v657 = vpop.f32.mrf.mxu0
        %v658 = vadd.f32 %v585, %v657
        %v659 = vpop.f32.mrf.mxu0
        %660 = vdwg.mxu0
        %v661 = vld [vmem:[%s491] sm:$0xff]
        %v662 = vld [vmem:[#allocation11] sm:$0xff]
        %v663 = vld [vmem:[#allocation11 + $0x8] sm:$0xff]
        %v664 = vld [vmem:[#allocation11 + $0x10] sm:$0xff]
        %v665 = vld [vmem:[#allocation11 + $0x18] sm:$0xff]
        %v666 = vld [vmem:[%s7] sm:$0x1]
        %v668 = vlaneseq
        %v669 = vshrl.u32 %v668, 7
        %v670 = vsub.s32 0, %v669
        %v671 = vrot.slane %v666, %v670
        %v674 = vsel %vm587, %v661, 0
        %676 = vmatprep.subr.mxu0 0.0
        %677 = vmatpush1.msra.mxu0 0.0
        %678 = vmatprep.subr.mxu0 0.0
        %679 = vmatpush1.msra.mxu0 0.0
        %680 = vmatprep.subr.mxu0 0.0
        %681 = vmatpush1.msra.mxu0 0.0
        %682 = vmatprep.subr.mxu0 0.0
        %683 = vmatpush1.msra.mxu0 0.0
        %684 = vmatprep.subr.mxu0 0.0
        %685 = vmatpush1.msra.mxu0 0.0
        %686 = vmatprep.subr.mxu0 0.0
        %687 = vmatpush1.msra.mxu0 0.0
        %688 = vmatprep.subr.mxu0 0.0
        %689 = vmatpush1.msra.mxu0 0.0
        %690 = vmatprep.subr.mxu0 0.0
        %691 = vmatpush1.msra.mxu0 0.0
        %692 = vmatprep.subr.mxu0 0.0
        %693 = vmatpush1.msra.mxu0 0.0
        %694 = vmatprep.subr.mxu0 0.0
        %695 = vmatpush1.msra.mxu0 0.0
        %696 = vmatprep.subr.mxu0 0.0
        %697 = vmatpush1.msra.mxu0 0.0
        %698 = vmatprep.subr.mxu0 0.0
        %699 = vmatpush1.msra.mxu0 0.0
        %700 = vmatprep.subr.mxu0 0.0
        %701 = vmatpush1.msra.mxu0 %v665
        %702 = vmatprep.subr.mxu0 0.0
        %703 = vmatpush1.msra.mxu0 %v664
        %704 = vmatprep.subr.mxu0 0.0
        %705 = vmatpush1.msra.mxu0 %v663
        %706 = vmatprep.subr.mxu0 0.0
        %707 = vmatpush1.msra.mxu0 %v662
        %708 = vmatprep.subr.mxu0 0.0
        %709 = vmatpush2.msra.mxu0 0.0
        %710 = vmatprep.subr.mxu0 0.0
        %711 = vmatpush2.msra.mxu0 0.0
        %712 = vmatprep.subr.mxu0 0.0
        %713 = vmatpush2.msra.mxu0 0.0
        %714 = vmatprep.subr.mxu0 0.0
        %715 = vmatpush2.msra.mxu0 0.0
        %716 = vmatprep.subr.mxu0 0.0
        %717 = vmatpush2.msra.mxu0 0.0
        %718 = vmatprep.subr.mxu0 0.0
        %719 = vmatpush2.msra.mxu0 0.0
        %720 = vmatprep.subr.mxu0 0.0
        %721 = vmatpush2.msra.mxu0 0.0
        %722 = vmatprep.subr.mxu0 0.0
        %723 = vmatpush2.msra.mxu0 0.0
        %724 = vmatprep.subr.mxu0 0.0
        %725 = vmatpush2.msra.mxu0 0.0
        %726 = vmatprep.subr.mxu0 0.0
        %727 = vmatpush2.msra.mxu0 0.0
        %728 = vmatprep.subr.mxu0 0.0
        %729 = vmatpush2.msra.mxu0 0.0
        %730 = vmatprep.subr.mxu0 0.0
        %731 = vmatpush2.msra.mxu0 0.0
        %732 = vmatprep.subr.mxu0 0.0
        %733 = vmatpush2.msra.mxu0 0.0
        %734 = vmatprep.subr.mxu0 0.0
        %735 = vmatpush2.msra.mxu0 0.0
        %736 = vmatprep.subr.mxu0 0.0
        %737 = vmatpush2.msra.mxu0 0.0
        %738 = vmatprep.subr.mxu0 0.0
        %739 = vmatpush2.msra.mxu0 0.0
        %740 = vmatprep.mubr.f32.mxu0 0.0
        %741 = vmatmul.mubr.f32.gmra.mxu0 %v674
        %v742 = vpop.f32.mrf.mxu0
        %v743 = vadd.f32 %v671, %v742
        %v744 = vpop.f32.mrf.mxu0
        %745 = vdwg.mxu0
        %v746 = vld [vmem:[%s500] sm:$0xff]
        %v747 = vld [vmem:[#allocation12] sm:$0xff]
        %v748 = vld [vmem:[#allocation12 + $0x8] sm:$0xff]
        %v749 = vld [vmem:[#allocation12 + $0x10] sm:$0xff]
        %v750 = vld [vmem:[#allocation12 + $0x18] sm:$0xff]
        %v751 = vld [vmem:[%s9] sm:$0x1]
        %v753 = vlaneseq
        %v754 = vshrl.u32 %v753, 7
        %v755 = vsub.s32 0, %v754
        %v756 = vrot.slane %v751, %v755
        %v759 = vsel %vm587, %v746, 0
        %761 = vmatprep.subr.mxu0 0.0
        %762 = vmatpush1.msra.mxu0 0.0
        %763 = vmatprep.subr.mxu0 0.0
        %764 = vmatpush1.msra.mxu0 0.0
        %765 = vmatprep.subr.mxu0 0.0
        %766 = vmatpush1.msra.mxu0 0.0
        %767 = vmatprep.subr.mxu0 0.0
        %768 = vmatpush1.msra.mxu0 0.0
        %769 = vmatprep.subr.mxu0 0.0
        %770 = vmatpush1.msra.mxu0 0.0
        %771 = vmatprep.subr.mxu0 0.0
        %772 = vmatpush1.msra.mxu0 0.0
        %773 = vmatprep.subr.mxu0 0.0
        %774 = vmatpush1.msra.mxu0 0.0
        %775 = vmatprep.subr.mxu0 0.0
        %776 = vmatpush1.msra.mxu0 0.0
        %777 = vmatprep.subr.mxu0 0.0
        %778 = vmatpush1.msra.mxu0 0.0
        %779 = vmatprep.subr.mxu0 0.0
        %780 = vmatpush1.msra.mxu0 0.0
        %781 = vmatprep.subr.mxu0 0.0
        %782 = vmatpush1.msra.mxu0 0.0
        %783 = vmatprep.subr.mxu0 0.0
        %784 = vmatpush1.msra.mxu0 0.0
        %785 = vmatprep.subr.mxu0 0.0
        %786 = vmatpush1.msra.mxu0 %v750
        %787 = vmatprep.subr.mxu0 0.0
        %788 = vmatpush1.msra.mxu0 %v749
        %789 = vmatprep.subr.mxu0 0.0
        %790 = vmatpush1.msra.mxu0 %v748
        %791 = vmatprep.subr.mxu0 0.0
        %792 = vmatpush1.msra.mxu0 %v747
        %793 = vmatprep.subr.mxu0 0.0
        %794 = vmatpush2.msra.mxu0 0.0
        %795 = vmatprep.subr.mxu0 0.0
        %796 = vmatpush2.msra.mxu0 0.0
        %797 = vmatprep.subr.mxu0 0.0
        %798 = vmatpush2.msra.mxu0 0.0
        %799 = vmatprep.subr.mxu0 0.0
        %800 = vmatpush2.msra.mxu0 0.0
        %801 = vmatprep.subr.mxu0 0.0
        %802 = vmatpush2.msra.mxu0 0.0
        %803 = vmatprep.subr.mxu0 0.0
        %804 = vmatpush2.msra.mxu0 0.0
        %805 = vmatprep.subr.mxu0 0.0
        %806 = vmatpush2.msra.mxu0 0.0
        %807 = vmatprep.subr.mxu0 0.0
        %808 = vmatpush2.msra.mxu0 0.0
        %809 = vmatprep.subr.mxu0 0.0
        %810 = vmatpush2.msra.mxu0 0.0
        %811 = vmatprep.subr.mxu0 0.0
        %812 = vmatpush2.msra.mxu0 0.0
        %813 = vmatprep.subr.mxu0 0.0
        %814 = vmatpush2.msra.mxu0 0.0
        %815 = vmatprep.subr.mxu0 0.0
        %816 = vmatpush2.msra.mxu0 0.0
        %817 = vmatprep.subr.mxu0 0.0
        %818 = vmatpush2.msra.mxu0 0.0
        %819 = vmatprep.subr.mxu0 0.0
        %820 = vmatpush2.msra.mxu0 0.0
        %821 = vmatprep.subr.mxu0 0.0
        %822 = vmatpush2.msra.mxu0 0.0
        %823 = vmatprep.subr.mxu0 0.0
        %824 = vmatpush2.msra.mxu0 0.0
        %825 = vmatprep.mubr.f32.mxu0 0.0
        %826 = vmatmul.mubr.f32.gmra.mxu0 %v759
        %v827 = vpop.f32.mrf.mxu0
        %v828 = vadd.f32 %v756, %v827
        %v829 = vpop.f32.mrf.mxu0
        %830 = vdwg.mxu0
        %v831 = vmul.f32 %v658, 0.35355338
        %v832 = vld [vmem:[%s574] sm:$0x3]
        %v833 = vunpack.c.0.s8 %v832
        %vm834 = vcmp.eq.s32.totalorder %v833, 0
        %vm835 = vcmask 64512
        %v837 = vsel %vm835, %v831, 0
        %v840 = vsel %vm835, %v743, 0
        %842 = vmatprep.subr.mxu0 0.0
        %843 = vmatpush1.xpose.msra.mxu0 0.0
        %844 = vmatprep.subr.mxu0 0.0
        %845 = vmatpush1.xpose.msra.mxu0 0.0
        %846 = vmatprep.subr.mxu0 0.0
        %847 = vmatpush1.xpose.msra.mxu0 0.0
        %848 = vmatprep.subr.mxu0 0.0
        %849 = vmatpush1.xpose.msra.mxu0 0.0
        %850 = vmatprep.subr.mxu0 0.0
        %851 = vmatpush1.xpose.msra.mxu0 0.0
        %852 = vmatprep.subr.mxu0 0.0
        %853 = vmatpush1.xpose.msra.mxu0 0.0
        %854 = vmatprep.subr.mxu0 0.0
        %855 = vmatpush1.xpose.msra.mxu0 0.0
        %856 = vmatprep.subr.mxu0 0.0
        %857 = vmatpush1.xpose.msra.mxu0 0.0
        %858 = vmatprep.subr.mxu0 0.0
        %859 = vmatpush1.xpose.msra.mxu0 0.0
        %860 = vmatprep.subr.mxu0 0.0
        %861 = vmatpush1.xpose.msra.mxu0 0.0
        %862 = vmatprep.subr.mxu0 0.0
        %863 = vmatpush1.xpose.msra.mxu0 0.0
        %864 = vmatprep.subr.mxu0 0.0
        %865 = vmatpush1.xpose.msra.mxu0 0.0
        %866 = vmatprep.subr.mxu0 0.0
        %867 = vmatpush1.xpose.msra.mxu0 0.0
        %868 = vmatprep.subr.mxu0 0.0
        %869 = vmatpush1.xpose.msra.mxu0 0.0
        %870 = vmatprep.subr.mxu0 0.0
        %871 = vmatpush1.xpose.msra.mxu0 0.0
        %872 = vmatprep.subr.mxu0 0.0
        %873 = vmatpush1.xpose.msra.mxu0 %v840
        %874 = vmatprep.subr.mxu0 0.0
        %875 = vmatpush2.xpose.msra.mxu0 0.0
        %876 = vmatprep.subr.mxu0 0.0
        %877 = vmatpush2.xpose.msra.mxu0 0.0
        %878 = vmatprep.subr.mxu0 0.0
        %879 = vmatpush2.xpose.msra.mxu0 0.0
        %880 = vmatprep.subr.mxu0 0.0
        %881 = vmatpush2.xpose.msra.mxu0 0.0
        %882 = vmatprep.subr.mxu0 0.0
        %883 = vmatpush2.xpose.msra.mxu0 0.0
        %884 = vmatprep.subr.mxu0 0.0
        %885 = vmatpush2.xpose.msra.mxu0 0.0
        %886 = vmatprep.subr.mxu0 0.0
        %887 = vmatpush2.xpose.msra.mxu0 0.0
        %888 = vmatprep.subr.mxu0 0.0
        %889 = vmatpush2.xpose.msra.mxu0 0.0
        %890 = vmatprep.subr.mxu0 0.0
        %891 = vmatpush2.xpose.msra.mxu0 0.0
        %892 = vmatprep.subr.mxu0 0.0
        %893 = vmatpush2.xpose.msra.mxu0 0.0
        %894 = vmatprep.subr.mxu0 0.0
        %895 = vmatpush2.xpose.msra.mxu0 0.0
        %896 = vmatprep.subr.mxu0 0.0
        %897 = vmatpush2.xpose.msra.mxu0 0.0
        %898 = vmatprep.subr.mxu0 0.0
        %899 = vmatpush2.xpose.msra.mxu0 0.0
        %900 = vmatprep.subr.mxu0 0.0
        %901 = vmatpush2.xpose.msra.mxu0 0.0
        %902 = vmatprep.subr.mxu0 0.0
        %903 = vmatpush2.xpose.msra.mxu0 0.0
        %904 = vmatprep.subr.mxu0 0.0
        %905 = vmatpush2.xpose.msra.mxu0 0.0
        %906 = vmatprep.mubr.f32.mxu0 0.0
        %907 = vmatmul.mubr.f32.gmra.mxu0 %v837
        %v908 = vpop.f32.mrf.mxu0
        %v909 = vadd.f32 0.0, %v908
        %v910 = vpop.f32.mrf.mxu0
        %911 = vdwg.mxu0
        %v912 = vsel %vm834, -1e+09, %v909
        %v913 = vsel %vm835, %v912, -inf
        %914 = vmax.xlane.f32.xlu0 %v913
        %v915 = vpop.xlane.xlu0 %914
        %v916 = vsub.f32 %v912, %v915
        %v917 = vmul.f32 %v916, 1.442695
        %v918 = vpow.pop %v917
        %v919 = vsel %vm835, %v918, 0.0
        %920 = vadd.xlane.f32.xlu0 %v919
        %v921 = vpop.xlane.xlu0 %920
        %v922 = vrcp.pop %v921
        %v923 = vmul.f32 %v918, %v922
        %v925 = vsel %vm835, %v923, 0
        %927 = vmatprep.subr.mxu0 0.0
        %928 = vmatpush1.msra.mxu0 0.0
        %929 = vmatprep.subr.mxu0 0.0
        %930 = vmatpush1.msra.mxu0 0.0
        %931 = vmatprep.subr.mxu0 0.0
        %932 = vmatpush1.msra.mxu0 0.0
        %933 = vmatprep.subr.mxu0 0.0
        %934 = vmatpush1.msra.mxu0 0.0
        %935 = vmatprep.subr.mxu0 0.0
        %936 = vmatpush1.msra.mxu0 0.0
        %937 = vmatprep.subr.mxu0 0.0
        %938 = vmatpush1.msra.mxu0 0.0
        %939 = vmatprep.subr.mxu0 0.0
        %940 = vmatpush1.msra.mxu0 0.0
        %941 = vmatprep.subr.mxu0 0.0
        %942 = vmatpush1.msra.mxu0 0.0
        %943 = vmatprep.subr.mxu0 0.0
        %944 = vmatpush1.msra.mxu0 0.0
        %945 = vmatprep.subr.mxu0 0.0
        %946 = vmatpush1.msra.mxu0 0.0
        %947 = vmatprep.subr.mxu0 0.0
        %948 = vmatpush1.msra.mxu0 0.0
        %949 = vmatprep.subr.mxu0 0.0
        %950 = vmatpush1.msra.mxu0 0.0
        %951 = vmatprep.subr.mxu0 0.0
        %952 = vmatpush1.msra.mxu0 0.0
        %953 = vmatprep.subr.mxu0 0.0
        %954 = vmatpush1.msra.mxu0 0.0
        %955 = vmatprep.subr.mxu0 0.0
        %956 = vmatpush1.msra.mxu0 0.0
        %957 = vmatprep.subr.mxu0 0.0
        %958 = vmatpush1.msra.mxu0 %v828
        %959 = vmatprep.subr.mxu0 0.0
        %960 = vmatpush2.msra.mxu0 0.0
        %961 = vmatprep.subr.mxu0 0.0
        %962 = vmatpush2.msra.mxu0 0.0
        %963 = vmatprep.subr.mxu0 0.0
        %964 = vmatpush2.msra.mxu0 0.0
        %965 = vmatprep.subr.mxu0 0.0
        %966 = vmatpush2.msra.mxu0 0.0
        %967 = vmatprep.subr.mxu0 0.0
        %968 = vmatpush2.msra.mxu0 0.0
        %969 = vmatprep.subr.mxu0 0.0
        %970 = vmatpush2.msra.mxu0 0.0
        %971 = vmatprep.subr.mxu0 0.0
        %972 = vmatpush2.msra.mxu0 0.0
        %973 = vmatprep.subr.mxu0 0.0
        %974 = vmatpush2.msra.mxu0 0.0
        %975 = vmatprep.subr.mxu0 0.0
        %976 = vmatpush2.msra.mxu0 0.0
        %977 = vmatprep.subr.mxu0 0.0
        %978 = vmatpush2.msra.mxu0 0.0
        %979 = vmatprep.subr.mxu0 0.0
        %980 = vmatpush2.msra.mxu0 0.0
        %981 = vmatprep.subr.mxu0 0.0
        %982 = vmatpush2.msra.mxu0 0.0
        %983 = vmatprep.subr.mxu0 0.0
        %984 = vmatpush2.msra.mxu0 0.0
        %985 = vmatprep.subr.mxu0 0.0
        %986 = vmatpush2.msra.mxu0 0.0
        %987 = vmatprep.subr.mxu0 0.0
        %988 = vmatpush2.msra.mxu0 0.0
        %989 = vmatprep.subr.mxu0 0.0
        %990 = vmatpush2.msra.mxu0 0.0
        %991 = vmatprep.mubr.f32.mxu0 0.0
        %992 = vmatmul.mubr.f32.gmra.mxu0 %v925
        %v993 = vpop.f32.mrf.mxu0
        %v994 = vadd.f32 0.0, %v993
        %v995 = vpop.f32.mrf.mxu0
        %996 = vdwg.mxu0
        %997 = vst.msk [vmem:[#allocation2] sm:$0xff] %vm835, %v994
        %998 = vrot.lane.b32.xlu0 %v831, 120
        %v999 = vpop.permute.xlu0 %998
        %1000 = vrot.lane.b32.xlu0 %v743, 120
        %v1001 = vpop.permute.xlu0 %1000
        %v1002 = vsel %vm835, %v999, 0
        %v1004 = vsel %vm835, %v1001, 0
        %1006 = vmatprep.subr.mxu0 0.0
        %1007 = vmatpush1.xpose.msra.mxu0 0.0
        %1008 = vmatprep.subr.mxu0 0.0
        %1009 = vmatpush1.xpose.msra.mxu0 0.0
        %1010 = vmatprep.subr.mxu0 0.0
        %1011 = vmatpush1.xpose.msra.mxu0 0.0
        %1012 = vmatprep.subr.mxu0 0.0
        %1013 = vmatpush1.xpose.msra.mxu0 0.0
        %1014 = vmatprep.subr.mxu0 0.0
        %1015 = vmatpush1.xpose.msra.mxu0 0.0
        %1016 = vmatprep.subr.mxu0 0.0
        %1017 = vmatpush1.xpose.msra.mxu0 0.0
        %1018 = vmatprep.subr.mxu0 0.0
        %1019 = vmatpush1.xpose.msra.mxu0 0.0
        %1020 = vmatprep.subr.mxu0 0.0
        %1021 = vmatpush1.xpose.msra.mxu0 0.0
        %1022 = vmatprep.subr.mxu0 0.0
        %1023 = vmatpush1.xpose.msra.mxu0 0.0
        %1024 = vmatprep.subr.mxu0 0.0
        %1025 = vmatpush1.xpose.msra.mxu0 0.0
        %1026 = vmatprep.subr.mxu0 0.0
        %1027 = vmatpush1.xpose.msra.mxu0 0.0
        %1028 = vmatprep.subr.mxu0 0.0
        %1029 = vmatpush1.xpose.msra.mxu0 0.0
        %1030 = vmatprep.subr.mxu0 0.0
        %1031 = vmatpush1.xpose.msra.mxu0 0.0
        %1032 = vmatprep.subr.mxu0 0.0
        %1033 = vmatpush1.xpose.msra.mxu0 0.0
        %1034 = vmatprep.subr.mxu0 0.0
        %1035 = vmatpush1.xpose.msra.mxu0 0.0
        %1036 = vmatprep.subr.mxu0 0.0
        %1037 = vmatpush1.xpose.msra.mxu0 %v1004
        %1038 = vmatprep.subr.mxu0 0.0
        %1039 = vmatpush2.xpose.msra.mxu0 0.0
        %1040 = vmatprep.subr.mxu0 0.0
        %1041 = vmatpush2.xpose.msra.mxu0 0.0
        %1042 = vmatprep.subr.mxu0 0.0
        %1043 = vmatpush2.xpose.msra.mxu0 0.0
        %1044 = vmatprep.subr.mxu0 0.0
        %1045 = vmatpush2.xpose.msra.mxu0 0.0
        %1046 = vmatprep.subr.mxu0 0.0
        %1047 = vmatpush2.xpose.msra.mxu0 0.0
        %1048 = vmatprep.subr.mxu0 0.0
        %1049 = vmatpush2.xpose.msra.mxu0 0.0
        %1050 = vmatprep.subr.mxu0 0.0
        %1051 = vmatpush2.xpose.msra.mxu0 0.0
        %1052 = vmatprep.subr.mxu0 0.0
        %1053 = vmatpush2.xpose.msra.mxu0 0.0
        %1054 = vmatprep.subr.mxu0 0.0
        %1055 = vmatpush2.xpose.msra.mxu0 0.0
        %1056 = vmatprep.subr.mxu0 0.0
        %1057 = vmatpush2.xpose.msra.mxu0 0.0
        %1058 = vmatprep.subr.mxu0 0.0
        %1059 = vmatpush2.xpose.msra.mxu0 0.0
        %1060 = vmatprep.subr.mxu0 0.0
        %1061 = vmatpush2.xpose.msra.mxu0 0.0
        %1062 = vmatprep.subr.mxu0 0.0
        %1063 = vmatpush2.xpose.msra.mxu0 0.0
        %1064 = vmatprep.subr.mxu0 0.0
        %1065 = vmatpush2.xpose.msra.mxu0 0.0
        %1066 = vmatprep.subr.mxu0 0.0
        %1067 = vmatpush2.xpose.msra.mxu0 0.0
        %1068 = vmatprep.subr.mxu0 0.0
        %1069 = vmatpush2.xpose.msra.mxu0 0.0
        %1070 = vmatprep.mubr.f32.mxu0 0.0
        %1071 = vmatmul.mubr.f32.gmra.mxu0 %v1002
        %v1072 = vpop.f32.mrf.mxu0
        %v1073 = vadd.f32 0.0, %v1072
        %v1074 = vpop.f32.mrf.mxu0
        %1075 = vdwg.mxu0
        %v1076 = vsel %vm834, -1e+09, %v1073
        %v1077 = vsel %vm835, %v1076, -inf
        %1078 = vmax.xlane.f32.xlu0 %v1077
        %v1079 = vpop.xlane.xlu0 %1078
        %v1080 = vsub.f32 %v1076, %v1079
        %v1081 = vmul.f32 %v1080, 1.442695
        %v1082 = vpow.pop %v1081
        %v1083 = vsel %vm835, %v1082, 0.0
        %1084 = vadd.xlane.f32.xlu0 %v1083
        %v1085 = vpop.xlane.xlu0 %1084
        %v1086 = vrcp.pop %v1085
        %v1087 = vmul.f32 %v1082, %v1086
        %1089 = vrot.lane.b32.xlu0 %v828, 120
        %v1090 = vpop.permute.xlu0 %1089
        %v1093 = vsel %vm835, %v1087, 0
        %1095 = vmatprep.subr.mxu0 0.0
        %1096 = vmatpush1.msra.mxu0 0.0
        %1097 = vmatprep.subr.mxu0 0.0
        %1098 = vmatpush1.msra.mxu0 0.0
        %1099 = vmatprep.subr.mxu0 0.0
        %1100 = vmatpush1.msra.mxu0 0.0
        %1101 = vmatprep.subr.mxu0 0.0
        %1102 = vmatpush1.msra.mxu0 0.0
        %1103 = vmatprep.subr.mxu0 0.0
        %1104 = vmatpush1.msra.mxu0 0.0
        %1105 = vmatprep.subr.mxu0 0.0
        %1106 = vmatpush1.msra.mxu0 0.0
        %1107 = vmatprep.subr.mxu0 0.0
        %1108 = vmatpush1.msra.mxu0 0.0
        %1109 = vmatprep.subr.mxu0 0.0
        %1110 = vmatpush1.msra.mxu0 0.0
        %1111 = vmatprep.subr.mxu0 0.0
        %1112 = vmatpush1.msra.mxu0 0.0
        %1113 = vmatprep.subr.mxu0 0.0
        %1114 = vmatpush1.msra.mxu0 0.0
        %1115 = vmatprep.subr.mxu0 0.0
        %1116 = vmatpush1.msra.mxu0 0.0
        %1117 = vmatprep.subr.mxu0 0.0
        %1118 = vmatpush1.msra.mxu0 0.0
        %1119 = vmatprep.subr.mxu0 0.0
        %1120 = vmatpush1.msra.mxu0 0.0
        %1121 = vmatprep.subr.mxu0 0.0
        %1122 = vmatpush1.msra.mxu0 0.0
        %1123 = vmatprep.subr.mxu0 0.0
        %1124 = vmatpush1.msra.mxu0 0.0
        %1125 = vmatprep.subr.mxu0 0.0
        %1126 = vmatpush1.msra.mxu0 %v1090
        %1127 = vmatprep.subr.mxu0 0.0
        %1128 = vmatpush2.msra.mxu0 0.0
        %1129 = vmatprep.subr.mxu0 0.0
        %1130 = vmatpush2.msra.mxu0 0.0
        %1131 = vmatprep.subr.mxu0 0.0
        %1132 = vmatpush2.msra.mxu0 0.0
        %1133 = vmatprep.subr.mxu0 0.0
        %1134 = vmatpush2.msra.mxu0 0.0
        %1135 = vmatprep.subr.mxu0 0.0
        %1136 = vmatpush2.msra.mxu0 0.0
        %1137 = vmatprep.subr.mxu0 0.0
        %1138 = vmatpush2.msra.mxu0 0.0
        %1139 = vmatprep.subr.mxu0 0.0
        %1140 = vmatpush2.msra.mxu0 0.0
        %1141 = vmatprep.subr.mxu0 0.0
        %1142 = vmatpush2.msra.mxu0 0.0
        %1143 = vmatprep.subr.mxu0 0.0
        %1144 = vmatpush2.msra.mxu0 0.0
        %1145 = vmatprep.subr.mxu0 0.0
        %1146 = vmatpush2.msra.mxu0 0.0
        %1147 = vmatprep.subr.mxu0 0.0
        %1148 = vmatpush2.msra.mxu0 0.0
        %1149 = vmatprep.subr.mxu0 0.0
        %1150 = vmatpush2.msra.mxu0 0.0
        %1151 = vmatprep.subr.mxu0 0.0
        %1152 = vmatpush2.msra.mxu0 0.0
        %1153 = vmatprep.subr.mxu0 0.0
        %1154 = vmatpush2.msra.mxu0 0.0
        %1155 = vmatprep.subr.mxu0 0.0
        %1156 = vmatpush2.msra.mxu0 0.0
        %1157 = vmatprep.subr.mxu0 0.0
        %1158 = vmatpush2.msra.mxu0 0.0
        %1159 = vmatprep.mubr.f32.mxu0 0.0
        %1160 = vmatmul.mubr.f32.gmra.mxu0 %v1093
        %v1161 = vpop.f32.mrf.mxu0
        %v1162 = vadd.f32 0.0, %v1161
        %v1163 = vpop.f32.mrf.mxu0
        %1164 = vdwg.mxu0
        %1166 = vrot.lane.b32.xlu0 %v1162, 8
        %v1167 = vpop.permute.xlu0 %1166
        %vm1169 = vcmask 130112
        %1170 = vst.msk [vmem:[#allocation2] sm:$0xff] %vm1169, %v1167
        %1171 = vrot.lane.b32.xlu0 %v831, 112
        %v1172 = vpop.permute.xlu0 %1171
        %1173 = vrot.lane.b32.xlu0 %v743, 112
        %v1174 = vpop.permute.xlu0 %1173
        %v1175 = vsel %vm835, %v1172, 0
        %v1177 = vsel %vm835, %v1174, 0
        %1179 = vmatprep.subr.mxu0 0.0
        %1180 = vmatpush1.xpose.msra.mxu0 0.0
        %1181 = vmatprep.subr.mxu0 0.0
        %1182 = vmatpush1.xpose.msra.mxu0 0.0
        %1183 = vmatprep.subr.mxu0 0.0
        %1184 = vmatpush1.xpose.msra.mxu0 0.0
        %1185 = vmatprep.subr.mxu0 0.0
        %1186 = vmatpush1.xpose.msra.mxu0 0.0
        %1187 = vmatprep.subr.mxu0 0.0
        %1188 = vmatpush1.xpose.msra.mxu0 0.0
        %1189 = vmatprep.subr.mxu0 0.0
        %1190 = vmatpush1.xpose.msra.mxu0 0.0
        %1191 = vmatprep.subr.mxu0 0.0
        %1192 = vmatpush1.xpose.msra.mxu0 0.0
        %1193 = vmatprep.subr.mxu0 0.0
        %1194 = vmatpush1.xpose.msra.mxu0 0.0
        %1195 = vmatprep.subr.mxu0 0.0
        %1196 = vmatpush1.xpose.msra.mxu0 0.0
        %1197 = vmatprep.subr.mxu0 0.0
        %1198 = vmatpush1.xpose.msra.mxu0 0.0
        %1199 = vmatprep.subr.mxu0 0.0
        %1200 = vmatpush1.xpose.msra.mxu0 0.0
        %1201 = vmatprep.subr.mxu0 0.0
        %1202 = vmatpush1.xpose.msra.mxu0 0.0
        %1203 = vmatprep.subr.mxu0 0.0
        %1204 = vmatpush1.xpose.msra.mxu0 0.0
        %1205 = vmatprep.subr.mxu0 0.0
        %1206 = vmatpush1.xpose.msra.mxu0 0.0
        %1207 = vmatprep.subr.mxu0 0.0
        %1208 = vmatpush1.xpose.msra.mxu0 0.0
        %1209 = vmatprep.subr.mxu0 0.0
        %1210 = vmatpush1.xpose.msra.mxu0 %v1177
        %1211 = vmatprep.subr.mxu0 0.0
        %1212 = vmatpush2.xpose.msra.mxu0 0.0
        %1213 = vmatprep.subr.mxu0 0.0
        %1214 = vmatpush2.xpose.msra.mxu0 0.0
        %1215 = vmatprep.subr.mxu0 0.0
        %1216 = vmatpush2.xpose.msra.mxu0 0.0
        %1217 = vmatprep.subr.mxu0 0.0
        %1218 = vmatpush2.xpose.msra.mxu0 0.0
        %1219 = vmatprep.subr.mxu0 0.0
        %1220 = vmatpush2.xpose.msra.mxu0 0.0
        %1221 = vmatprep.subr.mxu0 0.0
        %1222 = vmatpush2.xpose.msra.mxu0 0.0
        %1223 = vmatprep.subr.mxu0 0.0
        %1224 = vmatpush2.xpose.msra.mxu0 0.0
        %1225 = vmatprep.subr.mxu0 0.0
        %1226 = vmatpush2.xpose.msra.mxu0 0.0
        %1227 = vmatprep.subr.mxu0 0.0
        %1228 = vmatpush2.xpose.msra.mxu0 0.0
        %1229 = vmatprep.subr.mxu0 0.0
        %1230 = vmatpush2.xpose.msra.mxu0 0.0
        %1231 = vmatprep.subr.mxu0 0.0
        %1232 = vmatpush2.xpose.msra.mxu0 0.0
        %1233 = vmatprep.subr.mxu0 0.0
        %1234 = vmatpush2.xpose.msra.mxu0 0.0
        %1235 = vmatprep.subr.mxu0 0.0
        %1236 = vmatpush2.xpose.msra.mxu0 0.0
        %1237 = vmatprep.subr.mxu0 0.0
        %1238 = vmatpush2.xpose.msra.mxu0 0.0
        %1239 = vmatprep.subr.mxu0 0.0
        %1240 = vmatpush2.xpose.msra.mxu0 0.0
        %1241 = vmatprep.subr.mxu0 0.0
        %1242 = vmatpush2.xpose.msra.mxu0 0.0
        %1243 = vmatprep.mubr.f32.mxu0 0.0
        %1244 = vmatmul.mubr.f32.gmra.mxu0 %v1175
        %v1245 = vpop.f32.mrf.mxu0
        %v1246 = vadd.f32 0.0, %v1245
        %v1247 = vpop.f32.mrf.mxu0
        %1248 = vdwg.mxu0
        %v1249 = vsel %vm834, -1e+09, %v1246
        %v1250 = vsel %vm835, %v1249, -inf
        %1251 = vmax.xlane.f32.xlu0 %v1250
        %v1252 = vpop.xlane.xlu0 %1251
        %v1253 = vsub.f32 %v1249, %v1252
        %v1254 = vmul.f32 %v1253, 1.442695
        %v1255 = vpow.pop %v1254
        %v1256 = vsel %vm835, %v1255, 0.0
        %1257 = vadd.xlane.f32.xlu0 %v1256
        %v1258 = vpop.xlane.xlu0 %1257
        %v1259 = vrcp.pop %v1258
        %v1260 = vmul.f32 %v1255, %v1259
        %1261 = vrot.lane.b32.xlu0 %v828, 112
        %v1262 = vpop.permute.xlu0 %1261
        %v1265 = vsel %vm835, %v1260, 0
        %1267 = vmatprep.subr.mxu0 0.0
        %1268 = vmatpush1.msra.mxu0 0.0
        %1269 = vmatprep.subr.mxu0 0.0
        %1270 = vmatpush1.msra.mxu0 0.0
        %1271 = vmatprep.subr.mxu0 0.0
        %1272 = vmatpush1.msra.mxu0 0.0
        %1273 = vmatprep.subr.mxu0 0.0
        %1274 = vmatpush1.msra.mxu0 0.0
        %1275 = vmatprep.subr.mxu0 0.0
        %1276 = vmatpush1.msra.mxu0 0.0
        %1277 = vmatprep.subr.mxu0 0.0
        %1278 = vmatpush1.msra.mxu0 0.0
        %1279 = vmatprep.subr.mxu0 0.0
        %1280 = vmatpush1.msra.mxu0 0.0
        %1281 = vmatprep.subr.mxu0 0.0
        %1282 = vmatpush1.msra.mxu0 0.0
        %1283 = vmatprep.subr.mxu0 0.0
        %1284 = vmatpush1.msra.mxu0 0.0
        %1285 = vmatprep.subr.mxu0 0.0
        %1286 = vmatpush1.msra.mxu0 0.0
        %1287 = vmatprep.subr.mxu0 0.0
        %1288 = vmatpush1.msra.mxu0 0.0
        %1289 = vmatprep.subr.mxu0 0.0
        %1290 = vmatpush1.msra.mxu0 0.0
        %1291 = vmatprep.subr.mxu0 0.0
        %1292 = vmatpush1.msra.mxu0 0.0
        %1293 = vmatprep.subr.mxu0 0.0
        %1294 = vmatpush1.msra.mxu0 0.0
        %1295 = vmatprep.subr.mxu0 0.0
        %1296 = vmatpush1.msra.mxu0 0.0
        %1297 = vmatprep.subr.mxu0 0.0
        %1298 = vmatpush1.msra.mxu0 %v1262
        %1299 = vmatprep.subr.mxu0 0.0
        %1300 = vmatpush2.msra.mxu0 0.0
        %1301 = vmatprep.subr.mxu0 0.0
        %1302 = vmatpush2.msra.mxu0 0.0
        %1303 = vmatprep.subr.mxu0 0.0
        %1304 = vmatpush2.msra.mxu0 0.0
        %1305 = vmatprep.subr.mxu0 0.0
        %1306 = vmatpush2.msra.mxu0 0.0
        %1307 = vmatprep.subr.mxu0 0.0
        %1308 = vmatpush2.msra.mxu0 0.0
        %1309 = vmatprep.subr.mxu0 0.0
        %1310 = vmatpush2.msra.mxu0 0.0
        %1311 = vmatprep.subr.mxu0 0.0
        %1312 = vmatpush2.msra.mxu0 0.0
        %1313 = vmatprep.subr.mxu0 0.0
        %1314 = vmatpush2.msra.mxu0 0.0
        %1315 = vmatprep.subr.mxu0 0.0
        %1316 = vmatpush2.msra.mxu0 0.0
        %1317 = vmatprep.subr.mxu0 0.0
        %1318 = vmatpush2.msra.mxu0 0.0
        %1319 = vmatprep.subr.mxu0 0.0
        %1320 = vmatpush2.msra.mxu0 0.0
        %1321 = vmatprep.subr.mxu0 0.0
        %1322 = vmatpush2.msra.mxu0 0.0
        %1323 = vmatprep.subr.mxu0 0.0
        %1324 = vmatpush2.msra.mxu0 0.0
        %1325 = vmatprep.subr.mxu0 0.0
        %1326 = vmatpush2.msra.mxu0 0.0
        %1327 = vmatprep.subr.mxu0 0.0
        %1328 = vmatpush2.msra.mxu0 0.0
        %1329 = vmatprep.subr.mxu0 0.0
        %1330 = vmatpush2.msra.mxu0 0.0
        %1331 = vmatprep.mubr.f32.mxu0 0.0
        %1332 = vmatmul.mubr.f32.gmra.mxu0 %v1265
        %v1333 = vpop.f32.mrf.mxu0
        %v1334 = vadd.f32 0.0, %v1333
        %v1335 = vpop.f32.mrf.mxu0
        %1336 = vdwg.mxu0
        %1338 = vrot.lane.b32.xlu0 %v1334, 16
        %v1339 = vpop.permute.xlu0 %1338
        %vm1341 = vcmask 195712
        %1342 = vst.msk [vmem:[#allocation2] sm:$0xff] %vm1341, %v1339
        %1343 = vrot.lane.b32.xlu0 %v831, 104
        %v1344 = vpop.permute.xlu0 %1343
        %1345 = vrot.lane.b32.xlu0 %v743, 104
        %v1346 = vpop.permute.xlu0 %1345
        %v1347 = vsel %vm835, %v1344, 0
        %v1349 = vsel %vm835, %v1346, 0
        %1351 = vmatprep.subr.mxu0 0.0
        %1352 = vmatpush1.xpose.msra.mxu0 0.0
        %1353 = vmatprep.subr.mxu0 0.0
        %1354 = vmatpush1.xpose.msra.mxu0 0.0
        %1355 = vmatprep.subr.mxu0 0.0
        %1356 = vmatpush1.xpose.msra.mxu0 0.0
        %1357 = vmatprep.subr.mxu0 0.0
        %1358 = vmatpush1.xpose.msra.mxu0 0.0
        %1359 = vmatprep.subr.mxu0 0.0
        %1360 = vmatpush1.xpose.msra.mxu0 0.0
        %1361 = vmatprep.subr.mxu0 0.0
        %1362 = vmatpush1.xpose.msra.mxu0 0.0
        %1363 = vmatprep.subr.mxu0 0.0
        %1364 = vmatpush1.xpose.msra.mxu0 0.0
        %1365 = vmatprep.subr.mxu0 0.0
        %1366 = vmatpush1.xpose.msra.mxu0 0.0
        %1367 = vmatprep.subr.mxu0 0.0
        %1368 = vmatpush1.xpose.msra.mxu0 0.0
        %1369 = vmatprep.subr.mxu0 0.0
        %1370 = vmatpush1.xpose.msra.mxu0 0.0
        %1371 = vmatprep.subr.mxu0 0.0
        %1372 = vmatpush1.xpose.msra.mxu0 0.0
        %1373 = vmatprep.subr.mxu0 0.0
        %1374 = vmatpush1.xpose.msra.mxu0 0.0
        %1375 = vmatprep.subr.mxu0 0.0
        %1376 = vmatpush1.xpose.msra.mxu0 0.0
        %1377 = vmatprep.subr.mxu0 0.0
        %1378 = vmatpush1.xpose.msra.mxu0 0.0
        %1379 = vmatprep.subr.mxu0 0.0
        %1380 = vmatpush1.xpose.msra.mxu0 0.0
        %1381 = vmatprep.subr.mxu0 0.0
        %1382 = vmatpush1.xpose.msra.mxu0 %v1349
        %1383 = vmatprep.subr.mxu0 0.0
        %1384 = vmatpush2.xpose.msra.mxu0 0.0
        %1385 = vmatprep.subr.mxu0 0.0
        %1386 = vmatpush2.xpose.msra.mxu0 0.0
        %1387 = vmatprep.subr.mxu0 0.0
        %1388 = vmatpush2.xpose.msra.mxu0 0.0
        %1389 = vmatprep.subr.mxu0 0.0
        %1390 = vmatpush2.xpose.msra.mxu0 0.0
        %1391 = vmatprep.subr.mxu0 0.0
        %1392 = vmatpush2.xpose.msra.mxu0 0.0
        %1393 = vmatprep.subr.mxu0 0.0
        %1394 = vmatpush2.xpose.msra.mxu0 0.0
        %1395 = vmatprep.subr.mxu0 0.0
        %1396 = vmatpush2.xpose.msra.mxu0 0.0
        %1397 = vmatprep.subr.mxu0 0.0
        %1398 = vmatpush2.xpose.msra.mxu0 0.0
        %1399 = vmatprep.subr.mxu0 0.0
        %1400 = vmatpush2.xpose.msra.mxu0 0.0
        %1401 = vmatprep.subr.mxu0 0.0
        %1402 = vmatpush2.xpose.msra.mxu0 0.0
        %1403 = vmatprep.subr.mxu0 0.0
        %1404 = vmatpush2.xpose.msra.mxu0 0.0
        %1405 = vmatprep.subr.mxu0 0.0
        %1406 = vmatpush2.xpose.msra.mxu0 0.0
        %1407 = vmatprep.subr.mxu0 0.0
        %1408 = vmatpush2.xpose.msra.mxu0 0.0
        %1409 = vmatprep.subr.mxu0 0.0
        %1410 = vmatpush2.xpose.msra.mxu0 0.0
        %1411 = vmatprep.subr.mxu0 0.0
        %1412 = vmatpush2.xpose.msra.mxu0 0.0
        %1413 = vmatprep.subr.mxu0 0.0
        %1414 = vmatpush2.xpose.msra.mxu0 0.0
        %1415 = vmatprep.mubr.f32.mxu0 0.0
        %1416 = vmatmul.mubr.f32.gmra.mxu0 %v1347
        %v1417 = vpop.f32.mrf.mxu0
        %v1418 = vadd.f32 0.0, %v1417
        %v1419 = vpop.f32.mrf.mxu0
        %1420 = vdwg.mxu0
        %v1421 = vsel %vm834, -1e+09, %v1418
        %v1422 = vsel %vm835, %v1421, -inf
        %1423 = vmax.xlane.f32.xlu0 %v1422
        %v1424 = vpop.xlane.xlu0 %1423
        %v1425 = vsub.f32 %v1421, %v1424
        %v1426 = vmul.f32 %v1425, 1.442695
        %v1427 = vpow.pop %v1426
        %v1428 = vsel %vm835, %v1427, 0.0
        %1429 = vadd.xlane.f32.xlu0 %v1428
        %v1430 = vpop.xlane.xlu0 %1429
        %v1431 = vrcp.pop %v1430
        %v1432 = vmul.f32 %v1427, %v1431
        %1433 = vrot.lane.b32.xlu0 %v828, 104
        %v1434 = vpop.permute.xlu0 %1433
        %v1437 = vsel %vm835, %v1432, 0
        %1439 = vmatprep.subr.mxu0 0.0
        %1440 = vmatpush1.msra.mxu0 0.0
        %1441 = vmatprep.subr.mxu0 0.0
        %1442 = vmatpush1.msra.mxu0 0.0
        %1443 = vmatprep.subr.mxu0 0.0
        %1444 = vmatpush1.msra.mxu0 0.0
        %1445 = vmatprep.subr.mxu0 0.0
        %1446 = vmatpush1.msra.mxu0 0.0
        %1447 = vmatprep.subr.mxu0 0.0
        %1448 = vmatpush1.msra.mxu0 0.0
        %1449 = vmatprep.subr.mxu0 0.0
        %1450 = vmatpush1.msra.mxu0 0.0
        %1451 = vmatprep.subr.mxu0 0.0
        %1452 = vmatpush1.msra.mxu0 0.0
        %1453 = vmatprep.subr.mxu0 0.0
        %1454 = vmatpush1.msra.mxu0 0.0
        %1455 = vmatprep.subr.mxu0 0.0
        %1456 = vmatpush1.msra.mxu0 0.0
        %1457 = vmatprep.subr.mxu0 0.0
        %1458 = vmatpush1.msra.mxu0 0.0
        %1459 = vmatprep.subr.mxu0 0.0
        %1460 = vmatpush1.msra.mxu0 0.0
        %1461 = vmatprep.subr.mxu0 0.0
        %1462 = vmatpush1.msra.mxu0 0.0
        %1463 = vmatprep.subr.mxu0 0.0
        %1464 = vmatpush1.msra.mxu0 0.0
        %1465 = vmatprep.subr.mxu0 0.0
        %1466 = vmatpush1.msra.mxu0 0.0
        %1467 = vmatprep.subr.mxu0 0.0
        %1468 = vmatpush1.msra.mxu0 0.0
        %1469 = vmatprep.subr.mxu0 0.0
        %1470 = vmatpush1.msra.mxu0 %v1434
        %1471 = vmatprep.subr.mxu0 0.0
        %1472 = vmatpush2.msra.mxu0 0.0
        %1473 = vmatprep.subr.mxu0 0.0
        %1474 = vmatpush2.msra.mxu0 0.0
        %1475 = vmatprep.subr.mxu0 0.0
        %1476 = vmatpush2.msra.mxu0 0.0
        %1477 = vmatprep.subr.mxu0 0.0
        %1478 = vmatpush2.msra.mxu0 0.0
        %1479 = vmatprep.subr.mxu0 0.0
        %1480 = vmatpush2.msra.mxu0 0.0
        %1481 = vmatprep.subr.mxu0 0.0
        %1482 = vmatpush2.msra.mxu0 0.0
        %1483 = vmatprep.subr.mxu0 0.0
        %1484 = vmatpush2.msra.mxu0 0.0
        %1485 = vmatprep.subr.mxu0 0.0
        %1486 = vmatpush2.msra.mxu0 0.0
        %1487 = vmatprep.subr.mxu0 0.0
        %1488 = vmatpush2.msra.mxu0 0.0
        %1489 = vmatprep.subr.mxu0 0.0
        %1490 = vmatpush2.msra.mxu0 0.0
        %1491 = vmatprep.subr.mxu0 0.0
        %1492 = vmatpush2.msra.mxu0 0.0
        %1493 = vmatprep.subr.mxu0 0.0
        %1494 = vmatpush2.msra.mxu0 0.0
        %1495 = vmatprep.subr.mxu0 0.0
        %1496 = vmatpush2.msra.mxu0 0.0
        %1497 = vmatprep.subr.mxu0 0.0
        %1498 = vmatpush2.msra.mxu0 0.0
        %1499 = vmatprep.subr.mxu0 0.0
        %1500 = vmatpush2.msra.mxu0 0.0
        %1501 = vmatprep.subr.mxu0 0.0
        %1502 = vmatpush2.msra.mxu0 0.0
        %1503 = vmatprep.mubr.f32.mxu0 0.0
        %1504 = vmatmul.mubr.f32.gmra.mxu0 %v1437
        %v1505 = vpop.f32.mrf.mxu0
        %v1506 = vadd.f32 0.0, %v1505
        %v1507 = vpop.f32.mrf.mxu0
        %1508 = vdwg.mxu0
        %1510 = vrot.lane.b32.xlu0 %v1506, 24
        %v1511 = vpop.permute.xlu0 %1510
        %vm1513 = vcmask 261312
        %1514 = vst.msk [vmem:[#allocation2] sm:$0xff] %vm1513, %v1511
        %v1515 = vld [vmem:[#allocation2] sm:$0xff]
        %v1516 = vld [vmem:[#allocation14] sm:$0xff]
        %v1517 = vld [vmem:[#allocation14 + $0x8] sm:$0xff]
        %v1518 = vld [vmem:[#allocation14 + $0x10] sm:$0xff]
        %v1519 = vld [vmem:[#allocation14 + $0x18] sm:$0xff]
        %v1520 = vld [vmem:[%s11] sm:$0x1]
        %v1522 = vlaneseq
        %v1523 = vshrl.u32 %v1522, 7
        %v1524 = vsub.s32 0, %v1523
        %v1525 = vrot.slane %v1520, %v1524
        %v1528 = vsel %vm587, %v1515, 0
        %1530 = vmatprep.subr.mxu0 0.0
        %1531 = vmatpush1.msra.mxu0 0.0
        %1532 = vmatprep.subr.mxu0 0.0
        %1533 = vmatpush1.msra.mxu0 0.0
        %1534 = vmatprep.subr.mxu0 0.0
        %1535 = vmatpush1.msra.mxu0 0.0
        %1536 = vmatprep.subr.mxu0 0.0
        %1537 = vmatpush1.msra.mxu0 0.0
        %1538 = vmatprep.subr.mxu0 0.0
        %1539 = vmatpush1.msra.mxu0 0.0
        %1540 = vmatprep.subr.mxu0 0.0
        %1541 = vmatpush1.msra.mxu0 0.0
        %1542 = vmatprep.subr.mxu0 0.0
        %1543 = vmatpush1.msra.mxu0 0.0
        %1544 = vmatprep.subr.mxu0 0.0
        %1545 = vmatpush1.msra.mxu0 0.0
        %1546 = vmatprep.subr.mxu0 0.0
        %1547 = vmatpush1.msra.mxu0 0.0
        %1548 = vmatprep.subr.mxu0 0.0
        %1549 = vmatpush1.msra.mxu0 0.0
        %1550 = vmatprep.subr.mxu0 0.0
        %1551 = vmatpush1.msra.mxu0 0.0
        %1552 = vmatprep.subr.mxu0 0.0
        %1553 = vmatpush1.msra.mxu0 0.0
        %1554 = vmatprep.subr.mxu0 0.0
        %1555 = vmatpush1.msra.mxu0 %v1519
        %1556 = vmatprep.subr.mxu0 0.0
        %1557 = vmatpush1.msra.mxu0 %v1518
        %1558 = vmatprep.subr.mxu0 0.0
        %1559 = vmatpush1.msra.mxu0 %v1517
        %1560 = vmatprep.subr.mxu0 0.0
        %1561 = vmatpush1.msra.mxu0 %v1516
        %1562 = vmatprep.subr.mxu0 0.0
        %1563 = vmatpush2.msra.mxu0 0.0
        %1564 = vmatprep.subr.mxu0 0.0
        %1565 = vmatpush2.msra.mxu0 0.0
        %1566 = vmatprep.subr.mxu0 0.0
        %1567 = vmatpush2.msra.mxu0 0.0
        %1568 = vmatprep.subr.mxu0 0.0
        %1569 = vmatpush2.msra.mxu0 0.0
        %1570 = vmatprep.subr.mxu0 0.0
        %1571 = vmatpush2.msra.mxu0 0.0
        %1572 = vmatprep.subr.mxu0 0.0
        %1573 = vmatpush2.msra.mxu0 0.0
        %1574 = vmatprep.subr.mxu0 0.0
        %1575 = vmatpush2.msra.mxu0 0.0
        %1576 = vmatprep.subr.mxu0 0.0
        %1577 = vmatpush2.msra.mxu0 0.0
        %1578 = vmatprep.subr.mxu0 0.0
        %1579 = vmatpush2.msra.mxu0 0.0
        %1580 = vmatprep.subr.mxu0 0.0
        %1581 = vmatpush2.msra.mxu0 0.0
        %1582 = vmatprep.subr.mxu0 0.0
        %1583 = vmatpush2.msra.mxu0 0.0
        %1584 = vmatprep.subr.mxu0 0.0
        %1585 = vmatpush2.msra.mxu0 0.0
        %1586 = vmatprep.subr.mxu0 0.0
        %1587 = vmatpush2.msra.mxu0 0.0
        %1588 = vmatprep.subr.mxu0 0.0
        %1589 = vmatpush2.msra.mxu0 0.0
        %1590 = vmatprep.subr.mxu0 0.0
        %1591 = vmatpush2.msra.mxu0 0.0
        %1592 = vmatprep.subr.mxu0 0.0
        %1593 = vmatpush2.msra.mxu0 0.0
        %1594 = vmatprep.mubr.f32.mxu0 0.0
        %1595 = vmatmul.mubr.f32.gmra.mxu0 %v1528
        %v1596 = vpop.f32.mrf.mxu0
        %v1597 = vadd.f32 %v1525, %v1596
        %v1598 = vpop.f32.mrf.mxu0
        %1599 = vdwg.mxu0
        %1600 = vst.msk [vmem:[%s570] sm:$0xff] %vm587, %v1597
        %s1601 = sand.u32 %s314, 1
        %s1602 = scalar_lea.sflag [#allocation5], %s1601
        %s1603 = sand.u32 %s314, 1
        %s1604 = smul.addr %s1603, 8
        %s1605 = scalar_lea.vmem [#allocation15], %s1604
        // Predicated region
        $region97: #{tpu_custom_call.1} parent=67 // pred_check
          %p1606 = pneg %p324
        $region98: #{tpu_custom_call.1} parent=67 // pred_check_branch
          %1608 = sbr.rel (%p1606) target = $region100
        $region99: #{tpu_custom_call.1} parent=67 // pred_region
          %s1610 = ssub.s32 128, 128
          %1611 = vsyncadd %s1602, %s1610
          %s1612 = smul.addr %s34, 128
          %s1613 = scalar_lea.hbm %s12, %s1612
          %s1615 = sshll.u32 %s1605, 4
          %s1616 = int_to_ptr.vmem [resolvable:$true] %s1615
          %1618 = dma.vmem_to_hbm [thread:$0]  %s1616, 128, %s1613, %s1602
        $region100: #{tpu_custom_call.1} parent=67 // pred_fallthru
          _
      $region68: #{tpu_custom_call.1} parent=5 // pred_fallthru
        _
      %p1619 = scmp.le.s32.totalorder 2, %s29
      // Predicated region
      $region101: #{tpu_custom_call.1} parent=5 // pred_check
        %p1620 = pneg %p1619
      $region102: #{tpu_custom_call.1} parent=5 // pred_check_branch
        %1622 = sbr.rel (%p1620) target = $region104
      $region103: #{tpu_custom_call.1} parent=5 // pred_region
        %s1623 = ssub.s32 %s29, 2
        // Predicated region
        $region105: #{tpu_custom_call.1} parent=103 // pred_check
          %p1624 = pneg %p330
        $region106: #{tpu_custom_call.1} parent=103 // pred_check_branch
          %1626 = sbr.rel (%p1624) target = $region108
        $region107: #{tpu_custom_call.1} parent=103 // pred_region
          %s1627 = sand.u32 %s315, 1
          %s1628 = scalar_lea.sflag [#allocation5], %s1627
          %s1629 = sand.u32 %s315, 1
          %s1630 = smul.addr %s1629, 8
          %s1631 = scalar_lea.vmem [#allocation15], %s1630
          %1632 = dma.done %s1628, 128
        $region108: #{tpu_custom_call.1} parent=103 // pred_fallthru
          _
      $region104: #{tpu_custom_call.1} parent=5 // pred_fallthru
        _
    $region6: #{tpu_custom_call.1} parent=1 // loop_footer
      %s33 = sadd.s32 1, %s29
    $region7: #{tpu_custom_call.1} parent=1 // loop_footer_branch
      %28 = sbr.rel target = $region3
    $region8: #{tpu_custom_call.1} parent=1 // loop_exit
      _
    %1633 = vsyncpa [#allocation4], 1
    %s1634 = scalar_lea.sflag [#allocation4], 1
    %1635 = vsyncpa %s1634, 1
    %1636 = vsyncpa [#allocation7], 1
    %s1637 = scalar_lea.sflag [#allocation7], 1
    %1638 = vsyncpa %s1637, 1
    %1639 = vsyncpa [#allocation10], 1
    %1640 = vsyncpa [#allocation13], 1
    %1641 = vsyncpa [#allocation5], 1
    %s1642 = scalar_lea.sflag [#allocation5], 1
    %1643 = vsyncpa %s1642, 1

</llo_original>
